<compile_context>
chip_gen: v7x
topology: tpu7x:2x2x1
jax: 0.10.0
libtpu: 0.0.40
codegen_flags: <defaults>
</compile_context>

<pallas_src>
import functools

import jax
import jax.numpy as jnp
import numpy as np
from jax import lax
from jax.experimental import pallas as pl
from jax.experimental.pallas import tpu as pltpu


def _round_up(x, m):
    return (x + m - 1) // m * m


def _pad_gate_blocks(w, H, Hp):
    """Pad each of the 4 gate blocks (last dim, size H) out to Hp columns."""
    parts = []
    for g in range(4):
        blk = w[..., g * H:(g + 1) * H]
        pad = [(0, 0)] * (w.ndim - 1) + [(0, Hp - H)]
        parts.append(jnp.pad(blk, pad))
    return jnp.concatenate(parts, axis=-1)


def lstm_linear_kernel(x_ref, mask_ref, wih_ref, b_ref, whh_ref, wl_ref,
                       bl_ref, out_ref, h_scr, c_scr, gates_scr, hbuf,
                       *, matmul_dtype):
    """One (batch-tile, time-tile): LSTM recurrence + batched output Linear.

    x_ref:     (tT, tB, Ep)   time-major input embeddings, matmul_dtype
    mask_ref:  (tT, tB, 1)    1.0 = real token, 0.0 = padding (f32)
    wih_ref:   (Ep, 4Hp)      weight_ih_l0.T, gate blocks zero-padded
    b_ref:     (1, 4Hp)       b_ih + b_hh, gate blocks zero-padded (f32)
    whh_ref:   (Hp, 4Hp)      weight_hh_l0.T, zero-padded
    wl_ref:    (Hp, Ep)       linear.weight.T, zero-padded
    bl_ref:    (1, Ep)        linear.bias, zero-padded (f32)
    out_ref:   (tT, tB, Ep)
    h_scr/c_scr: (tB, Hp)     recurrent state (f32), persistent across T tiles
    gates_scr: (tT, tB, 4Hp)  per-tile precomputed x @ W_ih + b (f32)
    hbuf:      (tT, tB, Hp)   unmasked hidden states of this tile (f32)

    Zero-padding invariant (documented per review): padded gate lanes see a
    pre-activation of exactly 0 (zero-padded W_ih/W_hh columns, zero bias), so
    with zero-initialized c the padded lanes of h/c stay exactly 0
    (i=f=o=0.5, g=0) and never leak into real lanes (padded ROWS of W_hh/W_l
    are zero too).
    """
    tT, tB, _ = x_ref.shape
    Hp = h_scr.shape[-1]

    @pl.when(pl.program_id(1) == 0)   # first time-tile of this batch tile
    def _():
        h_scr[...] = jnp.zeros_like(h_scr)
        c_scr[...] = jnp.zeros_like(c_scr)

    # ---- per-tile input projection: one MXU matmul OUTSIDE the recurrence --
    x2d = x_ref[...].reshape(tT * tB, x_ref.shape[-1])
    gx = jnp.dot(x2d, wih_ref[...], preferred_element_type=jnp.float32)
    gates_scr[...] = gx.reshape(tT, tB, 4 * Hp) + b_ref[...]

    # ---- serial recurrence: only the small h @ W_hh dot + activations ------
    def step(t, carry):
        h, c = carry
        gates = gates_scr[t] + jnp.dot(h.astype(matmul_dtype), whh_ref[...],
                                       preferred_element_type=jnp.float32)
        # sigmoid(x) = 0.5*(1+tanh(0.5*x)): one EUP push per gate; the scale
        # and add ride in idle VALU slots.
        i_g = 0.5 * (1.0 + jnp.tanh(0.5 * gates[:, 0 * Hp:1 * Hp]))
        f_g = 0.5 * (1.0 + jnp.tanh(0.5 * gates[:, 1 * Hp:2 * Hp]))
        g_g = jnp.tanh(gates[:, 2 * Hp:3 * Hp])
        o_g = 0.5 * (1.0 + jnp.tanh(0.5 * gates[:, 3 * Hp:4 * Hp]))
        c = f_g * c + i_g * g_g
        h = o_g * jnp.tanh(c)
        hbuf[t] = h            # unmasked; mask applied once per tile below
        return h, c

    if tT <= 8:
        unroll = True
    elif tT % 8 == 0:
        unroll = 8
    elif tT % 4 == 0:
        unroll = 4
    else:
        unroll = 1
    h_fin, c_fin = lax.fori_loop(0, tT, step, (h_scr[...], c_scr[...]),
                                 unroll=unroll)
    h_scr[...] = h_fin
    c_scr[...] = c_fin

    # ---- masked, batched output Linear: one MXU matmul, lane-dense store ---
    hm = (hbuf[...] * mask_ref[...]).reshape(tT * tB, Hp).astype(matmul_dtype)
    lin = (jnp.dot(hm, wl_ref[...], preferred_element_type=jnp.float32)
           + bl_ref[...])
    out_ref[...] = lin.reshape(tT, tB, -1).astype(out_ref.dtype)


def _device_vmem_budget_bytes():
    """Usable VMEM budget, leaving headroom for Mosaic internal scratch."""
    try:
        cap = int(pltpu.get_tpu_info().vmem_capacity_bytes)
    except Exception:
        cap = 64 * 1024 * 1024            # conservative: v7x physical VMEM
    return min(int(cap * 0.75), 100 * 1024 * 1024)


def _kernel_vmem_bytes(tile_t, tile_b, Ep, Hp, mm_itemsize):
    f32 = 4
    x_tile = tile_t * tile_b * Ep * mm_itemsize
    mask_tile = tile_t * tile_b * f32
    out_tile = tile_t * tile_b * Ep * f32
    weights = (((Ep + Hp) * 4 * Hp + Hp * Ep) * mm_itemsize
               + (4 * Hp + Ep) * f32)
    scratch = (2 * tile_b * Hp + tile_t * tile_b * 5 * Hp) * f32
    # pipelined input/output refs (and weights) are double-buffered
    return 2 * (x_tile + mask_tile + out_tile + weights) + scratch


def my_lstm_forward(x, mask, params, *, tile_t=128, num_batch_tiles=1,
                    matmul_dtype=jnp.float32, vmem_budget_bytes=None):
    """x: (B, T, E) float32, mask: (B, T) {0,1}.  Returns (B, T, E) float32."""
    B, T, E = x.shape
    H = params["w_hh_t"].shape[0]
    mm_dtype = jnp.dtype(matmul_dtype)

    # ---- pad to TPU-friendly shapes --------------------------------------
    sub = 16 if mm_dtype == jnp.dtype(jnp.bfloat16) else 8  # sublane granule
    num_batch_tiles = max(1, int(num_batch_tiles))
    Bp = _round_up(max(B, sub), sub * num_batch_tiles)
    tile_b = Bp // num_batch_tiles
    Hp = _round_up(H, 128)      # lane granularity -> aligned gate slices
    Ep = _round_up(E, 128)      # lane-dense loads/stores

    tile_t = max(1, min(tile_t, T))
    budget = (_device_vmem_budget_bytes() if vmem_budget_bytes is None
              else int(vmem_budget_bytes))
    while (_kernel_vmem_bytes(tile_t, tile_b, Ep, Hp, mm_dtype.itemsize)
           > budget and tile_t > 8):
        tile_t = max(8, tile_t // 2)
    Tp = _round_up(T, tile_t)
    vmem_limit = int(min(
        max(budget,
            _kernel_vmem_bytes(tile_t, tile_b, Ep, Hp, mm_dtype.itemsize)
            + (8 << 20)),
        100 * 1024 * 1024))

    # ---- weights: pad gate blocks / dims, pre-cast to matmul_dtype --------
    w_ih_p = jnp.pad(_pad_gate_blocks(params["w_ih_t"], H, Hp),
                     ((0, Ep - E), (0, 0))).astype(mm_dtype)         # (Ep,4Hp)
    w_hh_p = jnp.pad(_pad_gate_blocks(params["w_hh_t"], H, Hp),
                     ((0, Hp - H), (0, 0))).astype(mm_dtype)         # (Hp,4Hp)
    b_p = _pad_gate_blocks(params["b"], H, Hp).astype(jnp.float32)   # (1,4Hp)
    w_l_p = jnp.pad(params["w_l_t"],
                    ((0, Hp - H), (0, Ep - E))).astype(mm_dtype)     # (Hp,Ep)
    b_l_p = jnp.pad(params["b_l"],
                    ((0, 0), (0, Ep - E))).astype(jnp.float32)       # (1,Ep)

    # ---- inputs: pad, time-major relayout (E bytes/token, not 4Hp) --------
    x_p = jnp.pad(x.astype(jnp.float32),
                  ((0, Bp - B), (0, Tp - T), (0, Ep - E)))
    x_tm = jnp.transpose(x_p, (1, 0, 2)).astype(mm_dtype)            # (Tp,Bp,Ep)
    mask_p = jnp.pad(mask.astype(jnp.float32), ((0, Bp - B), (0, Tp - T)))
    mask_tm = jnp.transpose(mask_p)[:, :, None]                      # (Tp,Bp,1)

    grid = (num_batch_tiles, Tp // tile_t)
    kernel = functools.partial(lstm_linear_kernel, matmul_dtype=mm_dtype)

    out_tm = pl.pallas_call(
        kernel,
        out_shape=jax.ShapeDtypeStruct((Tp, Bp, Ep), jnp.float32),
        grid_spec=pltpu.PrefetchScalarGridSpec(
            num_scalar_prefetch=0,
            grid=grid,
            in_specs=[
                pl.BlockSpec((tile_t, tile_b, Ep), lambda b, t: (t, b, 0)),  # x
                pl.BlockSpec((tile_t, tile_b, 1), lambda b, t: (t, b, 0)),   # mask
                pl.BlockSpec((Ep, 4 * Hp), lambda b, t: (0, 0)),             # W_ih
                pl.BlockSpec((1, 4 * Hp), lambda b, t: (0, 0)),              # b
                pl.BlockSpec((Hp, 4 * Hp), lambda b, t: (0, 0)),             # W_hh
                pl.BlockSpec((Hp, Ep), lambda b, t: (0, 0)),                 # W_l
                pl.BlockSpec((1, Ep), lambda b, t: (0, 0)),                  # b_l
            ],
            out_specs=pl.BlockSpec((tile_t, tile_b, Ep),
                                   lambda b, t: (t, b, 0)),
            scratch_shapes=[
                pltpu.VMEM((tile_b, Hp), jnp.float32),              # h
                pltpu.VMEM((tile_b, Hp), jnp.float32),              # c
                pltpu.VMEM((tile_t, tile_b, 4 * Hp), jnp.float32),  # gates
                pltpu.VMEM((tile_t, tile_b, Hp), jnp.float32),      # hbuf
            ],
        ),
        compiler_params=pltpu.CompilerParams(
            # Batch tiles are independent (megacore shards them on v7x);
            # the time axis carries recurrent state -> must stay sequential.
            dimension_semantics=("parallel", "arbitrary"),
            vmem_limit_bytes=vmem_limit,
        ),
    )(x_tm, mask_tm, w_ih_p, b_p, w_hh_p, w_l_p, b_l_p)

    # Drop padding; return batch-first like the PyTorch module.
    return jnp.transpose(out_tm[:T, :B, :E], (1, 0, 2))


def reference(x, mask, params):
    """Pure-JAX reference of the same semantics (for a correctness check)."""
    B, T, E = x.shape
    H = params["w_hh_t"].shape[0]

    def cell(carry, xt):
        h, c = carry
        gates = xt @ params["w_ih_t"] + h @ params["w_hh_t"] + params["b"]
        i_g = jax.nn.sigmoid(gates[:, 0 * H:1 * H])
        f_g = jax.nn.sigmoid(gates[:, 1 * H:2 * H])
        g_g = jnp.tanh(gates[:, 2 * H:3 * H])
        o_g = jax.nn.sigmoid(gates[:, 3 * H:4 * H])
        c = f_g * c + i_g * g_g
        h = o_g * jnp.tanh(c)
        return (h, c), h

    x_tm = jnp.transpose(x, (1, 0, 2))
    init = (jnp.zeros((B, H), jnp.float32), jnp.zeros((B, H), jnp.float32))
    _, hs = lax.scan(cell, init, x_tm)                    # (T, B, H)
    hs = jnp.transpose(hs, (1, 0, 2)) * mask[:, :, None]  # zero padded steps
    return hs @ params["w_l_t"] + params["b_l"]


if __name__ == "__main__":
    B, T, E, H = 2, 8, 32, 32            # batch, seq_len, input_size, hidden
    drop_rate = 0.1                       # identity at inference

    key = jax.random.PRNGKey(0)
    keys = jax.random.split(key, 6)
    scale = 0.1

    x = jax.random.normal(keys[0], (B, T, E), jnp.float32)
    # right-padded mask; one full-length sequence so max(length) == seq_len
    mask = jnp.array([[1.0] * T,
                      [1.0] * 5 + [0.0] * (T - 5)], dtype=jnp.float32)

    params = dict(
        w_ih_t=scale * jax.random.normal(keys[1], (E, 4 * H), jnp.float32),
        w_hh_t=scale * jax.random.normal(keys[2], (H, 4 * H), jnp.float32),
        b=scale * jax.random.normal(keys[3], (1, 4 * H), jnp.float32),
        w_l_t=scale * jax.random.normal(keys[4], (H, E), jnp.float32),
        b_l=scale * jax.random.normal(keys[5], (1, E), jnp.float32),
    )

    ref = jax.block_until_ready(reference(x, mask, params))

    # f32 MXU path (strict check against the f32 reference).
    out = jax.block_until_ready(my_lstm_forward(x, mask, params))
    assert out.shape == (B, T, E)
    np.testing.assert_allclose(np.asarray(out), np.asarray(ref),
                               rtol=2e-5, atol=2e-5)

    # Parallel batch-tile path (what v7x uses to fill both TensorCores).
    out_bt = jax.block_until_ready(
        my_lstm_forward(x, mask, params, num_batch_tiles=2))
    np.testing.assert_allclose(np.asarray(out_bt), np.asarray(ref),
                               rtol=2e-5, atol=2e-5)

    # bf16 MXU-input / f32-accumulate path (v6e/v7x recommendation; Bp->16).
    out_bf16 = jax.block_until_ready(
        my_lstm_forward(x, mask, params, matmul_dtype=jnp.bfloat16))
    np.testing.assert_allclose(np.asarray(out_bf16), np.asarray(ref),
                               rtol=5e-2, atol=5e-2)

    print("KERNEL_OK")
</pallas_src>

<mosaic_0001>
module attributes {stable_mosaic.version = 11 : i64} {
  func.func @lstm_linear_kernel(%arg0: i32, %arg1: i32, %arg2: memref<8x8x128xf32, #tpu.memory_space<vmem>>, %arg3: memref<8x8x1xf32, #tpu.memory_space<vmem>>, %arg4: memref<128x512xf32, #tpu.memory_space<vmem>>, %arg5: memref<1x512xf32, #tpu.memory_space<vmem>>, %arg6: memref<128x512xf32, #tpu.memory_space<vmem>>, %arg7: memref<128x128xf32, #tpu.memory_space<vmem>>, %arg8: memref<1x128xf32, #tpu.memory_space<vmem>>, %arg9: memref<8x8x128xf32, #tpu.memory_space<vmem>>, %arg10: memref<8x128xf32, #tpu.memory_space<vmem>>, %arg11: memref<8x128xf32, #tpu.memory_space<vmem>>, %arg12: memref<8x8x512xf32, #tpu.memory_space<vmem>>, %arg13: memref<8x8x128xf32, #tpu.memory_space<vmem>>) attributes {dimension_semantics = [#tpu.dimension_semantics<parallel>, #tpu.dimension_semantics<arbitrary>], iteration_bounds = array<i64: 1, 1>, scalar_prefetch = 0 : i64, scratch_operands = 4 : i64, tpu.core_type = #tpu.core_type<tc>, window_params = [{transform_indices = @transform_0, window_bounds = array<i64: 8, 8, 128>}, {transform_indices = @transform_1, window_bounds = array<i64: 8, 8, 1>}, {pipeline_mode = #tpu.pipeline_mode<synchronous>, transform_indices = @transform_2, window_bounds = array<i64: 128, 512>}, {pipeline_mode = #tpu.pipeline_mode<synchronous>, transform_indices = @transform_3, window_bounds = array<i64: 1, 512>}, {pipeline_mode = #tpu.pipeline_mode<synchronous>, transform_indices = @transform_4, window_bounds = array<i64: 128, 512>}, {pipeline_mode = #tpu.pipeline_mode<synchronous>, transform_indices = @transform_5, window_bounds = array<i64: 128, 128>}, {pipeline_mode = #tpu.pipeline_mode<synchronous>, transform_indices = @transform_6, window_bounds = array<i64: 1, 128>}, {transform_indices = @transform_7, window_bounds = array<i64: 8, 8, 128>}]} {
    %c0_i32 = arith.constant 0 : i32
    %0 = arith.cmpi eq, %arg1, %c0_i32 : i32
    %1 = arith.extui %0 : i1 to i32
    %c0_i32_0 = arith.constant 0 : i32
    %2 = arith.cmpi ne, %1, %c0_i32_0 : i32
    scf.if %2 {
      %cst_161 = arith.constant 0.000000e+00 : f32
      %357 = vector.broadcast %cst_161 : f32 to vector<8x128xf32>
      %c0_162 = arith.constant 0 : index
      %c0_163 = arith.constant 0 : index
      %358 = vector.load %arg10[%c0_162, %c0_163] : memref<8x128xf32, #tpu.memory_space<vmem>>, vector<8x128xf32>
      tpu.vector_store %arg10[%c0_162, %c0_163], %357 {strides = array<i32>} : memref<8x128xf32, #tpu.memory_space<vmem>>, vector<8x128xf32>,
      %cst_164 = arith.constant 0.000000e+00 : f32
      %359 = vector.broadcast %cst_164 : f32 to vector<8x128xf32>
      %c0_165 = arith.constant 0 : index
      %c0_166 = arith.constant 0 : index
      %360 = vector.load %arg11[%c0_165, %c0_166] : memref<8x128xf32, #tpu.memory_space<vmem>>, vector<8x128xf32>
      tpu.vector_store %arg11[%c0_165, %c0_166], %359 {strides = array<i32>} : memref<8x128xf32, #tpu.memory_space<vmem>>, vector<8x128xf32>,
    } else {
    }
    %c0 = arith.constant 0 : index
    %c0_1 = arith.constant 0 : index
    %c0_2 = arith.constant 0 : index
    %3 = vector.load %arg2[%c0, %c0_1, %c0_2] : memref<8x8x128xf32, #tpu.memory_space<vmem>>, vector<8x8x128xf32>
    %4 = vector.shape_cast %3 : vector<8x8x128xf32> to vector<64x128xf32>
    %c0_3 = arith.constant 0 : index
    %c0_4 = arith.constant 0 : index
    %5 = vector.load %arg4[%c0_3, %c0_4] : memref<128x512xf32, #tpu.memory_space<vmem>>, vector<128x512xf32>
    %cst = arith.constant dense<0.000000e+00> : vector<64x512xf32>
    %6 = tpu.matmul %4, %5, %cst {dimension_numbers = #tpu.dot_dimension_numbers<[1], [0], [0], [1], [0, 0, 1, 1], [], []>} : vector<64x128xf32>, vector<128x512xf32>, vector<64x512xf32> -> vector<64x512xf32>
    %7 = vector.shape_cast %6 : vector<64x512xf32> to vector<8x8x512xf32>
    %c0_5 = arith.constant 0 : index
    %c0_6 = arith.constant 0 : index
    %8 = vector.load %arg5[%c0_5, %c0_6] : memref<1x512xf32, #tpu.memory_space<vmem>>, vector<1x512xf32>
    %9 = vector.shape_cast %8 : vector<1x512xf32> to vector<1x1x512xf32>
    %10 = vector.broadcast %9 : vector<1x1x512xf32> to vector<8x8x512xf32>
    %11 = arith.addf %7, %10 : vector<8x8x512xf32>
    %c0_7 = arith.constant 0 : index
    %c0_8 = arith.constant 0 : index
    %c0_9 = arith.constant 0 : index
    %12 = vector.load %arg12[%c0_7, %c0_8, %c0_9] : memref<8x8x512xf32, #tpu.memory_space<vmem>>, vector<8x8x512xf32>
    tpu.vector_store %arg12[%c0_7, %c0_8, %c0_9], %11 {strides = array<i32>} : memref<8x8x512xf32, #tpu.memory_space<vmem>>, vector<8x8x512xf32>,
    %c0_10 = arith.constant 0 : index
    %c0_11 = arith.constant 0 : index
    %13 = vector.load %arg10[%c0_10, %c0_11] : memref<8x128xf32, #tpu.memory_space<vmem>>, vector<8x128xf32>
    %c0_12 = arith.constant 0 : index
    %c0_13 = arith.constant 0 : index
    %14 = vector.load %arg11[%c0_12, %c0_13] : memref<8x128xf32, #tpu.memory_space<vmem>>, vector<8x128xf32>
    %c0_i32_14 = arith.constant 0 : i32
    %15 = arith.index_cast %c0_i32_14 : i32 to index
    %c0_15 = arith.constant 0 : index
    %c0_16 = arith.constant 0 : index
    %16 = vector.load %arg12[%15, %c0_15, %c0_16] : memref<8x8x512xf32, #tpu.memory_space<vmem>>, vector<1x8x512xf32>
    %17 = vector.shape_cast %16 : vector<1x8x512xf32> to vector<8x512xf32>
    %c0_17 = arith.constant 0 : index
    %c0_18 = arith.constant 0 : index
    %18 = vector.load %arg6[%c0_17, %c0_18] : memref<128x512xf32, #tpu.memory_space<vmem>>, vector<128x512xf32>
    %cst_19 = arith.constant dense<0.000000e+00> : vector<8x512xf32>
    %19 = tpu.matmul %13, %18, %cst_19 {dimension_numbers = #tpu.dot_dimension_numbers<[1], [0], [0], [1], [0, 0, 1, 1], [], []>} : vector<8x128xf32>, vector<128x512xf32>, vector<8x512xf32> -> vector<8x512xf32>
    %20 = arith.addf %17, %19 : vector<8x512xf32>
    %21 = vector.extract_strided_slice %20 {offsets = [0, 0], sizes = [8, 128], strides = [1, 1]} : vector<8x512xf32> to vector<8x128xf32>
    %cst_20 = arith.constant 5.000000e-01 : f32
    %22 = vector.broadcast %cst_20 : f32 to vector<8x128xf32>
    %23 = arith.mulf %22, %21 : vector<8x128xf32>
    %24 = math.tanh %23 : vector<8x128xf32>
    %cst_21 = arith.constant 1.000000e+00 : f32
    %25 = vector.broadcast %cst_21 : f32 to vector<8x128xf32>
    %26 = arith.addf %25, %24 : vector<8x128xf32>
    %cst_22 = arith.constant 5.000000e-01 : f32
    %27 = vector.broadcast %cst_22 : f32 to vector<8x128xf32>
    %28 = arith.mulf %27, %26 : vector<8x128xf32>
    %29 = vector.extract_strided_slice %20 {offsets = [0, 128], sizes = [8, 128], strides = [1, 1]} : vector<8x512xf32> to vector<8x128xf32>
    %cst_23 = arith.constant 5.000000e-01 : f32
    %30 = vector.broadcast %cst_23 : f32 to vector<8x128xf32>
    %31 = arith.mulf %30, %29 : vector<8x128xf32>
    %32 = math.tanh %31 : vector<8x128xf32>
    %cst_24 = arith.constant 1.000000e+00 : f32
    %33 = vector.broadcast %cst_24 : f32 to vector<8x128xf32>
    %34 = arith.addf %33, %32 : vector<8x128xf32>
    %cst_25 = arith.constant 5.000000e-01 : f32
    %35 = vector.broadcast %cst_25 : f32 to vector<8x128xf32>
    %36 = arith.mulf %35, %34 : vector<8x128xf32>
    %37 = vector.extract_strided_slice %20 {offsets = [0, 256], sizes = [8, 128], strides = [1, 1]} : vector<8x512xf32> to vector<8x128xf32>
    %38 = math.tanh %37 : vector<8x128xf32>
    %39 = vector.extract_strided_slice %20 {offsets = [0, 384], sizes = [8, 128], strides = [1, 1]} : vector<8x512xf32> to vector<8x128xf32>
    %cst_26 = arith.constant 5.000000e-01 : f32
    %40 = vector.broadcast %cst_26 : f32 to vector<8x128xf32>
    %41 = arith.mulf %40, %39 : vector<8x128xf32>
    %42 = math.tanh %41 : vector<8x128xf32>
    %cst_27 = arith.constant 1.000000e+00 : f32
    %43 = vector.broadcast %cst_27 : f32 to vector<8x128xf32>
    %44 = arith.addf %43, %42 : vector<8x128xf32>
    %cst_28 = arith.constant 5.000000e-01 : f32
    %45 = vector.broadcast %cst_28 : f32 to vector<8x128xf32>
    %46 = arith.mulf %45, %44 : vector<8x128xf32>
    %47 = arith.mulf %36, %14 : vector<8x128xf32>
    %48 = arith.mulf %28, %38 : vector<8x128xf32>
    %49 = arith.addf %47, %48 : vector<8x128xf32>
    %50 = math.tanh %49 : vector<8x128xf32>
    %51 = arith.mulf %46, %50 : vector<8x128xf32>
    %52 = arith.index_cast %c0_i32_14 : i32 to index
    %c0_29 = arith.constant 0 : index
    %c0_30 = arith.constant 0 : index
    %53 = vector.load %arg13[%52, %c0_29, %c0_30] : memref<8x8x128xf32, #tpu.memory_space<vmem>>, vector<1x8x128xf32>
    %54 = vector.shape_cast %53 : vector<1x8x128xf32> to vector<8x128xf32>
    %55 = vector.shape_cast %51 : vector<8x128xf32> to vector<1x8x128xf32>
    tpu.vector_store %arg13[%52, %c0_29, %c0_30], %55 {strides = array<i32>} : memref<8x8x128xf32, #tpu.memory_space<vmem>>, vector<1x8x128xf32>,
    %c1_i32 = arith.constant 1 : i32
    %56 = arith.index_cast %c1_i32 : i32 to index
    %c0_31 = arith.constant 0 : index
    %c0_32 = arith.constant 0 : index
    %57 = vector.load %arg12[%56, %c0_31, %c0_32] : memref<8x8x512xf32, #tpu.memory_space<vmem>>, vector<1x8x512xf32>
    %58 = vector.shape_cast %57 : vector<1x8x512xf32> to vector<8x512xf32>
    %c0_33 = arith.constant 0 : index
    %c0_34 = arith.constant 0 : index
    %59 = vector.load %arg6[%c0_33, %c0_34] : memref<128x512xf32, #tpu.memory_space<vmem>>, vector<128x512xf32>
    %cst_35 = arith.constant dense<0.000000e+00> : vector<8x512xf32>
    %60 = tpu.matmul %51, %59, %cst_35 {dimension_numbers = #tpu.dot_dimension_numbers<[1], [0], [0], [1], [0, 0, 1, 1], [], []>} : vector<8x128xf32>, vector<128x512xf32>, vector<8x512xf32> -> vector<8x512xf32>
    %61 = arith.addf %58, %60 : vector<8x512xf32>
    %62 = vector.extract_strided_slice %61 {offsets = [0, 0], sizes = [8, 128], strides = [1, 1]} : vector<8x512xf32> to vector<8x128xf32>
    %cst_36 = arith.constant 5.000000e-01 : f32
    %63 = vector.broadcast %cst_36 : f32 to vector<8x128xf32>
    %64 = arith.mulf %63, %62 : vector<8x128xf32>
    %65 = math.tanh %64 : vector<8x128xf32>
    %cst_37 = arith.constant 1.000000e+00 : f32
    %66 = vector.broadcast %cst_37 : f32 to vector<8x128xf32>
    %67 = arith.addf %66, %65 : vector<8x128xf32>
    %cst_38 = arith.constant 5.000000e-01 : f32
    %68 = vector.broadcast %cst_38 : f32 to vector<8x128xf32>
    %69 = arith.mulf %68, %67 : vector<8x128xf32>
    %70 = vector.extract_strided_slice %61 {offsets = [0, 128], sizes = [8, 128], strides = [1, 1]} : vector<8x512xf32> to vector<8x128xf32>
    %cst_39 = arith.constant 5.000000e-01 : f32
    %71 = vector.broadcast %cst_39 : f32 to vector<8x128xf32>
    %72 = arith.mulf %71, %70 : vector<8x128xf32>
    %73 = math.tanh %72 : vector<8x128xf32>
    %cst_40 = arith.constant 1.000000e+00 : f32
    %74 = vector.broadcast %cst_40 : f32 to vector<8x128xf32>
    %75 = arith.addf %74, %73 : vector<8x128xf32>
    %cst_41 = arith.constant 5.000000e-01 : f32
    %76 = vector.broadcast %cst_41 : f32 to vector<8x128xf32>
    %77 = arith.mulf %76, %75 : vector<8x128xf32>
    %78 = vector.extract_strided_slice %61 {offsets = [0, 256], sizes = [8, 128], strides = [1, 1]} : vector<8x512xf32> to vector<8x128xf32>
    %79 = math.tanh %78 : vector<8x128xf32>
    %80 = vector.extract_strided_slice %61 {offsets = [0, 384], sizes = [8, 128], strides = [1, 1]} : vector<8x512xf32> to vector<8x128xf32>
    %cst_42 = arith.constant 5.000000e-01 : f32
    %81 = vector.broadcast %cst_42 : f32 to vector<8x128xf32>
    %82 = arith.mulf %81, %80 : vector<8x128xf32>
    %83 = math.tanh %82 : vector<8x128xf32>
    %cst_43 = arith.constant 1.000000e+00 : f32
    %84 = vector.broadcast %cst_43 : f32 to vector<8x128xf32>
    %85 = arith.addf %84, %83 : vector<8x128xf32>
    %cst_44 = arith.constant 5.000000e-01 : f32
    %86 = vector.broadcast %cst_44 : f32 to vector<8x128xf32>
    %87 = arith.mulf %86, %85 : vector<8x128xf32>
    %88 = arith.mulf %77, %49 : vector<8x128xf32>
    %89 = arith.mulf %69, %79 : vector<8x128xf32>
    %90 = arith.addf %88, %89 : vector<8x128xf32>
    %91 = math.tanh %90 : vector<8x128xf32>
    %92 = arith.mulf %87, %91 : vector<8x128xf32>
    %93 = arith.index_cast %c1_i32 : i32 to index
    %c0_45 = arith.constant 0 : index
    %c0_46 = arith.constant 0 : index
    %94 = vector.load %arg13[%93, %c0_45, %c0_46] : memref<8x8x128xf32, #tpu.memory_space<vmem>>, vector<1x8x128xf32>
    %95 = vector.shape_cast %94 : vector<1x8x128xf32> to vector<8x128xf32>
    %96 = vector.shape_cast %92 : vector<8x128xf32> to vector<1x8x128xf32>
    tpu.vector_store %arg13[%93, %c0_45, %c0_46], %96 {strides = array<i32>} : memref<8x8x128xf32, #tpu.memory_space<vmem>>, vector<1x8x128xf32>,
    %c2_i32 = arith.constant 2 : i32
    %97 = arith.index_cast %c2_i32 : i32 to index
    %c0_47 = arith.constant 0 : index
    %c0_48 = arith.constant 0 : index
    %98 = vector.load %arg12[%97, %c0_47, %c0_48] : memref<8x8x512xf32, #tpu.memory_space<vmem>>, vector<1x8x512xf32>
    %99 = vector.shape_cast %98 : vector<1x8x512xf32> to vector<8x512xf32>
    %c0_49 = arith.constant 0 : index
    %c0_50 = arith.constant 0 : index
    %100 = vector.load %arg6[%c0_49, %c0_50] : memref<128x512xf32, #tpu.memory_space<vmem>>, vector<128x512xf32>
    %cst_51 = arith.constant dense<0.000000e+00> : vector<8x512xf32>
    %101 = tpu.matmul %92, %100, %cst_51 {dimension_numbers = #tpu.dot_dimension_numbers<[1], [0], [0], [1], [0, 0, 1, 1], [], []>} : vector<8x128xf32>, vector<128x512xf32>, vector<8x512xf32> -> vector<8x512xf32>
    %102 = arith.addf %99, %101 : vector<8x512xf32>
    %103 = vector.extract_strided_slice %102 {offsets = [0, 0], sizes = [8, 128], strides = [1, 1]} : vector<8x512xf32> to vector<8x128xf32>
    %cst_52 = arith.constant 5.000000e-01 : f32
    %104 = vector.broadcast %cst_52 : f32 to vector<8x128xf32>
    %105 = arith.mulf %104, %103 : vector<8x128xf32>
    %106 = math.tanh %105 : vector<8x128xf32>
    %cst_53 = arith.constant 1.000000e+00 : f32
    %107 = vector.broadcast %cst_53 : f32 to vector<8x128xf32>
    %108 = arith.addf %107, %106 : vector<8x128xf32>
    %cst_54 = arith.constant 5.000000e-01 : f32
    %109 = vector.broadcast %cst_54 : f32 to vector<8x128xf32>
    %110 = arith.mulf %109, %108 : vector<8x128xf32>
    %111 = vector.extract_strided_slice %102 {offsets = [0, 128], sizes = [8, 128], strides = [1, 1]} : vector<8x512xf32> to vector<8x128xf32>
    %cst_55 = arith.constant 5.000000e-01 : f32
    %112 = vector.broadcast %cst_55 : f32 to vector<8x128xf32>
    %113 = arith.mulf %112, %111 : vector<8x128xf32>
    %114 = math.tanh %113 : vector<8x128xf32>
    %cst_56 = arith.constant 1.000000e+00 : f32
    %115 = vector.broadcast %cst_56 : f32 to vector<8x128xf32>
    %116 = arith.addf %115, %114 : vector<8x128xf32>
    %cst_57 = arith.constant 5.000000e-01 : f32
    %117 = vector.broadcast %cst_57 : f32 to vector<8x128xf32>
    %118 = arith.mulf %117, %116 : vector<8x128xf32>
    %119 = vector.extract_strided_slice %102 {offsets = [0, 256], sizes = [8, 128], strides = [1, 1]} : vector<8x512xf32> to vector<8x128xf32>
    %120 = math.tanh %119 : vector<8x128xf32>
    %121 = vector.extract_strided_slice %102 {offsets = [0, 384], sizes = [8, 128], strides = [1, 1]} : vector<8x512xf32> to vector<8x128xf32>
    %cst_58 = arith.constant 5.000000e-01 : f32
    %122 = vector.broadcast %cst_58 : f32 to vector<8x128xf32>
    %123 = arith.mulf %122, %121 : vector<8x128xf32>
    %124 = math.tanh %123 : vector<8x128xf32>
    %cst_59 = arith.constant 1.000000e+00 : f32
    %125 = vector.broadcast %cst_59 : f32 to vector<8x128xf32>
    %126 = arith.addf %125, %124 : vector<8x128xf32>
    %cst_60 = arith.constant 5.000000e-01 : f32
    %127 = vector.broadcast %cst_60 : f32 to vector<8x128xf32>
    %128 = arith.mulf %127, %126 : vector<8x128xf32>
    %129 = arith.mulf %118, %90 : vector<8x128xf32>
    %130 = arith.mulf %110, %120 : vector<8x128xf32>
    %131 = arith.addf %129, %130 : vector<8x128xf32>
    %132 = math.tanh %131 : vector<8x128xf32>
    %133 = arith.mulf %128, %132 : vector<8x128xf32>
    %134 = arith.index_cast %c2_i32 : i32 to index
    %c0_61 = arith.constant 0 : index
    %c0_62 = arith.constant 0 : index
    %135 = vector.load %arg13[%134, %c0_61, %c0_62] : memref<8x8x128xf32, #tpu.memory_space<vmem>>, vector<1x8x128xf32>
    %136 = vector.shape_cast %135 : vector<1x8x128xf32> to vector<8x128xf32>
    %137 = vector.shape_cast %133 : vector<8x128xf32> to vector<1x8x128xf32>
    tpu.vector_store %arg13[%134, %c0_61, %c0_62], %137 {strides = array<i32>} : memref<8x8x128xf32, #tpu.memory_space<vmem>>, vector<1x8x128xf32>,
    %c3_i32 = arith.constant 3 : i32
    %138 = arith.index_cast %c3_i32 : i32 to index
    %c0_63 = arith.constant 0 : index
    %c0_64 = arith.constant 0 : index
    %139 = vector.load %arg12[%138, %c0_63, %c0_64] : memref<8x8x512xf32, #tpu.memory_space<vmem>>, vector<1x8x512xf32>
    %140 = vector.shape_cast %139 : vector<1x8x512xf32> to vector<8x512xf32>
    %c0_65 = arith.constant 0 : index
    %c0_66 = arith.constant 0 : index
    %141 = vector.load %arg6[%c0_65, %c0_66] : memref<128x512xf32, #tpu.memory_space<vmem>>, vector<128x512xf32>
    %cst_67 = arith.constant dense<0.000000e+00> : vector<8x512xf32>
    %142 = tpu.matmul %133, %141, %cst_67 {dimension_numbers = #tpu.dot_dimension_numbers<[1], [0], [0], [1], [0, 0, 1, 1], [], []>} : vector<8x128xf32>, vector<128x512xf32>, vector<8x512xf32> -> vector<8x512xf32>
    %143 = arith.addf %140, %142 : vector<8x512xf32>
    %144 = vector.extract_strided_slice %143 {offsets = [0, 0], sizes = [8, 128], strides = [1, 1]} : vector<8x512xf32> to vector<8x128xf32>
    %cst_68 = arith.constant 5.000000e-01 : f32
    %145 = vector.broadcast %cst_68 : f32 to vector<8x128xf32>
    %146 = arith.mulf %145, %144 : vector<8x128xf32>
    %147 = math.tanh %146 : vector<8x128xf32>
    %cst_69 = arith.constant 1.000000e+00 : f32
    %148 = vector.broadcast %cst_69 : f32 to vector<8x128xf32>
    %149 = arith.addf %148, %147 : vector<8x128xf32>
    %cst_70 = arith.constant 5.000000e-01 : f32
    %150 = vector.broadcast %cst_70 : f32 to vector<8x128xf32>
    %151 = arith.mulf %150, %149 : vector<8x128xf32>
    %152 = vector.extract_strided_slice %143 {offsets = [0, 128], sizes = [8, 128], strides = [1, 1]} : vector<8x512xf32> to vector<8x128xf32>
    %cst_71 = arith.constant 5.000000e-01 : f32
    %153 = vector.broadcast %cst_71 : f32 to vector<8x128xf32>
    %154 = arith.mulf %153, %152 : vector<8x128xf32>
    %155 = math.tanh %154 : vector<8x128xf32>
    %cst_72 = arith.constant 1.000000e+00 : f32
    %156 = vector.broadcast %cst_72 : f32 to vector<8x128xf32>
    %157 = arith.addf %156, %155 : vector<8x128xf32>
    %cst_73 = arith.constant 5.000000e-01 : f32
    %158 = vector.broadcast %cst_73 : f32 to vector<8x128xf32>
    %159 = arith.mulf %158, %157 : vector<8x128xf32>
    %160 = vector.extract_strided_slice %143 {offsets = [0, 256], sizes = [8, 128], strides = [1, 1]} : vector<8x512xf32> to vector<8x128xf32>
    %161 = math.tanh %160 : vector<8x128xf32>
    %162 = vector.extract_strided_slice %143 {offsets = [0, 384], sizes = [8, 128], strides = [1, 1]} : vector<8x512xf32> to vector<8x128xf32>
    %cst_74 = arith.constant 5.000000e-01 : f32
    %163 = vector.broadcast %cst_74 : f32 to vector<8x128xf32>
    %164 = arith.mulf %163, %162 : vector<8x128xf32>
    %165 = math.tanh %164 : vector<8x128xf32>
    %cst_75 = arith.constant 1.000000e+00 : f32
    %166 = vector.broadcast %cst_75 : f32 to vector<8x128xf32>
    %167 = arith.addf %166, %165 : vector<8x128xf32>
    %cst_76 = arith.constant 5.000000e-01 : f32
    %168 = vector.broadcast %cst_76 : f32 to vector<8x128xf32>
    %169 = arith.mulf %168, %167 : vector<8x128xf32>
    %170 = arith.mulf %159, %131 : vector<8x128xf32>
    %171 = arith.mulf %151, %161 : vector<8x128xf32>
    %172 = arith.addf %170, %171 : vector<8x128xf32>
    %173 = math.tanh %172 : vector<8x128xf32>
    %174 = arith.mulf %169, %173 : vector<8x128xf32>
    %175 = arith.index_cast %c3_i32 : i32 to index
    %c0_77 = arith.constant 0 : index
    %c0_78 = arith.constant 0 : index
    %176 = vector.load %arg13[%175, %c0_77, %c0_78] : memref<8x8x128xf32, #tpu.memory_space<vmem>>, vector<1x8x128xf32>
    %177 = vector.shape_cast %176 : vector<1x8x128xf32> to vector<8x128xf32>
    %178 = vector.shape_cast %174 : vector<8x128xf32> to vector<1x8x128xf32>
    tpu.vector_store %arg13[%175, %c0_77, %c0_78], %178 {strides = array<i32>} : memref<8x8x128xf32, #tpu.memory_space<vmem>>, vector<1x8x128xf32>,
    %c4_i32 = arith.constant 4 : i32
    %179 = arith.index_cast %c4_i32 : i32 to index
    %c0_79 = arith.constant 0 : index
    %c0_80 = arith.constant 0 : index
    %180 = vector.load %arg12[%179, %c0_79, %c0_80] : memref<8x8x512xf32, #tpu.memory_space<vmem>>, vector<1x8x512xf32>
    %181 = vector.shape_cast %180 : vector<1x8x512xf32> to vector<8x512xf32>
    %c0_81 = arith.constant 0 : index
    %c0_82 = arith.constant 0 : index
    %182 = vector.load %arg6[%c0_81, %c0_82] : memref<128x512xf32, #tpu.memory_space<vmem>>, vector<128x512xf32>
    %cst_83 = arith.constant dense<0.000000e+00> : vector<8x512xf32>
    %183 = tpu.matmul %174, %182, %cst_83 {dimension_numbers = #tpu.dot_dimension_numbers<[1], [0], [0], [1], [0, 0, 1, 1], [], []>} : vector<8x128xf32>, vector<128x512xf32>, vector<8x512xf32> -> vector<8x512xf32>
    %184 = arith.addf %181, %183 : vector<8x512xf32>
    %185 = vector.extract_strided_slice %184 {offsets = [0, 0], sizes = [8, 128], strides = [1, 1]} : vector<8x512xf32> to vector<8x128xf32>
    %cst_84 = arith.constant 5.000000e-01 : f32
    %186 = vector.broadcast %cst_84 : f32 to vector<8x128xf32>
    %187 = arith.mulf %186, %185 : vector<8x128xf32>
    %188 = math.tanh %187 : vector<8x128xf32>
    %cst_85 = arith.constant 1.000000e+00 : f32
    %189 = vector.broadcast %cst_85 : f32 to vector<8x128xf32>
    %190 = arith.addf %189, %188 : vector<8x128xf32>
    %cst_86 = arith.constant 5.000000e-01 : f32
    %191 = vector.broadcast %cst_86 : f32 to vector<8x128xf32>
    %192 = arith.mulf %191, %190 : vector<8x128xf32>
    %193 = vector.extract_strided_slice %184 {offsets = [0, 128], sizes = [8, 128], strides = [1, 1]} : vector<8x512xf32> to vector<8x128xf32>
    %cst_87 = arith.constant 5.000000e-01 : f32
    %194 = vector.broadcast %cst_87 : f32 to vector<8x128xf32>
    %195 = arith.mulf %194, %193 : vector<8x128xf32>
    %196 = math.tanh %195 : vector<8x128xf32>
    %cst_88 = arith.constant 1.000000e+00 : f32
    %197 = vector.broadcast %cst_88 : f32 to vector<8x128xf32>
    %198 = arith.addf %197, %196 : vector<8x128xf32>
    %cst_89 = arith.constant 5.000000e-01 : f32
    %199 = vector.broadcast %cst_89 : f32 to vector<8x128xf32>
    %200 = arith.mulf %199, %198 : vector<8x128xf32>
    %201 = vector.extract_strided_slice %184 {offsets = [0, 256], sizes = [8, 128], strides = [1, 1]} : vector<8x512xf32> to vector<8x128xf32>
    %202 = math.tanh %201 : vector<8x128xf32>
    %203 = vector.extract_strided_slice %184 {offsets = [0, 384], sizes = [8, 128], strides = [1, 1]} : vector<8x512xf32> to vector<8x128xf32>
    %cst_90 = arith.constant 5.000000e-01 : f32
    %204 = vector.broadcast %cst_90 : f32 to vector<8x128xf32>
    %205 = arith.mulf %204, %203 : vector<8x128xf32>
    %206 = math.tanh %205 : vector<8x128xf32>
    %cst_91 = arith.constant 1.000000e+00 : f32
    %207 = vector.broadcast %cst_91 : f32 to vector<8x128xf32>
    %208 = arith.addf %207, %206 : vector<8x128xf32>
    %cst_92 = arith.constant 5.000000e-01 : f32
    %209 = vector.broadcast %cst_92 : f32 to vector<8x128xf32>
    %210 = arith.mulf %209, %208 : vector<8x128xf32>
    %211 = arith.mulf %200, %172 : vector<8x128xf32>
    %212 = arith.mulf %192, %202 : vector<8x128xf32>
    %213 = arith.addf %211, %212 : vector<8x128xf32>
    %214 = math.tanh %213 : vector<8x128xf32>
    %215 = arith.mulf %210, %214 : vector<8x128xf32>
    %216 = arith.index_cast %c4_i32 : i32 to index
    %c0_93 = arith.constant 0 : index
    %c0_94 = arith.constant 0 : index
    %217 = vector.load %arg13[%216, %c0_93, %c0_94] : memref<8x8x128xf32, #tpu.memory_space<vmem>>, vector<1x8x128xf32>
    %218 = vector.shape_cast %217 : vector<1x8x128xf32> to vector<8x128xf32>
    %219 = vector.shape_cast %215 : vector<8x128xf32> to vector<1x8x128xf32>
    tpu.vector_store %arg13[%216, %c0_93, %c0_94], %219 {strides = array<i32>} : memref<8x8x128xf32, #tpu.memory_space<vmem>>, vector<1x8x128xf32>,
    %c5_i32 = arith.constant 5 : i32
    %220 = arith.index_cast %c5_i32 : i32 to index
    %c0_95 = arith.constant 0 : index
    %c0_96 = arith.constant 0 : index
    %221 = vector.load %arg12[%220, %c0_95, %c0_96] : memref<8x8x512xf32, #tpu.memory_space<vmem>>, vector<1x8x512xf32>
    %222 = vector.shape_cast %221 : vector<1x8x512xf32> to vector<8x512xf32>
    %c0_97 = arith.constant 0 : index
    %c0_98 = arith.constant 0 : index
    %223 = vector.load %arg6[%c0_97, %c0_98] : memref<128x512xf32, #tpu.memory_space<vmem>>, vector<128x512xf32>
    %cst_99 = arith.constant dense<0.000000e+00> : vector<8x512xf32>
    %224 = tpu.matmul %215, %223, %cst_99 {dimension_numbers = #tpu.dot_dimension_numbers<[1], [0], [0], [1], [0, 0, 1, 1], [], []>} : vector<8x128xf32>, vector<128x512xf32>, vector<8x512xf32> -> vector<8x512xf32>
    %225 = arith.addf %222, %224 : vector<8x512xf32>
    %226 = vector.extract_strided_slice %225 {offsets = [0, 0], sizes = [8, 128], strides = [1, 1]} : vector<8x512xf32> to vector<8x128xf32>
    %cst_100 = arith.constant 5.000000e-01 : f32
    %227 = vector.broadcast %cst_100 : f32 to vector<8x128xf32>
    %228 = arith.mulf %227, %226 : vector<8x128xf32>
    %229 = math.tanh %228 : vector<8x128xf32>
    %cst_101 = arith.constant 1.000000e+00 : f32
    %230 = vector.broadcast %cst_101 : f32 to vector<8x128xf32>
    %231 = arith.addf %230, %229 : vector<8x128xf32>
    %cst_102 = arith.constant 5.000000e-01 : f32
    %232 = vector.broadcast %cst_102 : f32 to vector<8x128xf32>
    %233 = arith.mulf %232, %231 : vector<8x128xf32>
    %234 = vector.extract_strided_slice %225 {offsets = [0, 128], sizes = [8, 128], strides = [1, 1]} : vector<8x512xf32> to vector<8x128xf32>
    %cst_103 = arith.constant 5.000000e-01 : f32
    %235 = vector.broadcast %cst_103 : f32 to vector<8x128xf32>
    %236 = arith.mulf %235, %234 : vector<8x128xf32>
    %237 = math.tanh %236 : vector<8x128xf32>
    %cst_104 = arith.constant 1.000000e+00 : f32
    %238 = vector.broadcast %cst_104 : f32 to vector<8x128xf32>
    %239 = arith.addf %238, %237 : vector<8x128xf32>
    %cst_105 = arith.constant 5.000000e-01 : f32
    %240 = vector.broadcast %cst_105 : f32 to vector<8x128xf32>
    %241 = arith.mulf %240, %239 : vector<8x128xf32>
    %242 = vector.extract_strided_slice %225 {offsets = [0, 256], sizes = [8, 128], strides = [1, 1]} : vector<8x512xf32> to vector<8x128xf32>
    %243 = math.tanh %242 : vector<8x128xf32>
    %244 = vector.extract_strided_slice %225 {offsets = [0, 384], sizes = [8, 128], strides = [1, 1]} : vector<8x512xf32> to vector<8x128xf32>
    %cst_106 = arith.constant 5.000000e-01 : f32
    %245 = vector.broadcast %cst_106 : f32 to vector<8x128xf32>
    %246 = arith.mulf %245, %244 : vector<8x128xf32>
    %247 = math.tanh %246 : vector<8x128xf32>
    %cst_107 = arith.constant 1.000000e+00 : f32
    %248 = vector.broadcast %cst_107 : f32 to vector<8x128xf32>
    %249 = arith.addf %248, %247 : vector<8x128xf32>
    %cst_108 = arith.constant 5.000000e-01 : f32
    %250 = vector.broadcast %cst_108 : f32 to vector<8x128xf32>
    %251 = arith.mulf %250, %249 : vector<8x128xf32>
    %252 = arith.mulf %241, %213 : vector<8x128xf32>
    %253 = arith.mulf %233, %243 : vector<8x128xf32>
    %254 = arith.addf %252, %253 : vector<8x128xf32>
    %255 = math.tanh %254 : vector<8x128xf32>
    %256 = arith.mulf %251, %255 : vector<8x128xf32>
    %257 = arith.index_cast %c5_i32 : i32 to index
    %c0_109 = arith.constant 0 : index
    %c0_110 = arith.constant 0 : index
    %258 = vector.load %arg13[%257, %c0_109, %c0_110] : memref<8x8x128xf32, #tpu.memory_space<vmem>>, vector<1x8x128xf32>
    %259 = vector.shape_cast %258 : vector<1x8x128xf32> to vector<8x128xf32>
    %260 = vector.shape_cast %256 : vector<8x128xf32> to vector<1x8x128xf32>
    tpu.vector_store %arg13[%257, %c0_109, %c0_110], %260 {strides = array<i32>} : memref<8x8x128xf32, #tpu.memory_space<vmem>>, vector<1x8x128xf32>,
    %c6_i32 = arith.constant 6 : i32
    %261 = arith.index_cast %c6_i32 : i32 to index
    %c0_111 = arith.constant 0 : index
    %c0_112 = arith.constant 0 : index
    %262 = vector.load %arg12[%261, %c0_111, %c0_112] : memref<8x8x512xf32, #tpu.memory_space<vmem>>, vector<1x8x512xf32>
    %263 = vector.shape_cast %262 : vector<1x8x512xf32> to vector<8x512xf32>
    %c0_113 = arith.constant 0 : index
    %c0_114 = arith.constant 0 : index
    %264 = vector.load %arg6[%c0_113, %c0_114] : memref<128x512xf32, #tpu.memory_space<vmem>>, vector<128x512xf32>
    %cst_115 = arith.constant dense<0.000000e+00> : vector<8x512xf32>
    %265 = tpu.matmul %256, %264, %cst_115 {dimension_numbers = #tpu.dot_dimension_numbers<[1], [0], [0], [1], [0, 0, 1, 1], [], []>} : vector<8x128xf32>, vector<128x512xf32>, vector<8x512xf32> -> vector<8x512xf32>
    %266 = arith.addf %263, %265 : vector<8x512xf32>
    %267 = vector.extract_strided_slice %266 {offsets = [0, 0], sizes = [8, 128], strides = [1, 1]} : vector<8x512xf32> to vector<8x128xf32>
    %cst_116 = arith.constant 5.000000e-01 : f32
    %268 = vector.broadcast %cst_116 : f32 to vector<8x128xf32>
    %269 = arith.mulf %268, %267 : vector<8x128xf32>
    %270 = math.tanh %269 : vector<8x128xf32>
    %cst_117 = arith.constant 1.000000e+00 : f32
    %271 = vector.broadcast %cst_117 : f32 to vector<8x128xf32>
    %272 = arith.addf %271, %270 : vector<8x128xf32>
    %cst_118 = arith.constant 5.000000e-01 : f32
    %273 = vector.broadcast %cst_118 : f32 to vector<8x128xf32>
    %274 = arith.mulf %273, %272 : vector<8x128xf32>
    %275 = vector.extract_strided_slice %266 {offsets = [0, 128], sizes = [8, 128], strides = [1, 1]} : vector<8x512xf32> to vector<8x128xf32>
    %cst_119 = arith.constant 5.000000e-01 : f32
    %276 = vector.broadcast %cst_119 : f32 to vector<8x128xf32>
    %277 = arith.mulf %276, %275 : vector<8x128xf32>
    %278 = math.tanh %277 : vector<8x128xf32>
    %cst_120 = arith.constant 1.000000e+00 : f32
    %279 = vector.broadcast %cst_120 : f32 to vector<8x128xf32>
    %280 = arith.addf %279, %278 : vector<8x128xf32>
    %cst_121 = arith.constant 5.000000e-01 : f32
    %281 = vector.broadcast %cst_121 : f32 to vector<8x128xf32>
    %282 = arith.mulf %281, %280 : vector<8x128xf32>
    %283 = vector.extract_strided_slice %266 {offsets = [0, 256], sizes = [8, 128], strides = [1, 1]} : vector<8x512xf32> to vector<8x128xf32>
    %284 = math.tanh %283 : vector<8x128xf32>
    %285 = vector.extract_strided_slice %266 {offsets = [0, 384], sizes = [8, 128], strides = [1, 1]} : vector<8x512xf32> to vector<8x128xf32>
    %cst_122 = arith.constant 5.000000e-01 : f32
    %286 = vector.broadcast %cst_122 : f32 to vector<8x128xf32>
    %287 = arith.mulf %286, %285 : vector<8x128xf32>
    %288 = math.tanh %287 : vector<8x128xf32>
    %cst_123 = arith.constant 1.000000e+00 : f32
    %289 = vector.broadcast %cst_123 : f32 to vector<8x128xf32>
    %290 = arith.addf %289, %288 : vector<8x128xf32>
    %cst_124 = arith.constant 5.000000e-01 : f32
    %291 = vector.broadcast %cst_124 : f32 to vector<8x128xf32>
    %292 = arith.mulf %291, %290 : vector<8x128xf32>
    %293 = arith.mulf %282, %254 : vector<8x128xf32>
    %294 = arith.mulf %274, %284 : vector<8x128xf32>
    %295 = arith.addf %293, %294 : vector<8x128xf32>
    %296 = math.tanh %295 : vector<8x128xf32>
    %297 = arith.mulf %292, %296 : vector<8x128xf32>
    %298 = arith.index_cast %c6_i32 : i32 to index
    %c0_125 = arith.constant 0 : index
    %c0_126 = arith.constant 0 : index
    %299 = vector.load %arg13[%298, %c0_125, %c0_126] : memref<8x8x128xf32, #tpu.memory_space<vmem>>, vector<1x8x128xf32>
    %300 = vector.shape_cast %299 : vector<1x8x128xf32> to vector<8x128xf32>
    %301 = vector.shape_cast %297 : vector<8x128xf32> to vector<1x8x128xf32>
    tpu.vector_store %arg13[%298, %c0_125, %c0_126], %301 {strides = array<i32>} : memref<8x8x128xf32, #tpu.memory_space<vmem>>, vector<1x8x128xf32>,
    %c7_i32 = arith.constant 7 : i32
    %302 = arith.index_cast %c7_i32 : i32 to index
    %c0_127 = arith.constant 0 : index
    %c0_128 = arith.constant 0 : index
    %303 = vector.load %arg12[%302, %c0_127, %c0_128] : memref<8x8x512xf32, #tpu.memory_space<vmem>>, vector<1x8x512xf32>
    %304 = vector.shape_cast %303 : vector<1x8x512xf32> to vector<8x512xf32>
    %c0_129 = arith.constant 0 : index
    %c0_130 = arith.constant 0 : index
    %305 = vector.load %arg6[%c0_129, %c0_130] : memref<128x512xf32, #tpu.memory_space<vmem>>, vector<128x512xf32>
    %cst_131 = arith.constant dense<0.000000e+00> : vector<8x512xf32>
    %306 = tpu.matmul %297, %305, %cst_131 {dimension_numbers = #tpu.dot_dimension_numbers<[1], [0], [0], [1], [0, 0, 1, 1], [], []>} : vector<8x128xf32>, vector<128x512xf32>, vector<8x512xf32> -> vector<8x512xf32>
    %307 = arith.addf %304, %306 : vector<8x512xf32>
    %308 = vector.extract_strided_slice %307 {offsets = [0, 0], sizes = [8, 128], strides = [1, 1]} : vector<8x512xf32> to vector<8x128xf32>
    %cst_132 = arith.constant 5.000000e-01 : f32
    %309 = vector.broadcast %cst_132 : f32 to vector<8x128xf32>
    %310 = arith.mulf %309, %308 : vector<8x128xf32>
    %311 = math.tanh %310 : vector<8x128xf32>
    %cst_133 = arith.constant 1.000000e+00 : f32
    %312 = vector.broadcast %cst_133 : f32 to vector<8x128xf32>
    %313 = arith.addf %312, %311 : vector<8x128xf32>
    %cst_134 = arith.constant 5.000000e-01 : f32
    %314 = vector.broadcast %cst_134 : f32 to vector<8x128xf32>
    %315 = arith.mulf %314, %313 : vector<8x128xf32>
    %316 = vector.extract_strided_slice %307 {offsets = [0, 128], sizes = [8, 128], strides = [1, 1]} : vector<8x512xf32> to vector<8x128xf32>
    %cst_135 = arith.constant 5.000000e-01 : f32
    %317 = vector.broadcast %cst_135 : f32 to vector<8x128xf32>
    %318 = arith.mulf %317, %316 : vector<8x128xf32>
    %319 = math.tanh %318 : vector<8x128xf32>
    %cst_136 = arith.constant 1.000000e+00 : f32
    %320 = vector.broadcast %cst_136 : f32 to vector<8x128xf32>
    %321 = arith.addf %320, %319 : vector<8x128xf32>
    %cst_137 = arith.constant 5.000000e-01 : f32
    %322 = vector.broadcast %cst_137 : f32 to vector<8x128xf32>
    %323 = arith.mulf %322, %321 : vector<8x128xf32>
    %324 = vector.extract_strided_slice %307 {offsets = [0, 256], sizes = [8, 128], strides = [1, 1]} : vector<8x512xf32> to vector<8x128xf32>
    %325 = math.tanh %324 : vector<8x128xf32>
    %326 = vector.extract_strided_slice %307 {offsets = [0, 384], sizes = [8, 128], strides = [1, 1]} : vector<8x512xf32> to vector<8x128xf32>
    %cst_138 = arith.constant 5.000000e-01 : f32
    %327 = vector.broadcast %cst_138 : f32 to vector<8x128xf32>
    %328 = arith.mulf %327, %326 : vector<8x128xf32>
    %329 = math.tanh %328 : vector<8x128xf32>
    %cst_139 = arith.constant 1.000000e+00 : f32
    %330 = vector.broadcast %cst_139 : f32 to vector<8x128xf32>
    %331 = arith.addf %330, %329 : vector<8x128xf32>
    %cst_140 = arith.constant 5.000000e-01 : f32
    %332 = vector.broadcast %cst_140 : f32 to vector<8x128xf32>
    %333 = arith.mulf %332, %331 : vector<8x128xf32>
    %334 = arith.mulf %323, %295 : vector<8x128xf32>
    %335 = arith.mulf %315, %325 : vector<8x128xf32>
    %336 = arith.addf %334, %335 : vector<8x128xf32>
    %337 = math.tanh %336 : vector<8x128xf32>
    %338 = arith.mulf %333, %337 : vector<8x128xf32>
    %339 = arith.index_cast %c7_i32 : i32 to index
    %c0_141 = arith.constant 0 : index
    %c0_142 = arith.constant 0 : index
    %340 = vector.load %arg13[%339, %c0_141, %c0_142] : memref<8x8x128xf32, #tpu.memory_space<vmem>>, vector<1x8x128xf32>
    %341 = vector.shape_cast %340 : vector<1x8x128xf32> to vector<8x128xf32>
    %342 = vector.shape_cast %338 : vector<8x128xf32> to vector<1x8x128xf32>
    tpu.vector_store %arg13[%339, %c0_141, %c0_142], %342 {strides = array<i32>} : memref<8x8x128xf32, #tpu.memory_space<vmem>>, vector<1x8x128xf32>,
    %c8_i32 = arith.constant 8 : i32
    %c0_143 = arith.constant 0 : index
    %c0_144 = arith.constant 0 : index
    %343 = vector.load %arg10[%c0_143, %c0_144] : memref<8x128xf32, #tpu.memory_space<vmem>>, vector<8x128xf32>
    tpu.vector_store %arg10[%c0_143, %c0_144], %338 {strides = array<i32>} : memref<8x128xf32, #tpu.memory_space<vmem>>, vector<8x128xf32>,
    %c0_145 = arith.constant 0 : index
    %c0_146 = arith.constant 0 : index
    %344 = vector.load %arg11[%c0_145, %c0_146] : memref<8x128xf32, #tpu.memory_space<vmem>>, vector<8x128xf32>
    tpu.vector_store %arg11[%c0_145, %c0_146], %336 {strides = array<i32>} : memref<8x128xf32, #tpu.memory_space<vmem>>, vector<8x128xf32>,
    %c0_147 = arith.constant 0 : index
    %c0_148 = arith.constant 0 : index
    %c0_149 = arith.constant 0 : index
    %345 = vector.load %arg13[%c0_147, %c0_148, %c0_149] : memref<8x8x128xf32, #tpu.memory_space<vmem>>, vector<8x8x128xf32>
    %c0_150 = arith.constant 0 : index
    %c0_151 = arith.constant 0 : index
    %c0_152 = arith.constant 0 : index
    %346 = vector.load %arg3[%c0_150, %c0_151, %c0_152] : memref<8x8x1xf32, #tpu.memory_space<vmem>>, vector<8x8x1xf32>
    %347 = vector.broadcast %346 : vector<8x8x1xf32> to vector<8x8x128xf32>
    %348 = arith.mulf %345, %347 : vector<8x8x128xf32>
    %349 = vector.shape_cast %348 : vector<8x8x128xf32> to vector<64x128xf32>
    %c0_153 = arith.constant 0 : index
    %c0_154 = arith.constant 0 : index
    %350 = vector.load %arg7[%c0_153, %c0_154] : memref<128x128xf32, #tpu.memory_space<vmem>>, vector<128x128xf32>
    %cst_155 = arith.constant dense<0.000000e+00> : vector<64x128xf32>
    %351 = tpu.matmul %349, %350, %cst_155 {dimension_numbers = #tpu.dot_dimension_numbers<[1], [0], [0], [1], [0, 0, 1, 1], [], []>} : vector<64x128xf32>, vector<128x128xf32>, vector<64x128xf32> -> vector<64x128xf32>
    %c0_156 = arith.constant 0 : index
    %c0_157 = arith.constant 0 : index
    %352 = vector.load %arg8[%c0_156, %c0_157] : memref<1x128xf32, #tpu.memory_space<vmem>>, vector<1x128xf32>
    %353 = vector.broadcast %352 : vector<1x128xf32> to vector<64x128xf32>
    %354 = arith.addf %351, %353 : vector<64x128xf32>
    %355 = vector.shape_cast %354 : vector<64x128xf32> to vector<8x8x128xf32>
    %c0_158 = arith.constant 0 : index
    %c0_159 = arith.constant 0 : index
    %c0_160 = arith.constant 0 : index
    %356 = vector.load %arg9[%c0_158, %c0_159, %c0_160] : memref<8x8x128xf32, #tpu.memory_space<vmem>>, vector<8x8x128xf32>
    tpu.vector_store %arg9[%c0_158, %c0_159, %c0_160], %355 {strides = array<i32>} : memref<8x8x128xf32, #tpu.memory_space<vmem>>, vector<8x8x128xf32>,
    return
  }
  func.func @transform_0(%arg0: i32, %arg1: i32) -> (i32, i32, i32) {
    %c0_i32 = arith.constant 0 : i32
    %c0_i32_0 = arith.constant 0 : i32
    return %arg1, %arg0, %c0_i32 : i32, i32, i32
  }
  func.func @transform_1(%arg0: i32, %arg1: i32) -> (i32, i32, i32) {
    %c0_i32 = arith.constant 0 : i32
    %c0_i32_0 = arith.constant 0 : i32
    return %arg1, %arg0, %c0_i32 : i32, i32, i32
  }
  func.func @transform_2(%arg0: i32, %arg1: i32) -> (i32, i32) {
    %c0_i32 = arith.constant 0 : i32
    %c0_i32_0 = arith.constant 0 : i32
    %c0_i32_1 = arith.constant 0 : i32
    return %c0_i32, %c0_i32_0 : i32, i32
  }
  func.func @transform_3(%arg0: i32, %arg1: i32) -> (i32, i32) {
    %c0_i32 = arith.constant 0 : i32
    %c0_i32_0 = arith.constant 0 : i32
    %c0_i32_1 = arith.constant 0 : i32
    return %c0_i32, %c0_i32_0 : i32, i32
  }
  func.func @transform_4(%arg0: i32, %arg1: i32) -> (i32, i32) {
    %c0_i32 = arith.constant 0 : i32
    %c0_i32_0 = arith.constant 0 : i32
    %c0_i32_1 = arith.constant 0 : i32
    return %c0_i32, %c0_i32_0 : i32, i32
  }
  func.func @transform_5(%arg0: i32, %arg1: i32) -> (i32, i32) {
    %c0_i32 = arith.constant 0 : i32
    %c0_i32_0 = arith.constant 0 : i32
    %c0_i32_1 = arith.constant 0 : i32
    return %c0_i32, %c0_i32_0 : i32, i32
  }
  func.func @transform_6(%arg0: i32, %arg1: i32) -> (i32, i32) {
    %c0_i32 = arith.constant 0 : i32
    %c0_i32_0 = arith.constant 0 : i32
    %c0_i32_1 = arith.constant 0 : i32
    return %c0_i32, %c0_i32_0 : i32, i32
  }
  func.func @transform_7(%arg0: i32, %arg1: i32) -> (i32, i32, i32) {
    %c0_i32 = arith.constant 0 : i32
    %c0_i32_0 = arith.constant 0 : i32
    return %arg1, %arg0, %c0_i32 : i32, i32, i32
  }
}

</mosaic_0001>

<llo_original>
// kernel: tpu_custom_call.1
$region0: #{tpu_custom_call.1}
  #allocation0 [shape = 'u32[]', space=smem, size = 0x4, offset = 0x4, fixed_abs, tag = 'smem constant byte address 0x4 - core index']
  #allocation1 [shape = 'u32[144,128]{1,0:T(1,128)}', space=vmem, size = 0x12000, scoped, tag = 'internal scratch']
  #allocation2 [shape = 'f32[8,128]{1,0:T(8,128)}', space=vmem, size = 0x1000, scoped, tag = 'scratch operand']
  #allocation3 [shape = 'f32[8,128]{1,0:T(8,128)}', space=vmem, size = 0x1000, scoped, tag = 'scratch operand']
  #allocation4 [shape = 'f32[8,8,512]{2,1,0:T(8,128)}', space=vmem, size = 0x20000, scoped, tag = 'scratch operand']
  #allocation5 [shape = 'f32[8,8,128]{2,1,0:T(8,128)}', space=vmem, size = 0x8000, scoped, tag = 'scratch operand']
  %s0 = inlined_call_operand.vmem [shape: f32[8,8,128], index: 0, kind: input, shape index: {}]
  %s1 = inlined_call_operand.vmem [shape: f32[8,8,1], index: 1, kind: input, shape index: {}]
  %s2 = inlined_call_operand.hbm [shape: f32[128,512], index: 2, kind: input, shape index: {}]
  %s3 = inlined_call_operand.vmem [shape: f32[1,512], index: 3, kind: input, shape index: {}]
  %s4 = inlined_call_operand.hbm [shape: f32[128,512], index: 4, kind: input, shape index: {}]
  %s5 = inlined_call_operand.hbm [shape: f32[128,128], index: 5, kind: input, shape index: {}]
  %s6 = inlined_call_operand.vmem [shape: f32[1,128], index: 6, kind: input, shape index: {}]
  %s7 = inlined_call_operand.hbm [shape: f32[8,8,128], index: 7, kind: output, shape index: {}]
  %s8 = sld [smem:[#allocation0]]
  $region54: #{tpu_custom_call.1} parent=0
    _
  %s10 = ssub.s32 1, %s8
  %s11 = scalar_select 0, %s10, %s8
  $region1: #{tpu_custom_call.1} parent=0
    #allocation6 [shape = 'u8[262144]{0}', space=vmem, size = 0x40000, scoped, tag = 'input window, operand 2, single buffered']
    #allocation7 [shape = 's32[1]{0}', space=sflag, size = 0x4, scoped, tag = 'scoped memory for tpu_custom_call.1']
    #allocation8 [shape = 's32[1]{0}', space=sflag, size = 0x4, scoped, tag = 'scoped memory for tpu_custom_call.1']
    #allocation9 [shape = 'u8[262144]{0}', space=vmem, size = 0x40000, scoped, tag = 'input window, operand 4, single buffered']
    #allocation10 [shape = 's32[1]{0}', space=sflag, size = 0x4, scoped, tag = 'scoped memory for tpu_custom_call.1']
    #allocation11 [shape = 'u8[65536]{0}', space=vmem, size = 0x10000, scoped, tag = 'input window, operand 5, single buffered']
    #allocation12 [shape = 'u8[32768]{0}', space=vmem, size = 0x8000, scoped, tag = 'output window, operand 0, single buffered']
    %12 = vsyncpa [#allocation7], 0
    %13 = vsyncpa [#allocation10], 0
    %14 = vsyncpa [#allocation8], 0
    // Predicated region
    $region2: #{tpu_custom_call.1} parent=1 // pred_check
      _
    $region3: #{tpu_custom_call.1} parent=1 // pred_check_branch
      %16 = sbr.rel (0) target = $region5
    $region4: #{tpu_custom_call.1} parent=1 // pred_region
      _
    $region5: #{tpu_custom_call.1} parent=1 // pred_fallthru
      _
    // Predicated region
    $region6: #{tpu_custom_call.1} parent=1 // pred_check
      _
    $region7: #{tpu_custom_call.1} parent=1 // pred_check_branch
      %18 = sbr.rel (0) target = $region9
    $region8: #{tpu_custom_call.1} parent=1 // pred_region
      _
    $region9: #{tpu_custom_call.1} parent=1 // pred_fallthru
      _
    // Predicated region
    $region10: #{tpu_custom_call.1} parent=1 // pred_check
      _
    $region11: #{tpu_custom_call.1} parent=1 // pred_check_branch
      %20 = sbr.rel (0) target = $region13
    $region12: #{tpu_custom_call.1} parent=1 // pred_region
      %s22 = ssub.s32 8192, 8192
      %23 = vsyncadd [#allocation7], %s22
      %s24 = sshll.u32 [#allocation6], 4
      %s25 = int_to_ptr.vmem [resolvable:$true] %s24
      %30 = dma.hbm_to_vmem [thread:$0]  %s2, 8192, %s25, [#allocation7], 512, 512, 32
    $region13: #{tpu_custom_call.1} parent=1 // pred_fallthru
      _
    // Predicated region
    $region14: #{tpu_custom_call.1} parent=1 // pred_check
      _
    $region15: #{tpu_custom_call.1} parent=1 // pred_check_branch
      %32 = sbr.rel (0) target = $region17
    $region16: #{tpu_custom_call.1} parent=1 // pred_region
      _
    $region17: #{tpu_custom_call.1} parent=1 // pred_fallthru
      _
    // Predicated region
    $region18: #{tpu_custom_call.1} parent=1 // pred_check
      _
    $region19: #{tpu_custom_call.1} parent=1 // pred_check_branch
      %34 = sbr.rel (0) target = $region21
    $region20: #{tpu_custom_call.1} parent=1 // pred_region
      %s36 = ssub.s32 8192, 8192
      %37 = vsyncadd [#allocation10], %s36
      %s38 = sshll.u32 [#allocation9], 4
      %s39 = int_to_ptr.vmem [resolvable:$true] %s38
      %44 = dma.hbm_to_vmem [thread:$0]  %s4, 8192, %s39, [#allocation10], 512, 512, 32
    $region21: #{tpu_custom_call.1} parent=1 // pred_fallthru
      _
    // Predicated region
    $region22: #{tpu_custom_call.1} parent=1 // pred_check
      _
    $region23: #{tpu_custom_call.1} parent=1 // pred_check_branch
      %46 = sbr.rel (0) target = $region25
    $region24: #{tpu_custom_call.1} parent=1 // pred_region
      %s48 = ssub.s32 2048, 2048
      %49 = vsyncadd [#allocation10], %s48
      %s50 = sshll.u32 [#allocation11], 4
      %s51 = int_to_ptr.vmem [resolvable:$true] %s50
      %56 = dma.hbm_to_vmem [thread:$0]  %s5, 2048, %s51, [#allocation10], 128, 128, 8
    $region25: #{tpu_custom_call.1} parent=1 // pred_fallthru
      _
    // Predicated region
    $region26: #{tpu_custom_call.1} parent=1 // pred_check
      _
    $region27: #{tpu_custom_call.1} parent=1 // pred_check_branch
      %58 = sbr.rel (0) target = $region29
    $region28: #{tpu_custom_call.1} parent=1 // pred_region
      _
    $region29: #{tpu_custom_call.1} parent=1 // pred_fallthru
      _
    // Predicated region
    $region30: #{tpu_custom_call.1} parent=1 // pred_check
      _
    $region31: #{tpu_custom_call.1} parent=1 // pred_check_branch
      %60 = sbr.rel (0) target = $region33
    $region32: #{tpu_custom_call.1} parent=1 // pred_region
      %61 = dma.done [#allocation7], 8192
    $region33: #{tpu_custom_call.1} parent=1 // pred_fallthru
      _
    // Predicated region
    $region34: #{tpu_custom_call.1} parent=1 // pred_check
      _
    $region35: #{tpu_custom_call.1} parent=1 // pred_check_branch
      %63 = sbr.rel (0) target = $region37
    $region36: #{tpu_custom_call.1} parent=1 // pred_region
      %64 = dma.done [#allocation10], 8192
    $region37: #{tpu_custom_call.1} parent=1 // pred_fallthru
      _
    // Predicated region
    $region38: #{tpu_custom_call.1} parent=1 // pred_check
      _
    $region39: #{tpu_custom_call.1} parent=1 // pred_check_branch
      %66 = sbr.rel (0) target = $region41
    $region40: #{tpu_custom_call.1} parent=1 // pred_region
      %67 = dma.done [#allocation10], 2048
    $region41: #{tpu_custom_call.1} parent=1 // pred_fallthru
      _
    %p68 = scmp.eq.s32.totalorder 0, 0
    // Predicated region
    $region42: #{tpu_custom_call.1} parent=1 // pred_check
      %p69 = pneg %p68
    $region43: #{tpu_custom_call.1} parent=1 // pred_check_branch
      %71 = sbr.rel (%p69) target = $region45
    $region44: #{tpu_custom_call.1} parent=1 // pred_region
      %72 = vst [vmem:[#allocation2] sm:$0xff] 0.0
      %73 = vst [vmem:[#allocation3] sm:$0xff] 0.0
    $region45: #{tpu_custom_call.1} parent=1 // pred_fallthru
      _
    %v74 = vld [vmem:[%s0] sm:$0xff]
    %v75 = vld [vmem:[%s0 + $0x8] sm:$0xff]
    %v76 = vld [vmem:[%s0 + $0x10] sm:$0xff]
    %v77 = vld [vmem:[%s0 + $0x18] sm:$0xff]
    %v78 = vld [vmem:[%s0 + $0x20] sm:$0xff]
    %v79 = vld [vmem:[%s0 + $0x28] sm:$0xff]
    %v80 = vld [vmem:[%s0 + $0x30] sm:$0xff]
    %v81 = vld [vmem:[%s0 + $0x38] sm:$0xff]
    %v82 = vld [vmem:[#allocation6] sm:$0xff]
    %v83 = vld [vmem:[#allocation6 + $0x8] sm:$0xff]
    %v84 = vld [vmem:[#allocation6 + $0x10] sm:$0xff]
    %v85 = vld [vmem:[#allocation6 + $0x18] sm:$0xff]
    %v86 = vld [vmem:[#allocation6 + $0x20] sm:$0xff]
    %v87 = vld [vmem:[#allocation6 + $0x28] sm:$0xff]
    %v88 = vld [vmem:[#allocation6 + $0x30] sm:$0xff]
    %v89 = vld [vmem:[#allocation6 + $0x38] sm:$0xff]
    %v90 = vld [vmem:[#allocation6 + $0x40] sm:$0xff]
    %v91 = vld [vmem:[#allocation6 + $0x48] sm:$0xff]
    %v92 = vld [vmem:[#allocation6 + $0x50] sm:$0xff]
    %v93 = vld [vmem:[#allocation6 + $0x58] sm:$0xff]
    %v94 = vld [vmem:[#allocation6 + $0x60] sm:$0xff]
    %v95 = vld [vmem:[#allocation6 + $0x68] sm:$0xff]
    %v96 = vld [vmem:[#allocation6 + $0x70] sm:$0xff]
    %v97 = vld [vmem:[#allocation6 + $0x78] sm:$0xff]
    %v98 = vld [vmem:[#allocation6 + $0x80] sm:$0xff]
    %v99 = vld [vmem:[#allocation6 + $0x88] sm:$0xff]
    %v100 = vld [vmem:[#allocation6 + $0x90] sm:$0xff]
    %v101 = vld [vmem:[#allocation6 + $0x98] sm:$0xff]
    %v102 = vld [vmem:[#allocation6 + $0xa0] sm:$0xff]
    %v103 = vld [vmem:[#allocation6 + $0xa8] sm:$0xff]
    %v104 = vld [vmem:[#allocation6 + $0xb0] sm:$0xff]
    %v105 = vld [vmem:[#allocation6 + $0xb8] sm:$0xff]
    %v106 = vld [vmem:[#allocation6 + $0xc0] sm:$0xff]
    %v107 = vld [vmem:[#allocation6 + $0xc8] sm:$0xff]
    %v108 = vld [vmem:[#allocation6 + $0xd0] sm:$0xff]
    %v109 = vld [vmem:[#allocation6 + $0xd8] sm:$0xff]
    %v110 = vld [vmem:[#allocation6 + $0xe0] sm:$0xff]
    %v111 = vld [vmem:[#allocation6 + $0xe8] sm:$0xff]
    %v112 = vld [vmem:[#allocation6 + $0xf0] sm:$0xff]
    %v113 = vld [vmem:[#allocation6 + $0xf8] sm:$0xff]
    %v114 = vld [vmem:[#allocation6 + $0x100] sm:$0xff]
    %v115 = vld [vmem:[#allocation6 + $0x108] sm:$0xff]
    %v116 = vld [vmem:[#allocation6 + $0x110] sm:$0xff]
    %v117 = vld [vmem:[#allocation6 + $0x118] sm:$0xff]
    %v118 = vld [vmem:[#allocation6 + $0x120] sm:$0xff]
    %v119 = vld [vmem:[#allocation6 + $0x128] sm:$0xff]
    %v120 = vld [vmem:[#allocation6 + $0x130] sm:$0xff]
    %v121 = vld [vmem:[#allocation6 + $0x138] sm:$0xff]
    %v122 = vld [vmem:[#allocation6 + $0x140] sm:$0xff]
    %v123 = vld [vmem:[#allocation6 + $0x148] sm:$0xff]
    %v124 = vld [vmem:[#allocation6 + $0x150] sm:$0xff]
    %v125 = vld [vmem:[#allocation6 + $0x158] sm:$0xff]
    %v126 = vld [vmem:[#allocation6 + $0x160] sm:$0xff]
    %v127 = vld [vmem:[#allocation6 + $0x168] sm:$0xff]
    %v128 = vld [vmem:[#allocation6 + $0x170] sm:$0xff]
    %v129 = vld [vmem:[#allocation6 + $0x178] sm:$0xff]
    %v130 = vld [vmem:[#allocation6 + $0x180] sm:$0xff]
    %v131 = vld [vmem:[#allocation6 + $0x188] sm:$0xff]
    %v132 = vld [vmem:[#allocation6 + $0x190] sm:$0xff]
    %v133 = vld [vmem:[#allocation6 + $0x198] sm:$0xff]
    %v134 = vld [vmem:[#allocation6 + $0x1a0] sm:$0xff]
    %v135 = vld [vmem:[#allocation6 + $0x1a8] sm:$0xff]
    %v136 = vld [vmem:[#allocation6 + $0x1b0] sm:$0xff]
    %v137 = vld [vmem:[#allocation6 + $0x1b8] sm:$0xff]
    %v138 = vld [vmem:[#allocation6 + $0x1c0] sm:$0xff]
    %v139 = vld [vmem:[#allocation6 + $0x1c8] sm:$0xff]
    %v140 = vld [vmem:[#allocation6 + $0x1d0] sm:$0xff]
    %v141 = vld [vmem:[#allocation6 + $0x1d8] sm:$0xff]
    %v142 = vld [vmem:[#allocation6 + $0x1e0] sm:$0xff]
    %v143 = vld [vmem:[#allocation6 + $0x1e8] sm:$0xff]
    %v144 = vld [vmem:[#allocation6 + $0x1f0] sm:$0xff]
    %v145 = vld [vmem:[#allocation6 + $0x1f8] sm:$0xff]
    %146 = vmatprep.subr.mxu0 %v83
    %147 = vmatpush1.msra.mxu0 %v82
    %148 = vmatprep.subr.mxu0 %v87
    %149 = vmatpush1.msra.mxu0 %v86
    %150 = vmatprep.subr.mxu0 %v91
    %151 = vmatpush1.msra.mxu0 %v90
    %152 = vmatprep.subr.mxu0 %v95
    %153 = vmatpush1.msra.mxu0 %v94
    %154 = vmatprep.subr.mxu0 %v99
    %155 = vmatpush1.msra.mxu0 %v98
    %156 = vmatprep.subr.mxu0 %v103
    %157 = vmatpush1.msra.mxu0 %v102
    %158 = vmatprep.subr.mxu0 %v107
    %159 = vmatpush1.msra.mxu0 %v106
    %160 = vmatprep.subr.mxu0 %v111
    %161 = vmatpush1.msra.mxu0 %v110
    %162 = vmatprep.subr.mxu0 %v115
    %163 = vmatpush1.msra.mxu0 %v114
    %164 = vmatprep.subr.mxu0 %v119
    %165 = vmatpush1.msra.mxu0 %v118
    %166 = vmatprep.subr.mxu0 %v123
    %167 = vmatpush1.msra.mxu0 %v122
    %168 = vmatprep.subr.mxu0 %v127
    %169 = vmatpush1.msra.mxu0 %v126
    %170 = vmatprep.subr.mxu0 %v131
    %171 = vmatpush1.msra.mxu0 %v130
    %172 = vmatprep.subr.mxu0 %v135
    %173 = vmatpush1.msra.mxu0 %v134
    %174 = vmatprep.subr.mxu0 %v139
    %175 = vmatpush1.msra.mxu0 %v138
    %176 = vmatprep.subr.mxu0 %v143
    %177 = vmatpush1.msra.mxu0 %v142
    %178 = vmatprep.subr.mxu0 0.0
    %179 = vmatpush1.msra.mxu0 0.0
    %180 = vmatprep.subr.mxu0 0.0
    %181 = vmatpush1.msra.mxu0 0.0
    %182 = vmatprep.subr.mxu0 0.0
    %183 = vmatpush1.msra.mxu0 0.0
    %184 = vmatprep.subr.mxu0 0.0
    %185 = vmatpush1.msra.mxu0 0.0
    %186 = vmatprep.subr.mxu0 0.0
    %187 = vmatpush1.msra.mxu0 0.0
    %188 = vmatprep.subr.mxu0 0.0
    %189 = vmatpush1.msra.mxu0 0.0
    %190 = vmatprep.subr.mxu0 0.0
    %191 = vmatpush1.msra.mxu0 0.0
    %192 = vmatprep.subr.mxu0 0.0
    %193 = vmatpush1.msra.mxu0 0.0
    %194 = vmatprep.subr.mxu0 0.0
    %195 = vmatpush1.msra.mxu0 0.0
    %196 = vmatprep.subr.mxu0 0.0
    %197 = vmatpush1.msra.mxu0 0.0
    %198 = vmatprep.subr.mxu0 0.0
    %199 = vmatpush1.msra.mxu0 0.0
    %200 = vmatprep.subr.mxu0 0.0
    %201 = vmatpush1.msra.mxu0 0.0
    %202 = vmatprep.subr.mxu0 0.0
    %203 = vmatpush1.msra.mxu0 0.0
    %204 = vmatprep.subr.mxu0 0.0
    %205 = vmatpush1.msra.mxu0 0.0
    %206 = vmatprep.subr.mxu0 0.0
    %207 = vmatpush1.msra.mxu0 0.0
    %208 = vmatprep.subr.mxu0 0.0
    %209 = vmatpush1.msra.mxu0 0.0
    %210 = vmatprep.mubr.f32.mxu0 0.0
    %211 = vmatmul.mubr.f32.gmra.mrb[0].mxu0 %v74
    %v212 = vpop.f32.mrb[0].mxu0
    %v213 = vadd.f32 0.0, %v212
    %v214 = vpop.f32.mrb[0].mxu0
    %v215 = vadd.f32 0.0, %v214
    %216 = vmatprep.mubr.f32.mxu0 0.0
    %217 = vmatmul.mubr.f32.gmra.mrb[0].mxu0 %v75
    %v218 = vpop.f32.mrb[0].mxu0
    %v219 = vadd.f32 0.0, %v218
    %v220 = vpop.f32.mrb[0].mxu0
    %v221 = vadd.f32 0.0, %v220
    %222 = vmatprep.mubr.f32.mxu0 0.0
    %223 = vmatmul.mubr.f32.gmra.mrb[0].mxu0 %v76
    %v224 = vpop.f32.mrb[0].mxu0
    %v225 = vadd.f32 0.0, %v224
    %v226 = vpop.f32.mrb[0].mxu0
    %v227 = vadd.f32 0.0, %v226
    %228 = vmatprep.mubr.f32.mxu0 0.0
    %229 = vmatmul.mubr.f32.gmra.mrb[0].mxu0 %v77
    %v230 = vpop.f32.mrb[0].mxu0
    %v231 = vadd.f32 0.0, %v230
    %v232 = vpop.f32.mrb[0].mxu0
    %v233 = vadd.f32 0.0, %v232
    %234 = vmatprep.mubr.f32.mxu0 0.0
    %235 = vmatmul.mubr.f32.gmra.mrb[0].mxu0 %v78
    %v236 = vpop.f32.mrb[0].mxu0
    %v237 = vadd.f32 0.0, %v236
    %v238 = vpop.f32.mrb[0].mxu0
    %v239 = vadd.f32 0.0, %v238
    %240 = vmatprep.mubr.f32.mxu0 0.0
    %241 = vmatmul.mubr.f32.gmra.mrb[0].mxu0 %v79
    %v242 = vpop.f32.mrb[0].mxu0
    %v243 = vadd.f32 0.0, %v242
    %v244 = vpop.f32.mrb[0].mxu0
    %v245 = vadd.f32 0.0, %v244
    %246 = vmatprep.mubr.f32.mxu0 0.0
    %247 = vmatmul.mubr.f32.gmra.mrb[0].mxu0 %v80
    %v248 = vpop.f32.mrb[0].mxu0
    %v249 = vadd.f32 0.0, %v248
    %v250 = vpop.f32.mrb[0].mxu0
    %v251 = vadd.f32 0.0, %v250
    %252 = vmatprep.mubr.f32.mxu0 0.0
    %253 = vmatmul.mubr.f32.gmra.mrb[0].mxu0 %v81
    %v254 = vpop.f32.mrb[0].mxu0
    %v255 = vadd.f32 0.0, %v254
    %v256 = vpop.f32.mrb[0].mxu0
    %v257 = vadd.f32 0.0, %v256
    %258 = vdwg.mxu0
    %259 = vmatprep.subr.mxu0 %v85
    %260 = vmatpush1.msra.mxu0 %v84
    %261 = vmatprep.subr.mxu0 %v89
    %262 = vmatpush1.msra.mxu0 %v88
    %263 = vmatprep.subr.mxu0 %v93
    %264 = vmatpush1.msra.mxu0 %v92
    %265 = vmatprep.subr.mxu0 %v97
    %266 = vmatpush1.msra.mxu0 %v96
    %267 = vmatprep.subr.mxu0 %v101
    %268 = vmatpush1.msra.mxu0 %v100
    %269 = vmatprep.subr.mxu0 %v105
    %270 = vmatpush1.msra.mxu0 %v104
    %271 = vmatprep.subr.mxu0 %v109
    %272 = vmatpush1.msra.mxu0 %v108
    %273 = vmatprep.subr.mxu0 %v113
    %274 = vmatpush1.msra.mxu0 %v112
    %275 = vmatprep.subr.mxu0 %v117
    %276 = vmatpush1.msra.mxu0 %v116
    %277 = vmatprep.subr.mxu0 %v121
    %278 = vmatpush1.msra.mxu0 %v120
    %279 = vmatprep.subr.mxu0 %v125
    %280 = vmatpush1.msra.mxu0 %v124
    %281 = vmatprep.subr.mxu0 %v129
    %282 = vmatpush1.msra.mxu0 %v128
    %283 = vmatprep.subr.mxu0 %v133
    %284 = vmatpush1.msra.mxu0 %v132
    %285 = vmatprep.subr.mxu0 %v137
    %286 = vmatpush1.msra.mxu0 %v136
    %287 = vmatprep.subr.mxu0 %v141
    %288 = vmatpush1.msra.mxu0 %v140
    %289 = vmatprep.subr.mxu0 %v145
    %290 = vmatpush1.msra.mxu0 %v144
    %291 = vmatprep.subr.mxu0 0.0
    %292 = vmatpush1.msra.mxu0 0.0
    %293 = vmatprep.subr.mxu0 0.0
    %294 = vmatpush1.msra.mxu0 0.0
    %295 = vmatprep.subr.mxu0 0.0
    %296 = vmatpush1.msra.mxu0 0.0
    %297 = vmatprep.subr.mxu0 0.0
    %298 = vmatpush1.msra.mxu0 0.0
    %299 = vmatprep.subr.mxu0 0.0
    %300 = vmatpush1.msra.mxu0 0.0
    %301 = vmatprep.subr.mxu0 0.0
    %302 = vmatpush1.msra.mxu0 0.0
    %303 = vmatprep.subr.mxu0 0.0
    %304 = vmatpush1.msra.mxu0 0.0
    %305 = vmatprep.subr.mxu0 0.0
    %306 = vmatpush1.msra.mxu0 0.0
    %307 = vmatprep.subr.mxu0 0.0
    %308 = vmatpush1.msra.mxu0 0.0
    %309 = vmatprep.subr.mxu0 0.0
    %310 = vmatpush1.msra.mxu0 0.0
    %311 = vmatprep.subr.mxu0 0.0
    %312 = vmatpush1.msra.mxu0 0.0
    %313 = vmatprep.subr.mxu0 0.0
    %314 = vmatpush1.msra.mxu0 0.0
    %315 = vmatprep.subr.mxu0 0.0
    %316 = vmatpush1.msra.mxu0 0.0
    %317 = vmatprep.subr.mxu0 0.0
    %318 = vmatpush1.msra.mxu0 0.0
    %319 = vmatprep.subr.mxu0 0.0
    %320 = vmatpush1.msra.mxu0 0.0
    %321 = vmatprep.subr.mxu0 0.0
    %322 = vmatpush1.msra.mxu0 0.0
    %323 = vmatprep.mubr.f32.mxu0 0.0
    %324 = vmatmul.mubr.f32.gmra.mrb[0].mxu0 %v74
    %v325 = vpop.f32.mrb[0].mxu0
    %v326 = vadd.f32 0.0, %v325
    %v327 = vpop.f32.mrb[0].mxu0
    %v328 = vadd.f32 0.0, %v327
    %329 = vmatprep.mubr.f32.mxu0 0.0
    %330 = vmatmul.mubr.f32.gmra.mrb[0].mxu0 %v75
    %v331 = vpop.f32.mrb[0].mxu0
    %v332 = vadd.f32 0.0, %v331
    %v333 = vpop.f32.mrb[0].mxu0
    %v334 = vadd.f32 0.0, %v333
    %335 = vmatprep.mubr.f32.mxu0 0.0
    %336 = vmatmul.mubr.f32.gmra.mrb[0].mxu0 %v76
    %v337 = vpop.f32.mrb[0].mxu0
    %v338 = vadd.f32 0.0, %v337
    %v339 = vpop.f32.mrb[0].mxu0
    %v340 = vadd.f32 0.0, %v339
    %341 = vmatprep.mubr.f32.mxu0 0.0
    %342 = vmatmul.mubr.f32.gmra.mrb[0].mxu0 %v77
    %v343 = vpop.f32.mrb[0].mxu0
    %v344 = vadd.f32 0.0, %v343
    %v345 = vpop.f32.mrb[0].mxu0
    %v346 = vadd.f32 0.0, %v345
    %347 = vmatprep.mubr.f32.mxu0 0.0
    %348 = vmatmul.mubr.f32.gmra.mrb[0].mxu0 %v78
    %v349 = vpop.f32.mrb[0].mxu0
    %v350 = vadd.f32 0.0, %v349
    %v351 = vpop.f32.mrb[0].mxu0
    %v352 = vadd.f32 0.0, %v351
    %353 = vmatprep.mubr.f32.mxu0 0.0
    %354 = vmatmul.mubr.f32.gmra.mrb[0].mxu0 %v79
    %v355 = vpop.f32.mrb[0].mxu0
    %v356 = vadd.f32 0.0, %v355
    %v357 = vpop.f32.mrb[0].mxu0
    %v358 = vadd.f32 0.0, %v357
    %359 = vmatprep.mubr.f32.mxu0 0.0
    %360 = vmatmul.mubr.f32.gmra.mrb[0].mxu0 %v80
    %v361 = vpop.f32.mrb[0].mxu0
    %v362 = vadd.f32 0.0, %v361
    %v363 = vpop.f32.mrb[0].mxu0
    %v364 = vadd.f32 0.0, %v363
    %365 = vmatprep.mubr.f32.mxu0 0.0
    %366 = vmatmul.mubr.f32.gmra.mrb[0].mxu0 %v81
    %v367 = vpop.f32.mrb[0].mxu0
    %v368 = vadd.f32 0.0, %v367
    %v369 = vpop.f32.mrb[0].mxu0
    %v370 = vadd.f32 0.0, %v369
    %371 = vdwg.mxu0
    %v372 = vld [vmem:[%s3] sm:$0xf]
    %v374 = vlaneseq
    %v375 = vshrl.u32 %v374, 7
    %v376 = vsub.s32 0, %v375
    %v377 = vrot.slane %v372, %v376
    %v378 = vlaneseq
    %v379 = vshrl.u32 %v378, 7
    %v380 = vsub.s32 1, %v379
    %v381 = vrot.slane %v372, %v380
    %v382 = vlaneseq
    %v383 = vshrl.u32 %v382, 7
    %v384 = vsub.s32 2, %v383
    %v385 = vrot.slane %v372, %v384
    %v386 = vlaneseq
    %v387 = vshrl.u32 %v386, 7
    %v388 = vsub.s32 3, %v387
    %v389 = vrot.slane %v372, %v388
    %v394 = vadd.f32 %v213, %v377
    %v395 = vadd.f32 %v215, %v381
    %v396 = vadd.f32 %v326, %v385
    %v397 = vadd.f32 %v328, %v389
    %v398 = vadd.f32 %v219, %v377
    %v399 = vadd.f32 %v221, %v381
    %v400 = vadd.f32 %v332, %v385
    %v401 = vadd.f32 %v334, %v389
    %v402 = vadd.f32 %v225, %v377
    %v403 = vadd.f32 %v227, %v381
    %v404 = vadd.f32 %v338, %v385
    %v405 = vadd.f32 %v340, %v389
    %v406 = vadd.f32 %v231, %v377
    %v407 = vadd.f32 %v233, %v381
    %v408 = vadd.f32 %v344, %v385
    %v409 = vadd.f32 %v346, %v389
    %v410 = vadd.f32 %v237, %v377
    %v411 = vadd.f32 %v239, %v381
    %v412 = vadd.f32 %v350, %v385
    %v413 = vadd.f32 %v352, %v389
    %v414 = vadd.f32 %v243, %v377
    %v415 = vadd.f32 %v245, %v381
    %v416 = vadd.f32 %v356, %v385
    %v417 = vadd.f32 %v358, %v389
    %v418 = vadd.f32 %v249, %v377
    %v419 = vadd.f32 %v251, %v381
    %v420 = vadd.f32 %v362, %v385
    %v421 = vadd.f32 %v364, %v389
    %v422 = vadd.f32 %v255, %v377
    %v423 = vadd.f32 %v257, %v381
    %v424 = vadd.f32 %v368, %v385
    %v425 = vadd.f32 %v370, %v389
    %426 = vst [vmem:[#allocation4] sm:$0xff] %v394
    %427 = vst [vmem:[#allocation4 + $0x8] sm:$0xff] %v395
    %428 = vst [vmem:[#allocation4 + $0x10] sm:$0xff] %v396
    %429 = vst [vmem:[#allocation4 + $0x18] sm:$0xff] %v397
    %430 = vst [vmem:[#allocation4 + $0x20] sm:$0xff] %v398
    %431 = vst [vmem:[#allocation4 + $0x28] sm:$0xff] %v399
    %432 = vst [vmem:[#allocation4 + $0x30] sm:$0xff] %v400
    %433 = vst [vmem:[#allocation4 + $0x38] sm:$0xff] %v401
    %434 = vst [vmem:[#allocation4 + $0x40] sm:$0xff] %v402
    %435 = vst [vmem:[#allocation4 + $0x48] sm:$0xff] %v403
    %436 = vst [vmem:[#allocation4 + $0x50] sm:$0xff] %v404
    %437 = vst [vmem:[#allocation4 + $0x58] sm:$0xff] %v405
    %438 = vst [vmem:[#allocation4 + $0x60] sm:$0xff] %v406
    %439 = vst [vmem:[#allocation4 + $0x68] sm:$0xff] %v407
    %440 = vst [vmem:[#allocation4 + $0x70] sm:$0xff] %v408
    %441 = vst [vmem:[#allocation4 + $0x78] sm:$0xff] %v409
    %442 = vst [vmem:[#allocation4 + $0x80] sm:$0xff] %v410
    %443 = vst [vmem:[#allocation4 + $0x88] sm:$0xff] %v411
    %444 = vst [vmem:[#allocation4 + $0x90] sm:$0xff] %v412
    %445 = vst [vmem:[#allocation4 + $0x98] sm:$0xff] %v413
    %446 = vst [vmem:[#allocation4 + $0xa0] sm:$0xff] %v414
    %447 = vst [vmem:[#allocation4 + $0xa8] sm:$0xff] %v415
    %448 = vst [vmem:[#allocation4 + $0xb0] sm:$0xff] %v416
    %449 = vst [vmem:[#allocation4 + $0xb8] sm:$0xff] %v417
    %450 = vst [vmem:[#allocation4 + $0xc0] sm:$0xff] %v418
    %451 = vst [vmem:[#allocation4 + $0xc8] sm:$0xff] %v419
    %452 = vst [vmem:[#allocation4 + $0xd0] sm:$0xff] %v420
    %453 = vst [vmem:[#allocation4 + $0xd8] sm:$0xff] %v421
    %454 = vst [vmem:[#allocation4 + $0xe0] sm:$0xff] %v422
    %455 = vst [vmem:[#allocation4 + $0xe8] sm:$0xff] %v423
    %456 = vst [vmem:[#allocation4 + $0xf0] sm:$0xff] %v424
    %457 = vst [vmem:[#allocation4 + $0xf8] sm:$0xff] %v425
    %v458 = vld [vmem:[#allocation2] sm:$0xff]
    %v459 = vld [vmem:[#allocation3] sm:$0xff]
    %v460 = vld [vmem:[#allocation4] sm:$0xff]
    %v461 = vld [vmem:[#allocation4 + $0x8] sm:$0xff]
    %v462 = vld [vmem:[#allocation4 + $0x10] sm:$0xff]
    %v463 = vld [vmem:[#allocation4 + $0x18] sm:$0xff]
    %v464 = vld [vmem:[#allocation9] sm:$0xff]
    %v465 = vld [vmem:[#allocation9 + $0x8] sm:$0xff]
    %v466 = vld [vmem:[#allocation9 + $0x10] sm:$0xff]
    %v467 = vld [vmem:[#allocation9 + $0x18] sm:$0xff]
    %v468 = vld [vmem:[#allocation9 + $0x20] sm:$0xff]
    %v469 = vld [vmem:[#allocation9 + $0x28] sm:$0xff]
    %v470 = vld [vmem:[#allocation9 + $0x30] sm:$0xff]
    %v471 = vld [vmem:[#allocation9 + $0x38] sm:$0xff]
    %v472 = vld [vmem:[#allocation9 + $0x40] sm:$0xff]
    %v473 = vld [vmem:[#allocation9 + $0x48] sm:$0xff]
    %v474 = vld [vmem:[#allocation9 + $0x50] sm:$0xff]
    %v475 = vld [vmem:[#allocation9 + $0x58] sm:$0xff]
    %v476 = vld [vmem:[#allocation9 + $0x60] sm:$0xff]
    %v477 = vld [vmem:[#allocation9 + $0x68] sm:$0xff]
    %v478 = vld [vmem:[#allocation9 + $0x70] sm:$0xff]
    %v479 = vld [vmem:[#allocation9 + $0x78] sm:$0xff]
    %v480 = vld [vmem:[#allocation9 + $0x80] sm:$0xff]
    %v481 = vld [vmem:[#allocation9 + $0x88] sm:$0xff]
    %v482 = vld [vmem:[#allocation9 + $0x90] sm:$0xff]
    %v483 = vld [vmem:[#allocation9 + $0x98] sm:$0xff]
    %v484 = vld [vmem:[#allocation9 + $0xa0] sm:$0xff]
    %v485 = vld [vmem:[#allocation9 + $0xa8] sm:$0xff]
    %v486 = vld [vmem:[#allocation9 + $0xb0] sm:$0xff]
    %v487 = vld [vmem:[#allocation9 + $0xb8] sm:$0xff]
    %v488 = vld [vmem:[#allocation9 + $0xc0] sm:$0xff]
    %v489 = vld [vmem:[#allocation9 + $0xc8] sm:$0xff]
    %v490 = vld [vmem:[#allocation9 + $0xd0] sm:$0xff]
    %v491 = vld [vmem:[#allocation9 + $0xd8] sm:$0xff]
    %v492 = vld [vmem:[#allocation9 + $0xe0] sm:$0xff]
    %v493 = vld [vmem:[#allocation9 + $0xe8] sm:$0xff]
    %v494 = vld [vmem:[#allocation9 + $0xf0] sm:$0xff]
    %v495 = vld [vmem:[#allocation9 + $0xf8] sm:$0xff]
    %v496 = vld [vmem:[#allocation9 + $0x100] sm:$0xff]
    %v497 = vld [vmem:[#allocation9 + $0x108] sm:$0xff]
    %v498 = vld [vmem:[#allocation9 + $0x110] sm:$0xff]
    %v499 = vld [vmem:[#allocation9 + $0x118] sm:$0xff]
    %v500 = vld [vmem:[#allocation9 + $0x120] sm:$0xff]
    %v501 = vld [vmem:[#allocation9 + $0x128] sm:$0xff]
    %v502 = vld [vmem:[#allocation9 + $0x130] sm:$0xff]
    %v503 = vld [vmem:[#allocation9 + $0x138] sm:$0xff]
    %v504 = vld [vmem:[#allocation9 + $0x140] sm:$0xff]
    %v505 = vld [vmem:[#allocation9 + $0x148] sm:$0xff]
    %v506 = vld [vmem:[#allocation9 + $0x150] sm:$0xff]
    %v507 = vld [vmem:[#allocation9 + $0x158] sm:$0xff]
    %v508 = vld [vmem:[#allocation9 + $0x160] sm:$0xff]
    %v509 = vld [vmem:[#allocation9 + $0x168] sm:$0xff]
    %v510 = vld [vmem:[#allocation9 + $0x170] sm:$0xff]
    %v511 = vld [vmem:[#allocation9 + $0x178] sm:$0xff]
    %v512 = vld [vmem:[#allocation9 + $0x180] sm:$0xff]
    %v513 = vld [vmem:[#allocation9 + $0x188] sm:$0xff]
    %v514 = vld [vmem:[#allocation9 + $0x190] sm:$0xff]
    %v515 = vld [vmem:[#allocation9 + $0x198] sm:$0xff]
    %v516 = vld [vmem:[#allocation9 + $0x1a0] sm:$0xff]
    %v517 = vld [vmem:[#allocation9 + $0x1a8] sm:$0xff]
    %v518 = vld [vmem:[#allocation9 + $0x1b0] sm:$0xff]
    %v519 = vld [vmem:[#allocation9 + $0x1b8] sm:$0xff]
    %v520 = vld [vmem:[#allocation9 + $0x1c0] sm:$0xff]
    %v521 = vld [vmem:[#allocation9 + $0x1c8] sm:$0xff]
    %v522 = vld [vmem:[#allocation9 + $0x1d0] sm:$0xff]
    %v523 = vld [vmem:[#allocation9 + $0x1d8] sm:$0xff]
    %v524 = vld [vmem:[#allocation9 + $0x1e0] sm:$0xff]
    %v525 = vld [vmem:[#allocation9 + $0x1e8] sm:$0xff]
    %v526 = vld [vmem:[#allocation9 + $0x1f0] sm:$0xff]
    %v527 = vld [vmem:[#allocation9 + $0x1f8] sm:$0xff]
    %528 = vmatprep.subr.mxu0 %v465
    %529 = vmatpush1.msra.mxu0 %v464
    %530 = vmatprep.subr.mxu0 %v469
    %531 = vmatpush1.msra.mxu0 %v468
    %532 = vmatprep.subr.mxu0 %v473
    %533 = vmatpush1.msra.mxu0 %v472
    %534 = vmatprep.subr.mxu0 %v477
    %535 = vmatpush1.msra.mxu0 %v476
    %536 = vmatprep.subr.mxu0 %v481
    %537 = vmatpush1.msra.mxu0 %v480
    %538 = vmatprep.subr.mxu0 %v485
    %539 = vmatpush1.msra.mxu0 %v484
    %540 = vmatprep.subr.mxu0 %v489
    %541 = vmatpush1.msra.mxu0 %v488
    %542 = vmatprep.subr.mxu0 %v493
    %543 = vmatpush1.msra.mxu0 %v492
    %544 = vmatprep.subr.mxu0 %v497
    %545 = vmatpush1.msra.mxu0 %v496
    %546 = vmatprep.subr.mxu0 %v501
    %547 = vmatpush1.msra.mxu0 %v500
    %548 = vmatprep.subr.mxu0 %v505
    %549 = vmatpush1.msra.mxu0 %v504
    %550 = vmatprep.subr.mxu0 %v509
    %551 = vmatpush1.msra.mxu0 %v508
    %552 = vmatprep.subr.mxu0 %v513
    %553 = vmatpush1.msra.mxu0 %v512
    %554 = vmatprep.subr.mxu0 %v517
    %555 = vmatpush1.msra.mxu0 %v516
    %556 = vmatprep.subr.mxu0 %v521
    %557 = vmatpush1.msra.mxu0 %v520
    %558 = vmatprep.subr.mxu0 %v525
    %559 = vmatpush1.msra.mxu0 %v524
    %560 = vmatprep.subr.mxu0 0.0
    %561 = vmatpush1.msra.mxu0 0.0
    %562 = vmatprep.subr.mxu0 0.0
    %563 = vmatpush1.msra.mxu0 0.0
    %564 = vmatprep.subr.mxu0 0.0
    %565 = vmatpush1.msra.mxu0 0.0
    %566 = vmatprep.subr.mxu0 0.0
    %567 = vmatpush1.msra.mxu0 0.0
    %568 = vmatprep.subr.mxu0 0.0
    %569 = vmatpush1.msra.mxu0 0.0
    %570 = vmatprep.subr.mxu0 0.0
    %571 = vmatpush1.msra.mxu0 0.0
    %572 = vmatprep.subr.mxu0 0.0
    %573 = vmatpush1.msra.mxu0 0.0
    %574 = vmatprep.subr.mxu0 0.0
    %575 = vmatpush1.msra.mxu0 0.0
    %576 = vmatprep.subr.mxu0 0.0
    %577 = vmatpush1.msra.mxu0 0.0
    %578 = vmatprep.subr.mxu0 0.0
    %579 = vmatpush1.msra.mxu0 0.0
    %580 = vmatprep.subr.mxu0 0.0
    %581 = vmatpush1.msra.mxu0 0.0
    %582 = vmatprep.subr.mxu0 0.0
    %583 = vmatpush1.msra.mxu0 0.0
    %584 = vmatprep.subr.mxu0 0.0
    %585 = vmatpush1.msra.mxu0 0.0
    %586 = vmatprep.subr.mxu0 0.0
    %587 = vmatpush1.msra.mxu0 0.0
    %588 = vmatprep.subr.mxu0 0.0
    %589 = vmatpush1.msra.mxu0 0.0
    %590 = vmatprep.subr.mxu0 0.0
    %591 = vmatpush1.msra.mxu0 0.0
    %592 = vmatprep.mubr.f32.mxu0 0.0
    %593 = vmatmul.mubr.f32.gmra.mrb[0].mxu0 %v458
    %v594 = vpop.f32.mrb[0].mxu0
    %v595 = vadd.f32 0.0, %v594
    %v596 = vpop.f32.mrb[0].mxu0
    %v597 = vadd.f32 0.0, %v596
    %598 = vdwg.mxu0
    %599 = vmatprep.subr.mxu0 %v467
    %600 = vmatpush1.msra.mxu0 %v466
    %601 = vmatprep.subr.mxu0 %v471
    %602 = vmatpush1.msra.mxu0 %v470
    %603 = vmatprep.subr.mxu0 %v475
    %604 = vmatpush1.msra.mxu0 %v474
    %605 = vmatprep.subr.mxu0 %v479
    %606 = vmatpush1.msra.mxu0 %v478
    %607 = vmatprep.subr.mxu0 %v483
    %608 = vmatpush1.msra.mxu0 %v482
    %609 = vmatprep.subr.mxu0 %v487
    %610 = vmatpush1.msra.mxu0 %v486
    %611 = vmatprep.subr.mxu0 %v491
    %612 = vmatpush1.msra.mxu0 %v490
    %613 = vmatprep.subr.mxu0 %v495
    %614 = vmatpush1.msra.mxu0 %v494
    %615 = vmatprep.subr.mxu0 %v499
    %616 = vmatpush1.msra.mxu0 %v498
    %617 = vmatprep.subr.mxu0 %v503
    %618 = vmatpush1.msra.mxu0 %v502
    %619 = vmatprep.subr.mxu0 %v507
    %620 = vmatpush1.msra.mxu0 %v506
    %621 = vmatprep.subr.mxu0 %v511
    %622 = vmatpush1.msra.mxu0 %v510
    %623 = vmatprep.subr.mxu0 %v515
    %624 = vmatpush1.msra.mxu0 %v514
    %625 = vmatprep.subr.mxu0 %v519
    %626 = vmatpush1.msra.mxu0 %v518
    %627 = vmatprep.subr.mxu0 %v523
    %628 = vmatpush1.msra.mxu0 %v522
    %629 = vmatprep.subr.mxu0 %v527
    %630 = vmatpush1.msra.mxu0 %v526
    %631 = vmatprep.subr.mxu0 0.0
    %632 = vmatpush1.msra.mxu0 0.0
    %633 = vmatprep.subr.mxu0 0.0
    %634 = vmatpush1.msra.mxu0 0.0
    %635 = vmatprep.subr.mxu0 0.0
    %636 = vmatpush1.msra.mxu0 0.0
    %637 = vmatprep.subr.mxu0 0.0
    %638 = vmatpush1.msra.mxu0 0.0
    %639 = vmatprep.subr.mxu0 0.0
    %640 = vmatpush1.msra.mxu0 0.0
    %641 = vmatprep.subr.mxu0 0.0
    %642 = vmatpush1.msra.mxu0 0.0
    %643 = vmatprep.subr.mxu0 0.0
    %644 = vmatpush1.msra.mxu0 0.0
    %645 = vmatprep.subr.mxu0 0.0
    %646 = vmatpush1.msra.mxu0 0.0
    %647 = vmatprep.subr.mxu0 0.0
    %648 = vmatpush1.msra.mxu0 0.0
    %649 = vmatprep.subr.mxu0 0.0
    %650 = vmatpush1.msra.mxu0 0.0
    %651 = vmatprep.subr.mxu0 0.0
    %652 = vmatpush1.msra.mxu0 0.0
    %653 = vmatprep.subr.mxu0 0.0
    %654 = vmatpush1.msra.mxu0 0.0
    %655 = vmatprep.subr.mxu0 0.0
    %656 = vmatpush1.msra.mxu0 0.0
    %657 = vmatprep.subr.mxu0 0.0
    %658 = vmatpush1.msra.mxu0 0.0
    %659 = vmatprep.subr.mxu0 0.0
    %660 = vmatpush1.msra.mxu0 0.0
    %661 = vmatprep.subr.mxu0 0.0
    %662 = vmatpush1.msra.mxu0 0.0
    %663 = vmatprep.mubr.f32.mxu0 0.0
    %664 = vmatmul.mubr.f32.gmra.mrb[0].mxu0 %v458
    %v665 = vpop.f32.mrb[0].mxu0
    %v666 = vadd.f32 0.0, %v665
    %v667 = vpop.f32.mrb[0].mxu0
    %v668 = vadd.f32 0.0, %v667
    %669 = vdwg.mxu0
    %v670 = vadd.f32 %v460, %v595
    %v671 = vadd.f32 %v461, %v597
    %v672 = vadd.f32 %v462, %v666
    %v673 = vadd.f32 %v463, %v668
    %v674 = vmul.f32 %v670, 0.5
    %v675 = vtanh.pop %v674
    %v676 = vadd.f32 %v675, 1.0
    %v677 = vmul.f32 %v676, 0.5
    %v678 = vmul.f32 %v671, 0.5
    %v679 = vtanh.pop %v678
    %v680 = vadd.f32 %v679, 1.0
    %v681 = vmul.f32 %v680, 0.5
    %v682 = vtanh.pop %v672
    %v683 = vmul.f32 %v673, 0.5
    %v684 = vtanh.pop %v683
    %v685 = vadd.f32 %v684, 1.0
    %v686 = vmul.f32 %v685, 0.5
    %v687 = vmul.f32 %v681, %v459
    %v688 = vmul.f32 %v677, %v682
    %v689 = vadd.f32 %v687, %v688
    %v690 = vtanh.pop %v689
    %v691 = vmul.f32 %v686, %v690
    %692 = vst [vmem:[#allocation5] sm:$0xff] %v691
    %s693 = scalar_lea.vmem [#allocation4], 32
    %v694 = vld [vmem:[%s693] sm:$0xff]
    %v695 = vld [vmem:[%s693 + $0x8] sm:$0xff]
    %v696 = vld [vmem:[%s693 + $0x10] sm:$0xff]
    %v697 = vld [vmem:[%s693 + $0x18] sm:$0xff]
    %v698 = vld [vmem:[#allocation9] sm:$0xff]
    %v699 = vld [vmem:[#allocation9 + $0x8] sm:$0xff]
    %v700 = vld [vmem:[#allocation9 + $0x10] sm:$0xff]
    %v701 = vld [vmem:[#allocation9 + $0x18] sm:$0xff]
    %v702 = vld [vmem:[#allocation9 + $0x20] sm:$0xff]
    %v703 = vld [vmem:[#allocation9 + $0x28] sm:$0xff]
    %v704 = vld [vmem:[#allocation9 + $0x30] sm:$0xff]
    %v705 = vld [vmem:[#allocation9 + $0x38] sm:$0xff]
    %v706 = vld [vmem:[#allocation9 + $0x40] sm:$0xff]
    %v707 = vld [vmem:[#allocation9 + $0x48] sm:$0xff]
    %v708 = vld [vmem:[#allocation9 + $0x50] sm:$0xff]
    %v709 = vld [vmem:[#allocation9 + $0x58] sm:$0xff]
    %v710 = vld [vmem:[#allocation9 + $0x60] sm:$0xff]
    %v711 = vld [vmem:[#allocation9 + $0x68] sm:$0xff]
    %v712 = vld [vmem:[#allocation9 + $0x70] sm:$0xff]
    %v713 = vld [vmem:[#allocation9 + $0x78] sm:$0xff]
    %v714 = vld [vmem:[#allocation9 + $0x80] sm:$0xff]
    %v715 = vld [vmem:[#allocation9 + $0x88] sm:$0xff]
    %v716 = vld [vmem:[#allocation9 + $0x90] sm:$0xff]
    %v717 = vld [vmem:[#allocation9 + $0x98] sm:$0xff]
    %v718 = vld [vmem:[#allocation9 + $0xa0] sm:$0xff]
    %v719 = vld [vmem:[#allocation9 + $0xa8] sm:$0xff]
    %v720 = vld [vmem:[#allocation9 + $0xb0] sm:$0xff]
    %v721 = vld [vmem:[#allocation9 + $0xb8] sm:$0xff]
    %v722 = vld [vmem:[#allocation9 + $0xc0] sm:$0xff]
    %v723 = vld [vmem:[#allocation9 + $0xc8] sm:$0xff]
    %v724 = vld [vmem:[#allocation9 + $0xd0] sm:$0xff]
    %v725 = vld [vmem:[#allocation9 + $0xd8] sm:$0xff]
    %v726 = vld [vmem:[#allocation9 + $0xe0] sm:$0xff]
    %v727 = vld [vmem:[#allocation9 + $0xe8] sm:$0xff]
    %v728 = vld [vmem:[#allocation9 + $0xf0] sm:$0xff]
    %v729 = vld [vmem:[#allocation9 + $0xf8] sm:$0xff]
    %v730 = vld [vmem:[#allocation9 + $0x100] sm:$0xff]
    %v731 = vld [vmem:[#allocation9 + $0x108] sm:$0xff]
    %v732 = vld [vmem:[#allocation9 + $0x110] sm:$0xff]
    %v733 = vld [vmem:[#allocation9 + $0x118] sm:$0xff]
    %v734 = vld [vmem:[#allocation9 + $0x120] sm:$0xff]
    %v735 = vld [vmem:[#allocation9 + $0x128] sm:$0xff]
    %v736 = vld [vmem:[#allocation9 + $0x130] sm:$0xff]
    %v737 = vld [vmem:[#allocation9 + $0x138] sm:$0xff]
    %v738 = vld [vmem:[#allocation9 + $0x140] sm:$0xff]
    %v739 = vld [vmem:[#allocation9 + $0x148] sm:$0xff]
    %v740 = vld [vmem:[#allocation9 + $0x150] sm:$0xff]
    %v741 = vld [vmem:[#allocation9 + $0x158] sm:$0xff]
    %v742 = vld [vmem:[#allocation9 + $0x160] sm:$0xff]
    %v743 = vld [vmem:[#allocation9 + $0x168] sm:$0xff]
    %v744 = vld [vmem:[#allocation9 + $0x170] sm:$0xff]
    %v745 = vld [vmem:[#allocation9 + $0x178] sm:$0xff]
    %v746 = vld [vmem:[#allocation9 + $0x180] sm:$0xff]
    %v747 = vld [vmem:[#allocation9 + $0x188] sm:$0xff]
    %v748 = vld [vmem:[#allocation9 + $0x190] sm:$0xff]
    %v749 = vld [vmem:[#allocation9 + $0x198] sm:$0xff]
    %v750 = vld [vmem:[#allocation9 + $0x1a0] sm:$0xff]
    %v751 = vld [vmem:[#allocation9 + $0x1a8] sm:$0xff]
    %v752 = vld [vmem:[#allocation9 + $0x1b0] sm:$0xff]
    %v753 = vld [vmem:[#allocation9 + $0x1b8] sm:$0xff]
    %v754 = vld [vmem:[#allocation9 + $0x1c0] sm:$0xff]
    %v755 = vld [vmem:[#allocation9 + $0x1c8] sm:$0xff]
    %v756 = vld [vmem:[#allocation9 + $0x1d0] sm:$0xff]
    %v757 = vld [vmem:[#allocation9 + $0x1d8] sm:$0xff]
    %v758 = vld [vmem:[#allocation9 + $0x1e0] sm:$0xff]
    %v759 = vld [vmem:[#allocation9 + $0x1e8] sm:$0xff]
    %v760 = vld [vmem:[#allocation9 + $0x1f0] sm:$0xff]
    %v761 = vld [vmem:[#allocation9 + $0x1f8] sm:$0xff]
    %762 = vmatprep.subr.mxu0 %v699
    %763 = vmatpush1.msra.mxu0 %v698
    %764 = vmatprep.subr.mxu0 %v703
    %765 = vmatpush1.msra.mxu0 %v702
    %766 = vmatprep.subr.mxu0 %v707
    %767 = vmatpush1.msra.mxu0 %v706
    %768 = vmatprep.subr.mxu0 %v711
    %769 = vmatpush1.msra.mxu0 %v710
    %770 = vmatprep.subr.mxu0 %v715
    %771 = vmatpush1.msra.mxu0 %v714
    %772 = vmatprep.subr.mxu0 %v719
    %773 = vmatpush1.msra.mxu0 %v718
    %774 = vmatprep.subr.mxu0 %v723
    %775 = vmatpush1.msra.mxu0 %v722
    %776 = vmatprep.subr.mxu0 %v727
    %777 = vmatpush1.msra.mxu0 %v726
    %778 = vmatprep.subr.mxu0 %v731
    %779 = vmatpush1.msra.mxu0 %v730
    %780 = vmatprep.subr.mxu0 %v735
    %781 = vmatpush1.msra.mxu0 %v734
    %782 = vmatprep.subr.mxu0 %v739
    %783 = vmatpush1.msra.mxu0 %v738
    %784 = vmatprep.subr.mxu0 %v743
    %785 = vmatpush1.msra.mxu0 %v742
    %786 = vmatprep.subr.mxu0 %v747
    %787 = vmatpush1.msra.mxu0 %v746
    %788 = vmatprep.subr.mxu0 %v751
    %789 = vmatpush1.msra.mxu0 %v750
    %790 = vmatprep.subr.mxu0 %v755
    %791 = vmatpush1.msra.mxu0 %v754
    %792 = vmatprep.subr.mxu0 %v759
    %793 = vmatpush1.msra.mxu0 %v758
    %794 = vmatprep.subr.mxu0 0.0
    %795 = vmatpush1.msra.mxu0 0.0
    %796 = vmatprep.subr.mxu0 0.0
    %797 = vmatpush1.msra.mxu0 0.0
    %798 = vmatprep.subr.mxu0 0.0
    %799 = vmatpush1.msra.mxu0 0.0
    %800 = vmatprep.subr.mxu0 0.0
    %801 = vmatpush1.msra.mxu0 0.0
    %802 = vmatprep.subr.mxu0 0.0
    %803 = vmatpush1.msra.mxu0 0.0
    %804 = vmatprep.subr.mxu0 0.0
    %805 = vmatpush1.msra.mxu0 0.0
    %806 = vmatprep.subr.mxu0 0.0
    %807 = vmatpush1.msra.mxu0 0.0
    %808 = vmatprep.subr.mxu0 0.0
    %809 = vmatpush1.msra.mxu0 0.0
    %810 = vmatprep.subr.mxu0 0.0
    %811 = vmatpush1.msra.mxu0 0.0
    %812 = vmatprep.subr.mxu0 0.0
    %813 = vmatpush1.msra.mxu0 0.0
    %814 = vmatprep.subr.mxu0 0.0
    %815 = vmatpush1.msra.mxu0 0.0
    %816 = vmatprep.subr.mxu0 0.0
    %817 = vmatpush1.msra.mxu0 0.0
    %818 = vmatprep.subr.mxu0 0.0
    %819 = vmatpush1.msra.mxu0 0.0
    %820 = vmatprep.subr.mxu0 0.0
    %821 = vmatpush1.msra.mxu0 0.0
    %822 = vmatprep.subr.mxu0 0.0
    %823 = vmatpush1.msra.mxu0 0.0
    %824 = vmatprep.subr.mxu0 0.0
    %825 = vmatpush1.msra.mxu0 0.0
    %826 = vmatprep.mubr.f32.mxu0 0.0
    %827 = vmatmul.mubr.f32.gmra.mrb[0].mxu0 %v691
    %v828 = vpop.f32.mrb[0].mxu0
    %v829 = vadd.f32 0.0, %v828
    %v830 = vpop.f32.mrb[0].mxu0
    %v831 = vadd.f32 0.0, %v830
    %832 = vdwg.mxu0
    %833 = vmatprep.subr.mxu0 %v701
    %834 = vmatpush1.msra.mxu0 %v700
    %835 = vmatprep.subr.mxu0 %v705
    %836 = vmatpush1.msra.mxu0 %v704
    %837 = vmatprep.subr.mxu0 %v709
    %838 = vmatpush1.msra.mxu0 %v708
    %839 = vmatprep.subr.mxu0 %v713
    %840 = vmatpush1.msra.mxu0 %v712
    %841 = vmatprep.subr.mxu0 %v717
    %842 = vmatpush1.msra.mxu0 %v716
    %843 = vmatprep.subr.mxu0 %v721
    %844 = vmatpush1.msra.mxu0 %v720
    %845 = vmatprep.subr.mxu0 %v725
    %846 = vmatpush1.msra.mxu0 %v724
    %847 = vmatprep.subr.mxu0 %v729
    %848 = vmatpush1.msra.mxu0 %v728
    %849 = vmatprep.subr.mxu0 %v733
    %850 = vmatpush1.msra.mxu0 %v732
    %851 = vmatprep.subr.mxu0 %v737
    %852 = vmatpush1.msra.mxu0 %v736
    %853 = vmatprep.subr.mxu0 %v741
    %854 = vmatpush1.msra.mxu0 %v740
    %855 = vmatprep.subr.mxu0 %v745
    %856 = vmatpush1.msra.mxu0 %v744
    %857 = vmatprep.subr.mxu0 %v749
    %858 = vmatpush1.msra.mxu0 %v748
    %859 = vmatprep.subr.mxu0 %v753
    %860 = vmatpush1.msra.mxu0 %v752
    %861 = vmatprep.subr.mxu0 %v757
    %862 = vmatpush1.msra.mxu0 %v756
    %863 = vmatprep.subr.mxu0 %v761
    %864 = vmatpush1.msra.mxu0 %v760
    %865 = vmatprep.subr.mxu0 0.0
    %866 = vmatpush1.msra.mxu0 0.0
    %867 = vmatprep.subr.mxu0 0.0
    %868 = vmatpush1.msra.mxu0 0.0
    %869 = vmatprep.subr.mxu0 0.0
    %870 = vmatpush1.msra.mxu0 0.0
    %871 = vmatprep.subr.mxu0 0.0
    %872 = vmatpush1.msra.mxu0 0.0
    %873 = vmatprep.subr.mxu0 0.0
    %874 = vmatpush1.msra.mxu0 0.0
    %875 = vmatprep.subr.mxu0 0.0
    %876 = vmatpush1.msra.mxu0 0.0
    %877 = vmatprep.subr.mxu0 0.0
    %878 = vmatpush1.msra.mxu0 0.0
    %879 = vmatprep.subr.mxu0 0.0
    %880 = vmatpush1.msra.mxu0 0.0
    %881 = vmatprep.subr.mxu0 0.0
    %882 = vmatpush1.msra.mxu0 0.0
    %883 = vmatprep.subr.mxu0 0.0
    %884 = vmatpush1.msra.mxu0 0.0
    %885 = vmatprep.subr.mxu0 0.0
    %886 = vmatpush1.msra.mxu0 0.0
    %887 = vmatprep.subr.mxu0 0.0
    %888 = vmatpush1.msra.mxu0 0.0
    %889 = vmatprep.subr.mxu0 0.0
    %890 = vmatpush1.msra.mxu0 0.0
    %891 = vmatprep.subr.mxu0 0.0
    %892 = vmatpush1.msra.mxu0 0.0
    %893 = vmatprep.subr.mxu0 0.0
    %894 = vmatpush1.msra.mxu0 0.0
    %895 = vmatprep.subr.mxu0 0.0
    %896 = vmatpush1.msra.mxu0 0.0
    %897 = vmatprep.mubr.f32.mxu0 0.0
    %898 = vmatmul.mubr.f32.gmra.mrb[0].mxu0 %v691
    %v899 = vpop.f32.mrb[0].mxu0
    %v900 = vadd.f32 0.0, %v899
    %v901 = vpop.f32.mrb[0].mxu0
    %v902 = vadd.f32 0.0, %v901
    %903 = vdwg.mxu0
    %v904 = vadd.f32 %v694, %v829
    %v905 = vadd.f32 %v695, %v831
    %v906 = vadd.f32 %v696, %v900
    %v907 = vadd.f32 %v697, %v902
    %v908 = vmul.f32 %v904, 0.5
    %v909 = vtanh.pop %v908
    %v910 = vadd.f32 %v909, 1.0
    %v911 = vmul.f32 %v910, 0.5
    %v912 = vmul.f32 %v905, 0.5
    %v913 = vtanh.pop %v912
    %v914 = vadd.f32 %v913, 1.0
    %v915 = vmul.f32 %v914, 0.5
    %v916 = vtanh.pop %v906
    %v917 = vmul.f32 %v907, 0.5
    %v918 = vtanh.pop %v917
    %v919 = vadd.f32 %v918, 1.0
    %v920 = vmul.f32 %v919, 0.5
    %v921 = vmul.f32 %v915, %v689
    %v922 = vmul.f32 %v911, %v916
    %v923 = vadd.f32 %v921, %v922
    %v924 = vtanh.pop %v923
    %v925 = vmul.f32 %v920, %v924
    %s926 = scalar_lea.vmem [#allocation5], 8
    %927 = vst [vmem:[%s926] sm:$0xff] %v925
    %s928 = scalar_lea.vmem [#allocation4], 64
    %v929 = vld [vmem:[%s928] sm:$0xff]
    %v930 = vld [vmem:[%s928 + $0x8] sm:$0xff]
    %v931 = vld [vmem:[%s928 + $0x10] sm:$0xff]
    %v932 = vld [vmem:[%s928 + $0x18] sm:$0xff]
    %v933 = vld [vmem:[#allocation9] sm:$0xff]
    %v934 = vld [vmem:[#allocation9 + $0x8] sm:$0xff]
    %v935 = vld [vmem:[#allocation9 + $0x10] sm:$0xff]
    %v936 = vld [vmem:[#allocation9 + $0x18] sm:$0xff]
    %v937 = vld [vmem:[#allocation9 + $0x20] sm:$0xff]
    %v938 = vld [vmem:[#allocation9 + $0x28] sm:$0xff]
    %v939 = vld [vmem:[#allocation9 + $0x30] sm:$0xff]
    %v940 = vld [vmem:[#allocation9 + $0x38] sm:$0xff]
    %v941 = vld [vmem:[#allocation9 + $0x40] sm:$0xff]
    %v942 = vld [vmem:[#allocation9 + $0x48] sm:$0xff]
    %v943 = vld [vmem:[#allocation9 + $0x50] sm:$0xff]
    %v944 = vld [vmem:[#allocation9 + $0x58] sm:$0xff]
    %v945 = vld [vmem:[#allocation9 + $0x60] sm:$0xff]
    %v946 = vld [vmem:[#allocation9 + $0x68] sm:$0xff]
    %v947 = vld [vmem:[#allocation9 + $0x70] sm:$0xff]
    %v948 = vld [vmem:[#allocation9 + $0x78] sm:$0xff]
    %v949 = vld [vmem:[#allocation9 + $0x80] sm:$0xff]
    %v950 = vld [vmem:[#allocation9 + $0x88] sm:$0xff]
    %v951 = vld [vmem:[#allocation9 + $0x90] sm:$0xff]
    %v952 = vld [vmem:[#allocation9 + $0x98] sm:$0xff]
    %v953 = vld [vmem:[#allocation9 + $0xa0] sm:$0xff]
    %v954 = vld [vmem:[#allocation9 + $0xa8] sm:$0xff]
    %v955 = vld [vmem:[#allocation9 + $0xb0] sm:$0xff]
    %v956 = vld [vmem:[#allocation9 + $0xb8] sm:$0xff]
    %v957 = vld [vmem:[#allocation9 + $0xc0] sm:$0xff]
    %v958 = vld [vmem:[#allocation9 + $0xc8] sm:$0xff]
    %v959 = vld [vmem:[#allocation9 + $0xd0] sm:$0xff]
    %v960 = vld [vmem:[#allocation9 + $0xd8] sm:$0xff]
    %v961 = vld [vmem:[#allocation9 + $0xe0] sm:$0xff]
    %v962 = vld [vmem:[#allocation9 + $0xe8] sm:$0xff]
    %v963 = vld [vmem:[#allocation9 + $0xf0] sm:$0xff]
    %v964 = vld [vmem:[#allocation9 + $0xf8] sm:$0xff]
    %v965 = vld [vmem:[#allocation9 + $0x100] sm:$0xff]
    %v966 = vld [vmem:[#allocation9 + $0x108] sm:$0xff]
    %v967 = vld [vmem:[#allocation9 + $0x110] sm:$0xff]
    %v968 = vld [vmem:[#allocation9 + $0x118] sm:$0xff]
    %v969 = vld [vmem:[#allocation9 + $0x120] sm:$0xff]
    %v970 = vld [vmem:[#allocation9 + $0x128] sm:$0xff]
    %v971 = vld [vmem:[#allocation9 + $0x130] sm:$0xff]
    %v972 = vld [vmem:[#allocation9 + $0x138] sm:$0xff]
    %v973 = vld [vmem:[#allocation9 + $0x140] sm:$0xff]
    %v974 = vld [vmem:[#allocation9 + $0x148] sm:$0xff]
    %v975 = vld [vmem:[#allocation9 + $0x150] sm:$0xff]
    %v976 = vld [vmem:[#allocation9 + $0x158] sm:$0xff]
    %v977 = vld [vmem:[#allocation9 + $0x160] sm:$0xff]
    %v978 = vld [vmem:[#allocation9 + $0x168] sm:$0xff]
    %v979 = vld [vmem:[#allocation9 + $0x170] sm:$0xff]
    %v980 = vld [vmem:[#allocation9 + $0x178] sm:$0xff]
    %v981 = vld [vmem:[#allocation9 + $0x180] sm:$0xff]
    %v982 = vld [vmem:[#allocation9 + $0x188] sm:$0xff]
    %v983 = vld [vmem:[#allocation9 + $0x190] sm:$0xff]
    %v984 = vld [vmem:[#allocation9 + $0x198] sm:$0xff]
    %v985 = vld [vmem:[#allocation9 + $0x1a0] sm:$0xff]
    %v986 = vld [vmem:[#allocation9 + $0x1a8] sm:$0xff]
    %v987 = vld [vmem:[#allocation9 + $0x1b0] sm:$0xff]
    %v988 = vld [vmem:[#allocation9 + $0x1b8] sm:$0xff]
    %v989 = vld [vmem:[#allocation9 + $0x1c0] sm:$0xff]
    %v990 = vld [vmem:[#allocation9 + $0x1c8] sm:$0xff]
    %v991 = vld [vmem:[#allocation9 + $0x1d0] sm:$0xff]
    %v992 = vld [vmem:[#allocation9 + $0x1d8] sm:$0xff]
    %v993 = vld [vmem:[#allocation9 + $0x1e0] sm:$0xff]
    %v994 = vld [vmem:[#allocation9 + $0x1e8] sm:$0xff]
    %v995 = vld [vmem:[#allocation9 + $0x1f0] sm:$0xff]
    %v996 = vld [vmem:[#allocation9 + $0x1f8] sm:$0xff]
    %997 = vmatprep.subr.mxu0 %v934
    %998 = vmatpush1.msra.mxu0 %v933
    %999 = vmatprep.subr.mxu0 %v938
    %1000 = vmatpush1.msra.mxu0 %v937
    %1001 = vmatprep.subr.mxu0 %v942
    %1002 = vmatpush1.msra.mxu0 %v941
    %1003 = vmatprep.subr.mxu0 %v946
    %1004 = vmatpush1.msra.mxu0 %v945
    %1005 = vmatprep.subr.mxu0 %v950
    %1006 = vmatpush1.msra.mxu0 %v949
    %1007 = vmatprep.subr.mxu0 %v954
    %1008 = vmatpush1.msra.mxu0 %v953
    %1009 = vmatprep.subr.mxu0 %v958
    %1010 = vmatpush1.msra.mxu0 %v957
    %1011 = vmatprep.subr.mxu0 %v962
    %1012 = vmatpush1.msra.mxu0 %v961
    %1013 = vmatprep.subr.mxu0 %v966
    %1014 = vmatpush1.msra.mxu0 %v965
    %1015 = vmatprep.subr.mxu0 %v970
    %1016 = vmatpush1.msra.mxu0 %v969
    %1017 = vmatprep.subr.mxu0 %v974
    %1018 = vmatpush1.msra.mxu0 %v973
    %1019 = vmatprep.subr.mxu0 %v978
    %1020 = vmatpush1.msra.mxu0 %v977
    %1021 = vmatprep.subr.mxu0 %v982
    %1022 = vmatpush1.msra.mxu0 %v981
    %1023 = vmatprep.subr.mxu0 %v986
    %1024 = vmatpush1.msra.mxu0 %v985
    %1025 = vmatprep.subr.mxu0 %v990
    %1026 = vmatpush1.msra.mxu0 %v989
    %1027 = vmatprep.subr.mxu0 %v994
    %1028 = vmatpush1.msra.mxu0 %v993
    %1029 = vmatprep.subr.mxu0 0.0
    %1030 = vmatpush1.msra.mxu0 0.0
    %1031 = vmatprep.subr.mxu0 0.0
    %1032 = vmatpush1.msra.mxu0 0.0
    %1033 = vmatprep.subr.mxu0 0.0
    %1034 = vmatpush1.msra.mxu0 0.0
    %1035 = vmatprep.subr.mxu0 0.0
    %1036 = vmatpush1.msra.mxu0 0.0
    %1037 = vmatprep.subr.mxu0 0.0
    %1038 = vmatpush1.msra.mxu0 0.0
    %1039 = vmatprep.subr.mxu0 0.0
    %1040 = vmatpush1.msra.mxu0 0.0
    %1041 = vmatprep.subr.mxu0 0.0
    %1042 = vmatpush1.msra.mxu0 0.0
    %1043 = vmatprep.subr.mxu0 0.0
    %1044 = vmatpush1.msra.mxu0 0.0
    %1045 = vmatprep.subr.mxu0 0.0
    %1046 = vmatpush1.msra.mxu0 0.0
    %1047 = vmatprep.subr.mxu0 0.0
    %1048 = vmatpush1.msra.mxu0 0.0
    %1049 = vmatprep.subr.mxu0 0.0
    %1050 = vmatpush1.msra.mxu0 0.0
    %1051 = vmatprep.subr.mxu0 0.0
    %1052 = vmatpush1.msra.mxu0 0.0
    %1053 = vmatprep.subr.mxu0 0.0
    %1054 = vmatpush1.msra.mxu0 0.0
    %1055 = vmatprep.subr.mxu0 0.0
    %1056 = vmatpush1.msra.mxu0 0.0
    %1057 = vmatprep.subr.mxu0 0.0
    %1058 = vmatpush1.msra.mxu0 0.0
    %1059 = vmatprep.subr.mxu0 0.0
    %1060 = vmatpush1.msra.mxu0 0.0
    %1061 = vmatprep.mubr.f32.mxu0 0.0
    %1062 = vmatmul.mubr.f32.gmra.mrb[0].mxu0 %v925
    %v1063 = vpop.f32.mrb[0].mxu0
    %v1064 = vadd.f32 0.0, %v1063
    %v1065 = vpop.f32.mrb[0].mxu0
    %v1066 = vadd.f32 0.0, %v1065
    %1067 = vdwg.mxu0
    %1068 = vmatprep.subr.mxu0 %v936
    %1069 = vmatpush1.msra.mxu0 %v935
    %1070 = vmatprep.subr.mxu0 %v940
    %1071 = vmatpush1.msra.mxu0 %v939
    %1072 = vmatprep.subr.mxu0 %v944
    %1073 = vmatpush1.msra.mxu0 %v943
    %1074 = vmatprep.subr.mxu0 %v948
    %1075 = vmatpush1.msra.mxu0 %v947
    %1076 = vmatprep.subr.mxu0 %v952
    %1077 = vmatpush1.msra.mxu0 %v951
    %1078 = vmatprep.subr.mxu0 %v956
    %1079 = vmatpush1.msra.mxu0 %v955
    %1080 = vmatprep.subr.mxu0 %v960
    %1081 = vmatpush1.msra.mxu0 %v959
    %1082 = vmatprep.subr.mxu0 %v964
    %1083 = vmatpush1.msra.mxu0 %v963
    %1084 = vmatprep.subr.mxu0 %v968
    %1085 = vmatpush1.msra.mxu0 %v967
    %1086 = vmatprep.subr.mxu0 %v972
    %1087 = vmatpush1.msra.mxu0 %v971
    %1088 = vmatprep.subr.mxu0 %v976
    %1089 = vmatpush1.msra.mxu0 %v975
    %1090 = vmatprep.subr.mxu0 %v980
    %1091 = vmatpush1.msra.mxu0 %v979
    %1092 = vmatprep.subr.mxu0 %v984
    %1093 = vmatpush1.msra.mxu0 %v983
    %1094 = vmatprep.subr.mxu0 %v988
    %1095 = vmatpush1.msra.mxu0 %v987
    %1096 = vmatprep.subr.mxu0 %v992
    %1097 = vmatpush1.msra.mxu0 %v991
    %1098 = vmatprep.subr.mxu0 %v996
    %1099 = vmatpush1.msra.mxu0 %v995
    %1100 = vmatprep.subr.mxu0 0.0
    %1101 = vmatpush1.msra.mxu0 0.0
    %1102 = vmatprep.subr.mxu0 0.0
    %1103 = vmatpush1.msra.mxu0 0.0
    %1104 = vmatprep.subr.mxu0 0.0
    %1105 = vmatpush1.msra.mxu0 0.0
    %1106 = vmatprep.subr.mxu0 0.0
    %1107 = vmatpush1.msra.mxu0 0.0
    %1108 = vmatprep.subr.mxu0 0.0
    %1109 = vmatpush1.msra.mxu0 0.0
    %1110 = vmatprep.subr.mxu0 0.0
    %1111 = vmatpush1.msra.mxu0 0.0
    %1112 = vmatprep.subr.mxu0 0.0
    %1113 = vmatpush1.msra.mxu0 0.0
    %1114 = vmatprep.subr.mxu0 0.0
    %1115 = vmatpush1.msra.mxu0 0.0
    %1116 = vmatprep.subr.mxu0 0.0
    %1117 = vmatpush1.msra.mxu0 0.0
    %1118 = vmatprep.subr.mxu0 0.0
    %1119 = vmatpush1.msra.mxu0 0.0
    %1120 = vmatprep.subr.mxu0 0.0
    %1121 = vmatpush1.msra.mxu0 0.0
    %1122 = vmatprep.subr.mxu0 0.0
    %1123 = vmatpush1.msra.mxu0 0.0
    %1124 = vmatprep.subr.mxu0 0.0
    %1125 = vmatpush1.msra.mxu0 0.0
    %1126 = vmatprep.subr.mxu0 0.0
    %1127 = vmatpush1.msra.mxu0 0.0
    %1128 = vmatprep.subr.mxu0 0.0
    %1129 = vmatpush1.msra.mxu0 0.0
    %1130 = vmatprep.subr.mxu0 0.0
    %1131 = vmatpush1.msra.mxu0 0.0
    %1132 = vmatprep.mubr.f32.mxu0 0.0
    %1133 = vmatmul.mubr.f32.gmra.mrb[0].mxu0 %v925
    %v1134 = vpop.f32.mrb[0].mxu0
    %v1135 = vadd.f32 0.0, %v1134
    %v1136 = vpop.f32.mrb[0].mxu0
    %v1137 = vadd.f32 0.0, %v1136
    %1138 = vdwg.mxu0
    %v1139 = vadd.f32 %v929, %v1064
    %v1140 = vadd.f32 %v930, %v1066
    %v1141 = vadd.f32 %v931, %v1135
    %v1142 = vadd.f32 %v932, %v1137
    %v1143 = vmul.f32 %v1139, 0.5
    %v1144 = vtanh.pop %v1143
    %v1145 = vadd.f32 %v1144, 1.0
    %v1146 = vmul.f32 %v1145, 0.5
    %v1147 = vmul.f32 %v1140, 0.5
    %v1148 = vtanh.pop %v1147
    %v1149 = vadd.f32 %v1148, 1.0
    %v1150 = vmul.f32 %v1149, 0.5
    %v1151 = vtanh.pop %v1141
    %v1152 = vmul.f32 %v1142, 0.5
    %v1153 = vtanh.pop %v1152
    %v1154 = vadd.f32 %v1153, 1.0
    %v1155 = vmul.f32 %v1154, 0.5
    %v1156 = vmul.f32 %v1150, %v923
    %v1157 = vmul.f32 %v1146, %v1151
    %v1158 = vadd.f32 %v1156, %v1157
    %v1159 = vtanh.pop %v1158
    %v1160 = vmul.f32 %v1155, %v1159
    %s1161 = scalar_lea.vmem [#allocation5], 16
    %1162 = vst [vmem:[%s1161] sm:$0xff] %v1160
    %s1163 = scalar_lea.vmem [#allocation4], 96
    %v1164 = vld [vmem:[%s1163] sm:$0xff]
    %v1165 = vld [vmem:[%s1163 + $0x8] sm:$0xff]
    %v1166 = vld [vmem:[%s1163 + $0x10] sm:$0xff]
    %v1167 = vld [vmem:[%s1163 + $0x18] sm:$0xff]
    %v1168 = vld [vmem:[#allocation9] sm:$0xff]
    %v1169 = vld [vmem:[#allocation9 + $0x8] sm:$0xff]
    %v1170 = vld [vmem:[#allocation9 + $0x10] sm:$0xff]
    %v1171 = vld [vmem:[#allocation9 + $0x18] sm:$0xff]
    %v1172 = vld [vmem:[#allocation9 + $0x20] sm:$0xff]
    %v1173 = vld [vmem:[#allocation9 + $0x28] sm:$0xff]
    %v1174 = vld [vmem:[#allocation9 + $0x30] sm:$0xff]
    %v1175 = vld [vmem:[#allocation9 + $0x38] sm:$0xff]
    %v1176 = vld [vmem:[#allocation9 + $0x40] sm:$0xff]
    %v1177 = vld [vmem:[#allocation9 + $0x48] sm:$0xff]
    %v1178 = vld [vmem:[#allocation9 + $0x50] sm:$0xff]
    %v1179 = vld [vmem:[#allocation9 + $0x58] sm:$0xff]
    %v1180 = vld [vmem:[#allocation9 + $0x60] sm:$0xff]
    %v1181 = vld [vmem:[#allocation9 + $0x68] sm:$0xff]
    %v1182 = vld [vmem:[#allocation9 + $0x70] sm:$0xff]
    %v1183 = vld [vmem:[#allocation9 + $0x78] sm:$0xff]
    %v1184 = vld [vmem:[#allocation9 + $0x80] sm:$0xff]
    %v1185 = vld [vmem:[#allocation9 + $0x88] sm:$0xff]
    %v1186 = vld [vmem:[#allocation9 + $0x90] sm:$0xff]
    %v1187 = vld [vmem:[#allocation9 + $0x98] sm:$0xff]
    %v1188 = vld [vmem:[#allocation9 + $0xa0] sm:$0xff]
    %v1189 = vld [vmem:[#allocation9 + $0xa8] sm:$0xff]
    %v1190 = vld [vmem:[#allocation9 + $0xb0] sm:$0xff]
    %v1191 = vld [vmem:[#allocation9 + $0xb8] sm:$0xff]
    %v1192 = vld [vmem:[#allocation9 + $0xc0] sm:$0xff]
    %v1193 = vld [vmem:[#allocation9 + $0xc8] sm:$0xff]
    %v1194 = vld [vmem:[#allocation9 + $0xd0] sm:$0xff]
    %v1195 = vld [vmem:[#allocation9 + $0xd8] sm:$0xff]
    %v1196 = vld [vmem:[#allocation9 + $0xe0] sm:$0xff]
    %v1197 = vld [vmem:[#allocation9 + $0xe8] sm:$0xff]
    %v1198 = vld [vmem:[#allocation9 + $0xf0] sm:$0xff]
    %v1199 = vld [vmem:[#allocation9 + $0xf8] sm:$0xff]
    %v1200 = vld [vmem:[#allocation9 + $0x100] sm:$0xff]
    %v1201 = vld [vmem:[#allocation9 + $0x108] sm:$0xff]
    %v1202 = vld [vmem:[#allocation9 + $0x110] sm:$0xff]
    %v1203 = vld [vmem:[#allocation9 + $0x118] sm:$0xff]
    %v1204 = vld [vmem:[#allocation9 + $0x120] sm:$0xff]
    %v1205 = vld [vmem:[#allocation9 + $0x128] sm:$0xff]
    %v1206 = vld [vmem:[#allocation9 + $0x130] sm:$0xff]
    %v1207 = vld [vmem:[#allocation9 + $0x138] sm:$0xff]
    %v1208 = vld [vmem:[#allocation9 + $0x140] sm:$0xff]
    %v1209 = vld [vmem:[#allocation9 + $0x148] sm:$0xff]
    %v1210 = vld [vmem:[#allocation9 + $0x150] sm:$0xff]
    %v1211 = vld [vmem:[#allocation9 + $0x158] sm:$0xff]
    %v1212 = vld [vmem:[#allocation9 + $0x160] sm:$0xff]
    %v1213 = vld [vmem:[#allocation9 + $0x168] sm:$0xff]
    %v1214 = vld [vmem:[#allocation9 + $0x170] sm:$0xff]
    %v1215 = vld [vmem:[#allocation9 + $0x178] sm:$0xff]
    %v1216 = vld [vmem:[#allocation9 + $0x180] sm:$0xff]
    %v1217 = vld [vmem:[#allocation9 + $0x188] sm:$0xff]
    %v1218 = vld [vmem:[#allocation9 + $0x190] sm:$0xff]
    %v1219 = vld [vmem:[#allocation9 + $0x198] sm:$0xff]
    %v1220 = vld [vmem:[#allocation9 + $0x1a0] sm:$0xff]
    %v1221 = vld [vmem:[#allocation9 + $0x1a8] sm:$0xff]
    %v1222 = vld [vmem:[#allocation9 + $0x1b0] sm:$0xff]
    %v1223 = vld [vmem:[#allocation9 + $0x1b8] sm:$0xff]
    %v1224 = vld [vmem:[#allocation9 + $0x1c0] sm:$0xff]
    %v1225 = vld [vmem:[#allocation9 + $0x1c8] sm:$0xff]
    %v1226 = vld [vmem:[#allocation9 + $0x1d0] sm:$0xff]
    %v1227 = vld [vmem:[#allocation9 + $0x1d8] sm:$0xff]
    %v1228 = vld [vmem:[#allocation9 + $0x1e0] sm:$0xff]
    %v1229 = vld [vmem:[#allocation9 + $0x1e8] sm:$0xff]
    %v1230 = vld [vmem:[#allocation9 + $0x1f0] sm:$0xff]
    %v1231 = vld [vmem:[#allocation9 + $0x1f8] sm:$0xff]
    %1232 = vmatprep.subr.mxu0 %v1169
    %1233 = vmatpush1.msra.mxu0 %v1168
    %1234 = vmatprep.subr.mxu0 %v1173
    %1235 = vmatpush1.msra.mxu0 %v1172
    %1236 = vmatprep.subr.mxu0 %v1177
    %1237 = vmatpush1.msra.mxu0 %v1176
    %1238 = vmatprep.subr.mxu0 %v1181
    %1239 = vmatpush1.msra.mxu0 %v1180
    %1240 = vmatprep.subr.mxu0 %v1185
    %1241 = vmatpush1.msra.mxu0 %v1184
    %1242 = vmatprep.subr.mxu0 %v1189
    %1243 = vmatpush1.msra.mxu0 %v1188
    %1244 = vmatprep.subr.mxu0 %v1193
    %1245 = vmatpush1.msra.mxu0 %v1192
    %1246 = vmatprep.subr.mxu0 %v1197
    %1247 = vmatpush1.msra.mxu0 %v1196
    %1248 = vmatprep.subr.mxu0 %v1201
    %1249 = vmatpush1.msra.mxu0 %v1200
    %1250 = vmatprep.subr.mxu0 %v1205
    %1251 = vmatpush1.msra.mxu0 %v1204
    %1252 = vmatprep.subr.mxu0 %v1209
    %1253 = vmatpush1.msra.mxu0 %v1208
    %1254 = vmatprep.subr.mxu0 %v1213
    %1255 = vmatpush1.msra.mxu0 %v1212
    %1256 = vmatprep.subr.mxu0 %v1217
    %1257 = vmatpush1.msra.mxu0 %v1216
    %1258 = vmatprep.subr.mxu0 %v1221
    %1259 = vmatpush1.msra.mxu0 %v1220
    %1260 = vmatprep.subr.mxu0 %v1225
    %1261 = vmatpush1.msra.mxu0 %v1224
    %1262 = vmatprep.subr.mxu0 %v1229
    %1263 = vmatpush1.msra.mxu0 %v1228
    %1264 = vmatprep.subr.mxu0 0.0
    %1265 = vmatpush1.msra.mxu0 0.0
    %1266 = vmatprep.subr.mxu0 0.0
    %1267 = vmatpush1.msra.mxu0 0.0
    %1268 = vmatprep.subr.mxu0 0.0
    %1269 = vmatpush1.msra.mxu0 0.0
    %1270 = vmatprep.subr.mxu0 0.0
    %1271 = vmatpush1.msra.mxu0 0.0
    %1272 = vmatprep.subr.mxu0 0.0
    %1273 = vmatpush1.msra.mxu0 0.0
    %1274 = vmatprep.subr.mxu0 0.0
    %1275 = vmatpush1.msra.mxu0 0.0
    %1276 = vmatprep.subr.mxu0 0.0
    %1277 = vmatpush1.msra.mxu0 0.0
    %1278 = vmatprep.subr.mxu0 0.0
    %1279 = vmatpush1.msra.mxu0 0.0
    %1280 = vmatprep.subr.mxu0 0.0
    %1281 = vmatpush1.msra.mxu0 0.0
    %1282 = vmatprep.subr.mxu0 0.0
    %1283 = vmatpush1.msra.mxu0 0.0
    %1284 = vmatprep.subr.mxu0 0.0
    %1285 = vmatpush1.msra.mxu0 0.0
    %1286 = vmatprep.subr.mxu0 0.0
    %1287 = vmatpush1.msra.mxu0 0.0
    %1288 = vmatprep.subr.mxu0 0.0
    %1289 = vmatpush1.msra.mxu0 0.0
    %1290 = vmatprep.subr.mxu0 0.0
    %1291 = vmatpush1.msra.mxu0 0.0
    %1292 = vmatprep.subr.mxu0 0.0
    %1293 = vmatpush1.msra.mxu0 0.0
    %1294 = vmatprep.subr.mxu0 0.0
    %1295 = vmatpush1.msra.mxu0 0.0
    %1296 = vmatprep.mubr.f32.mxu0 0.0
    %1297 = vmatmul.mubr.f32.gmra.mrb[0].mxu0 %v1160
    %v1298 = vpop.f32.mrb[0].mxu0
    %v1299 = vadd.f32 0.0, %v1298
    %v1300 = vpop.f32.mrb[0].mxu0
    %v1301 = vadd.f32 0.0, %v1300
    %1302 = vdwg.mxu0
    %1303 = vmatprep.subr.mxu0 %v1171
    %1304 = vmatpush1.msra.mxu0 %v1170
    %1305 = vmatprep.subr.mxu0 %v1175
    %1306 = vmatpush1.msra.mxu0 %v1174
    %1307 = vmatprep.subr.mxu0 %v1179
    %1308 = vmatpush1.msra.mxu0 %v1178
    %1309 = vmatprep.subr.mxu0 %v1183
    %1310 = vmatpush1.msra.mxu0 %v1182
    %1311 = vmatprep.subr.mxu0 %v1187
    %1312 = vmatpush1.msra.mxu0 %v1186
    %1313 = vmatprep.subr.mxu0 %v1191
    %1314 = vmatpush1.msra.mxu0 %v1190
    %1315 = vmatprep.subr.mxu0 %v1195
    %1316 = vmatpush1.msra.mxu0 %v1194
    %1317 = vmatprep.subr.mxu0 %v1199
    %1318 = vmatpush1.msra.mxu0 %v1198
    %1319 = vmatprep.subr.mxu0 %v1203
    %1320 = vmatpush1.msra.mxu0 %v1202
    %1321 = vmatprep.subr.mxu0 %v1207
    %1322 = vmatpush1.msra.mxu0 %v1206
    %1323 = vmatprep.subr.mxu0 %v1211
    %1324 = vmatpush1.msra.mxu0 %v1210
    %1325 = vmatprep.subr.mxu0 %v1215
    %1326 = vmatpush1.msra.mxu0 %v1214
    %1327 = vmatprep.subr.mxu0 %v1219
    %1328 = vmatpush1.msra.mxu0 %v1218
    %1329 = vmatprep.subr.mxu0 %v1223
    %1330 = vmatpush1.msra.mxu0 %v1222
    %1331 = vmatprep.subr.mxu0 %v1227
    %1332 = vmatpush1.msra.mxu0 %v1226
    %1333 = vmatprep.subr.mxu0 %v1231
    %1334 = vmatpush1.msra.mxu0 %v1230
    %1335 = vmatprep.subr.mxu0 0.0
    %1336 = vmatpush1.msra.mxu0 0.0
    %1337 = vmatprep.subr.mxu0 0.0
    %1338 = vmatpush1.msra.mxu0 0.0
    %1339 = vmatprep.subr.mxu0 0.0
    %1340 = vmatpush1.msra.mxu0 0.0
    %1341 = vmatprep.subr.mxu0 0.0
    %1342 = vmatpush1.msra.mxu0 0.0
    %1343 = vmatprep.subr.mxu0 0.0
    %1344 = vmatpush1.msra.mxu0 0.0
    %1345 = vmatprep.subr.mxu0 0.0
    %1346 = vmatpush1.msra.mxu0 0.0
    %1347 = vmatprep.subr.mxu0 0.0
    %1348 = vmatpush1.msra.mxu0 0.0
    %1349 = vmatprep.subr.mxu0 0.0
    %1350 = vmatpush1.msra.mxu0 0.0
    %1351 = vmatprep.subr.mxu0 0.0
    %1352 = vmatpush1.msra.mxu0 0.0
    %1353 = vmatprep.subr.mxu0 0.0
    %1354 = vmatpush1.msra.mxu0 0.0
    %1355 = vmatprep.subr.mxu0 0.0
    %1356 = vmatpush1.msra.mxu0 0.0
    %1357 = vmatprep.subr.mxu0 0.0
    %1358 = vmatpush1.msra.mxu0 0.0
    %1359 = vmatprep.subr.mxu0 0.0
    %1360 = vmatpush1.msra.mxu0 0.0
    %1361 = vmatprep.subr.mxu0 0.0
    %1362 = vmatpush1.msra.mxu0 0.0
    %1363 = vmatprep.subr.mxu0 0.0
    %1364 = vmatpush1.msra.mxu0 0.0
    %1365 = vmatprep.subr.mxu0 0.0
    %1366 = vmatpush1.msra.mxu0 0.0
    %1367 = vmatprep.mubr.f32.mxu0 0.0
    %1368 = vmatmul.mubr.f32.gmra.mrb[0].mxu0 %v1160
    %v1369 = vpop.f32.mrb[0].mxu0
    %v1370 = vadd.f32 0.0, %v1369
    %v1371 = vpop.f32.mrb[0].mxu0
    %v1372 = vadd.f32 0.0, %v1371
    %1373 = vdwg.mxu0
    %v1374 = vadd.f32 %v1164, %v1299
    %v1375 = vadd.f32 %v1165, %v1301
    %v1376 = vadd.f32 %v1166, %v1370
    %v1377 = vadd.f32 %v1167, %v1372
    %v1378 = vmul.f32 %v1374, 0.5
    %v1379 = vtanh.pop %v1378
    %v1380 = vadd.f32 %v1379, 1.0
    %v1381 = vmul.f32 %v1380, 0.5
    %v1382 = vmul.f32 %v1375, 0.5
    %v1383 = vtanh.pop %v1382
    %v1384 = vadd.f32 %v1383, 1.0
    %v1385 = vmul.f32 %v1384, 0.5
    %v1386 = vtanh.pop %v1376
    %v1387 = vmul.f32 %v1377, 0.5
    %v1388 = vtanh.pop %v1387
    %v1389 = vadd.f32 %v1388, 1.0
    %v1390 = vmul.f32 %v1389, 0.5
    %v1391 = vmul.f32 %v1385, %v1158
    %v1392 = vmul.f32 %v1381, %v1386
    %v1393 = vadd.f32 %v1391, %v1392
    %v1394 = vtanh.pop %v1393
    %v1395 = vmul.f32 %v1390, %v1394
    %s1396 = scalar_lea.vmem [#allocation5], 24
    %1397 = vst [vmem:[%s1396] sm:$0xff] %v1395
    %s1398 = scalar_lea.vmem [#allocation4], 128
    %v1399 = vld [vmem:[%s1398] sm:$0xff]
    %v1400 = vld [vmem:[%s1398 + $0x8] sm:$0xff]
    %v1401 = vld [vmem:[%s1398 + $0x10] sm:$0xff]
    %v1402 = vld [vmem:[%s1398 + $0x18] sm:$0xff]
    %v1403 = vld [vmem:[#allocation9] sm:$0xff]
    %v1404 = vld [vmem:[#allocation9 + $0x8] sm:$0xff]
    %v1405 = vld [vmem:[#allocation9 + $0x10] sm:$0xff]
    %v1406 = vld [vmem:[#allocation9 + $0x18] sm:$0xff]
    %v1407 = vld [vmem:[#allocation9 + $0x20] sm:$0xff]
    %v1408 = vld [vmem:[#allocation9 + $0x28] sm:$0xff]
    %v1409 = vld [vmem:[#allocation9 + $0x30] sm:$0xff]
    %v1410 = vld [vmem:[#allocation9 + $0x38] sm:$0xff]
    %v1411 = vld [vmem:[#allocation9 + $0x40] sm:$0xff]
    %v1412 = vld [vmem:[#allocation9 + $0x48] sm:$0xff]
    %v1413 = vld [vmem:[#allocation9 + $0x50] sm:$0xff]
    %v1414 = vld [vmem:[#allocation9 + $0x58] sm:$0xff]
    %v1415 = vld [vmem:[#allocation9 + $0x60] sm:$0xff]
    %v1416 = vld [vmem:[#allocation9 + $0x68] sm:$0xff]
    %v1417 = vld [vmem:[#allocation9 + $0x70] sm:$0xff]
    %v1418 = vld [vmem:[#allocation9 + $0x78] sm:$0xff]
    %v1419 = vld [vmem:[#allocation9 + $0x80] sm:$0xff]
    %v1420 = vld [vmem:[#allocation9 + $0x88] sm:$0xff]
    %v1421 = vld [vmem:[#allocation9 + $0x90] sm:$0xff]
    %v1422 = vld [vmem:[#allocation9 + $0x98] sm:$0xff]
    %v1423 = vld [vmem:[#allocation9 + $0xa0] sm:$0xff]
    %v1424 = vld [vmem:[#allocation9 + $0xa8] sm:$0xff]
    %v1425 = vld [vmem:[#allocation9 + $0xb0] sm:$0xff]
    %v1426 = vld [vmem:[#allocation9 + $0xb8] sm:$0xff]
    %v1427 = vld [vmem:[#allocation9 + $0xc0] sm:$0xff]
    %v1428 = vld [vmem:[#allocation9 + $0xc8] sm:$0xff]
    %v1429 = vld [vmem:[#allocation9 + $0xd0] sm:$0xff]
    %v1430 = vld [vmem:[#allocation9 + $0xd8] sm:$0xff]
    %v1431 = vld [vmem:[#allocation9 + $0xe0] sm:$0xff]
    %v1432 = vld [vmem:[#allocation9 + $0xe8] sm:$0xff]
    %v1433 = vld [vmem:[#allocation9 + $0xf0] sm:$0xff]
    %v1434 = vld [vmem:[#allocation9 + $0xf8] sm:$0xff]
    %v1435 = vld [vmem:[#allocation9 + $0x100] sm:$0xff]
    %v1436 = vld [vmem:[#allocation9 + $0x108] sm:$0xff]
    %v1437 = vld [vmem:[#allocation9 + $0x110] sm:$0xff]
    %v1438 = vld [vmem:[#allocation9 + $0x118] sm:$0xff]
    %v1439 = vld [vmem:[#allocation9 + $0x120] sm:$0xff]
    %v1440 = vld [vmem:[#allocation9 + $0x128] sm:$0xff]
    %v1441 = vld [vmem:[#allocation9 + $0x130] sm:$0xff]
    %v1442 = vld [vmem:[#allocation9 + $0x138] sm:$0xff]
    %v1443 = vld [vmem:[#allocation9 + $0x140] sm:$0xff]
    %v1444 = vld [vmem:[#allocation9 + $0x148] sm:$0xff]
    %v1445 = vld [vmem:[#allocation9 + $0x150] sm:$0xff]
    %v1446 = vld [vmem:[#allocation9 + $0x158] sm:$0xff]
    %v1447 = vld [vmem:[#allocation9 + $0x160] sm:$0xff]
    %v1448 = vld [vmem:[#allocation9 + $0x168] sm:$0xff]
    %v1449 = vld [vmem:[#allocation9 + $0x170] sm:$0xff]
    %v1450 = vld [vmem:[#allocation9 + $0x178] sm:$0xff]
    %v1451 = vld [vmem:[#allocation9 + $0x180] sm:$0xff]
    %v1452 = vld [vmem:[#allocation9 + $0x188] sm:$0xff]
    %v1453 = vld [vmem:[#allocation9 + $0x190] sm:$0xff]
    %v1454 = vld [vmem:[#allocation9 + $0x198] sm:$0xff]
    %v1455 = vld [vmem:[#allocation9 + $0x1a0] sm:$0xff]
    %v1456 = vld [vmem:[#allocation9 + $0x1a8] sm:$0xff]
    %v1457 = vld [vmem:[#allocation9 + $0x1b0] sm:$0xff]
    %v1458 = vld [vmem:[#allocation9 + $0x1b8] sm:$0xff]
    %v1459 = vld [vmem:[#allocation9 + $0x1c0] sm:$0xff]
    %v1460 = vld [vmem:[#allocation9 + $0x1c8] sm:$0xff]
    %v1461 = vld [vmem:[#allocation9 + $0x1d0] sm:$0xff]
    %v1462 = vld [vmem:[#allocation9 + $0x1d8] sm:$0xff]
    %v1463 = vld [vmem:[#allocation9 + $0x1e0] sm:$0xff]
    %v1464 = vld [vmem:[#allocation9 + $0x1e8] sm:$0xff]
    %v1465 = vld [vmem:[#allocation9 + $0x1f0] sm:$0xff]
    %v1466 = vld [vmem:[#allocation9 + $0x1f8] sm:$0xff]
    %1467 = vmatprep.subr.mxu0 %v1404
    %1468 = vmatpush1.msra.mxu0 %v1403
    %1469 = vmatprep.subr.mxu0 %v1408
    %1470 = vmatpush1.msra.mxu0 %v1407
    %1471 = vmatprep.subr.mxu0 %v1412
    %1472 = vmatpush1.msra.mxu0 %v1411
    %1473 = vmatprep.subr.mxu0 %v1416
    %1474 = vmatpush1.msra.mxu0 %v1415
    %1475 = vmatprep.subr.mxu0 %v1420
    %1476 = vmatpush1.msra.mxu0 %v1419
    %1477 = vmatprep.subr.mxu0 %v1424
    %1478 = vmatpush1.msra.mxu0 %v1423
    %1479 = vmatprep.subr.mxu0 %v1428
    %1480 = vmatpush1.msra.mxu0 %v1427
    %1481 = vmatprep.subr.mxu0 %v1432
    %1482 = vmatpush1.msra.mxu0 %v1431
    %1483 = vmatprep.subr.mxu0 %v1436
    %1484 = vmatpush1.msra.mxu0 %v1435
    %1485 = vmatprep.subr.mxu0 %v1440
    %1486 = vmatpush1.msra.mxu0 %v1439
    %1487 = vmatprep.subr.mxu0 %v1444
    %1488 = vmatpush1.msra.mxu0 %v1443
    %1489 = vmatprep.subr.mxu0 %v1448
    %1490 = vmatpush1.msra.mxu0 %v1447
    %1491 = vmatprep.subr.mxu0 %v1452
    %1492 = vmatpush1.msra.mxu0 %v1451
    %1493 = vmatprep.subr.mxu0 %v1456
    %1494 = vmatpush1.msra.mxu0 %v1455
    %1495 = vmatprep.subr.mxu0 %v1460
    %1496 = vmatpush1.msra.mxu0 %v1459
    %1497 = vmatprep.subr.mxu0 %v1464
    %1498 = vmatpush1.msra.mxu0 %v1463
    %1499 = vmatprep.subr.mxu0 0.0
    %1500 = vmatpush1.msra.mxu0 0.0
    %1501 = vmatprep.subr.mxu0 0.0
    %1502 = vmatpush1.msra.mxu0 0.0
    %1503 = vmatprep.subr.mxu0 0.0
    %1504 = vmatpush1.msra.mxu0 0.0
    %1505 = vmatprep.subr.mxu0 0.0
    %1506 = vmatpush1.msra.mxu0 0.0
    %1507 = vmatprep.subr.mxu0 0.0
    %1508 = vmatpush1.msra.mxu0 0.0
    %1509 = vmatprep.subr.mxu0 0.0
    %1510 = vmatpush1.msra.mxu0 0.0
    %1511 = vmatprep.subr.mxu0 0.0
    %1512 = vmatpush1.msra.mxu0 0.0
    %1513 = vmatprep.subr.mxu0 0.0
    %1514 = vmatpush1.msra.mxu0 0.0
    %1515 = vmatprep.subr.mxu0 0.0
    %1516 = vmatpush1.msra.mxu0 0.0
    %1517 = vmatprep.subr.mxu0 0.0
    %1518 = vmatpush1.msra.mxu0 0.0
    %1519 = vmatprep.subr.mxu0 0.0
    %1520 = vmatpush1.msra.mxu0 0.0
    %1521 = vmatprep.subr.mxu0 0.0
    %1522 = vmatpush1.msra.mxu0 0.0
    %1523 = vmatprep.subr.mxu0 0.0
    %1524 = vmatpush1.msra.mxu0 0.0
    %1525 = vmatprep.subr.mxu0 0.0
    %1526 = vmatpush1.msra.mxu0 0.0
    %1527 = vmatprep.subr.mxu0 0.0
    %1528 = vmatpush1.msra.mxu0 0.0
    %1529 = vmatprep.subr.mxu0 0.0
    %1530 = vmatpush1.msra.mxu0 0.0
    %1531 = vmatprep.mubr.f32.mxu0 0.0
    %1532 = vmatmul.mubr.f32.gmra.mrb[0].mxu0 %v1395
    %v1533 = vpop.f32.mrb[0].mxu0
    %v1534 = vadd.f32 0.0, %v1533
    %v1535 = vpop.f32.mrb[0].mxu0
    %v1536 = vadd.f32 0.0, %v1535
    %1537 = vdwg.mxu0
    %1538 = vmatprep.subr.mxu0 %v1406
    %1539 = vmatpush1.msra.mxu0 %v1405
    %1540 = vmatprep.subr.mxu0 %v1410
    %1541 = vmatpush1.msra.mxu0 %v1409
    %1542 = vmatprep.subr.mxu0 %v1414
    %1543 = vmatpush1.msra.mxu0 %v1413
    %1544 = vmatprep.subr.mxu0 %v1418
    %1545 = vmatpush1.msra.mxu0 %v1417
    %1546 = vmatprep.subr.mxu0 %v1422
    %1547 = vmatpush1.msra.mxu0 %v1421
    %1548 = vmatprep.subr.mxu0 %v1426
    %1549 = vmatpush1.msra.mxu0 %v1425
    %1550 = vmatprep.subr.mxu0 %v1430
    %1551 = vmatpush1.msra.mxu0 %v1429
    %1552 = vmatprep.subr.mxu0 %v1434
    %1553 = vmatpush1.msra.mxu0 %v1433
    %1554 = vmatprep.subr.mxu0 %v1438
    %1555 = vmatpush1.msra.mxu0 %v1437
    %1556 = vmatprep.subr.mxu0 %v1442
    %1557 = vmatpush1.msra.mxu0 %v1441
    %1558 = vmatprep.subr.mxu0 %v1446
    %1559 = vmatpush1.msra.mxu0 %v1445
    %1560 = vmatprep.subr.mxu0 %v1450
    %1561 = vmatpush1.msra.mxu0 %v1449
    %1562 = vmatprep.subr.mxu0 %v1454
    %1563 = vmatpush1.msra.mxu0 %v1453
    %1564 = vmatprep.subr.mxu0 %v1458
    %1565 = vmatpush1.msra.mxu0 %v1457
    %1566 = vmatprep.subr.mxu0 %v1462
    %1567 = vmatpush1.msra.mxu0 %v1461
    %1568 = vmatprep.subr.mxu0 %v1466
    %1569 = vmatpush1.msra.mxu0 %v1465
    %1570 = vmatprep.subr.mxu0 0.0
    %1571 = vmatpush1.msra.mxu0 0.0
    %1572 = vmatprep.subr.mxu0 0.0
    %1573 = vmatpush1.msra.mxu0 0.0
    %1574 = vmatprep.subr.mxu0 0.0
    %1575 = vmatpush1.msra.mxu0 0.0
    %1576 = vmatprep.subr.mxu0 0.0
    %1577 = vmatpush1.msra.mxu0 0.0
    %1578 = vmatprep.subr.mxu0 0.0
    %1579 = vmatpush1.msra.mxu0 0.0
    %1580 = vmatprep.subr.mxu0 0.0
    %1581 = vmatpush1.msra.mxu0 0.0
    %1582 = vmatprep.subr.mxu0 0.0
    %1583 = vmatpush1.msra.mxu0 0.0
    %1584 = vmatprep.subr.mxu0 0.0
    %1585 = vmatpush1.msra.mxu0 0.0
    %1586 = vmatprep.subr.mxu0 0.0
    %1587 = vmatpush1.msra.mxu0 0.0
    %1588 = vmatprep.subr.mxu0 0.0
    %1589 = vmatpush1.msra.mxu0 0.0
    %1590 = vmatprep.subr.mxu0 0.0
    %1591 = vmatpush1.msra.mxu0 0.0
    %1592 = vmatprep.subr.mxu0 0.0
    %1593 = vmatpush1.msra.mxu0 0.0
    %1594 = vmatprep.subr.mxu0 0.0
    %1595 = vmatpush1.msra.mxu0 0.0
    %1596 = vmatprep.subr.mxu0 0.0
    %1597 = vmatpush1.msra.mxu0 0.0
    %1598 = vmatprep.subr.mxu0 0.0
    %1599 = vmatpush1.msra.mxu0 0.0
    %1600 = vmatprep.subr.mxu0 0.0
    %1601 = vmatpush1.msra.mxu0 0.0
    %1602 = vmatprep.mubr.f32.mxu0 0.0
    %1603 = vmatmul.mubr.f32.gmra.mrb[0].mxu0 %v1395
    %v1604 = vpop.f32.mrb[0].mxu0
    %v1605 = vadd.f32 0.0, %v1604
    %v1606 = vpop.f32.mrb[0].mxu0
    %v1607 = vadd.f32 0.0, %v1606
    %1608 = vdwg.mxu0
    %v1609 = vadd.f32 %v1399, %v1534
    %v1610 = vadd.f32 %v1400, %v1536
    %v1611 = vadd.f32 %v1401, %v1605
    %v1612 = vadd.f32 %v1402, %v1607
    %v1613 = vmul.f32 %v1609, 0.5
    %v1614 = vtanh.pop %v1613
    %v1615 = vadd.f32 %v1614, 1.0
    %v1616 = vmul.f32 %v1615, 0.5
    %v1617 = vmul.f32 %v1610, 0.5
    %v1618 = vtanh.pop %v1617
    %v1619 = vadd.f32 %v1618, 1.0
    %v1620 = vmul.f32 %v1619, 0.5
    %v1621 = vtanh.pop %v1611
    %v1622 = vmul.f32 %v1612, 0.5
    %v1623 = vtanh.pop %v1622
    %v1624 = vadd.f32 %v1623, 1.0
    %v1625 = vmul.f32 %v1624, 0.5
    %v1626 = vmul.f32 %v1620, %v1393
    %v1627 = vmul.f32 %v1616, %v1621
    %v1628 = vadd.f32 %v1626, %v1627
    %v1629 = vtanh.pop %v1628
    %v1630 = vmul.f32 %v1625, %v1629
    %s1631 = scalar_lea.vmem [#allocation5], 32
    %1632 = vst [vmem:[%s1631] sm:$0xff] %v1630
    %s1633 = scalar_lea.vmem [#allocation4], 160
    %v1634 = vld [vmem:[%s1633] sm:$0xff]
    %v1635 = vld [vmem:[%s1633 + $0x8] sm:$0xff]
    %v1636 = vld [vmem:[%s1633 + $0x10] sm:$0xff]
    %v1637 = vld [vmem:[%s1633 + $0x18] sm:$0xff]
    %v1638 = vld [vmem:[#allocation9] sm:$0xff]
    %v1639 = vld [vmem:[#allocation9 + $0x8] sm:$0xff]
    %v1640 = vld [vmem:[#allocation9 + $0x10] sm:$0xff]
    %v1641 = vld [vmem:[#allocation9 + $0x18] sm:$0xff]
    %v1642 = vld [vmem:[#allocation9 + $0x20] sm:$0xff]
    %v1643 = vld [vmem:[#allocation9 + $0x28] sm:$0xff]
    %v1644 = vld [vmem:[#allocation9 + $0x30] sm:$0xff]
    %v1645 = vld [vmem:[#allocation9 + $0x38] sm:$0xff]
    %v1646 = vld [vmem:[#allocation9 + $0x40] sm:$0xff]
    %v1647 = vld [vmem:[#allocation9 + $0x48] sm:$0xff]
    %v1648 = vld [vmem:[#allocation9 + $0x50] sm:$0xff]
    %v1649 = vld [vmem:[#allocation9 + $0x58] sm:$0xff]
    %v1650 = vld [vmem:[#allocation9 + $0x60] sm:$0xff]
    %v1651 = vld [vmem:[#allocation9 + $0x68] sm:$0xff]
    %v1652 = vld [vmem:[#allocation9 + $0x70] sm:$0xff]
    %v1653 = vld [vmem:[#allocation9 + $0x78] sm:$0xff]
    %v1654 = vld [vmem:[#allocation9 + $0x80] sm:$0xff]
    %v1655 = vld [vmem:[#allocation9 + $0x88] sm:$0xff]
    %v1656 = vld [vmem:[#allocation9 + $0x90] sm:$0xff]
    %v1657 = vld [vmem:[#allocation9 + $0x98] sm:$0xff]
    %v1658 = vld [vmem:[#allocation9 + $0xa0] sm:$0xff]
    %v1659 = vld [vmem:[#allocation9 + $0xa8] sm:$0xff]
    %v1660 = vld [vmem:[#allocation9 + $0xb0] sm:$0xff]
    %v1661 = vld [vmem:[#allocation9 + $0xb8] sm:$0xff]
    %v1662 = vld [vmem:[#allocation9 + $0xc0] sm:$0xff]
    %v1663 = vld [vmem:[#allocation9 + $0xc8] sm:$0xff]
    %v1664 = vld [vmem:[#allocation9 + $0xd0] sm:$0xff]
    %v1665 = vld [vmem:[#allocation9 + $0xd8] sm:$0xff]
    %v1666 = vld [vmem:[#allocation9 + $0xe0] sm:$0xff]
    %v1667 = vld [vmem:[#allocation9 + $0xe8] sm:$0xff]
    %v1668 = vld [vmem:[#allocation9 + $0xf0] sm:$0xff]
    %v1669 = vld [vmem:[#allocation9 + $0xf8] sm:$0xff]
    %v1670 = vld [vmem:[#allocation9 + $0x100] sm:$0xff]
    %v1671 = vld [vmem:[#allocation9 + $0x108] sm:$0xff]
    %v1672 = vld [vmem:[#allocation9 + $0x110] sm:$0xff]
    %v1673 = vld [vmem:[#allocation9 + $0x118] sm:$0xff]
    %v1674 = vld [vmem:[#allocation9 + $0x120] sm:$0xff]
    %v1675 = vld [vmem:[#allocation9 + $0x128] sm:$0xff]
    %v1676 = vld [vmem:[#allocation9 + $0x130] sm:$0xff]
    %v1677 = vld [vmem:[#allocation9 + $0x138] sm:$0xff]
    %v1678 = vld [vmem:[#allocation9 + $0x140] sm:$0xff]
    %v1679 = vld [vmem:[#allocation9 + $0x148] sm:$0xff]
    %v1680 = vld [vmem:[#allocation9 + $0x150] sm:$0xff]
    %v1681 = vld [vmem:[#allocation9 + $0x158] sm:$0xff]
    %v1682 = vld [vmem:[#allocation9 + $0x160] sm:$0xff]
    %v1683 = vld [vmem:[#allocation9 + $0x168] sm:$0xff]
    %v1684 = vld [vmem:[#allocation9 + $0x170] sm:$0xff]
    %v1685 = vld [vmem:[#allocation9 + $0x178] sm:$0xff]
    %v1686 = vld [vmem:[#allocation9 + $0x180] sm:$0xff]
    %v1687 = vld [vmem:[#allocation9 + $0x188] sm:$0xff]
    %v1688 = vld [vmem:[#allocation9 + $0x190] sm:$0xff]
    %v1689 = vld [vmem:[#allocation9 + $0x198] sm:$0xff]
    %v1690 = vld [vmem:[#allocation9 + $0x1a0] sm:$0xff]
    %v1691 = vld [vmem:[#allocation9 + $0x1a8] sm:$0xff]
    %v1692 = vld [vmem:[#allocation9 + $0x1b0] sm:$0xff]
    %v1693 = vld [vmem:[#allocation9 + $0x1b8] sm:$0xff]
    %v1694 = vld [vmem:[#allocation9 + $0x1c0] sm:$0xff]
    %v1695 = vld [vmem:[#allocation9 + $0x1c8] sm:$0xff]
    %v1696 = vld [vmem:[#allocation9 + $0x1d0] sm:$0xff]
    %v1697 = vld [vmem:[#allocation9 + $0x1d8] sm:$0xff]
    %v1698 = vld [vmem:[#allocation9 + $0x1e0] sm:$0xff]
    %v1699 = vld [vmem:[#allocation9 + $0x1e8] sm:$0xff]
    %v1700 = vld [vmem:[#allocation9 + $0x1f0] sm:$0xff]
    %v1701 = vld [vmem:[#allocation9 + $0x1f8] sm:$0xff]
    %1702 = vmatprep.subr.mxu0 %v1639
    %1703 = vmatpush1.msra.mxu0 %v1638
    %1704 = vmatprep.subr.mxu0 %v1643
    %1705 = vmatpush1.msra.mxu0 %v1642
    %1706 = vmatprep.subr.mxu0 %v1647
    %1707 = vmatpush1.msra.mxu0 %v1646
    %1708 = vmatprep.subr.mxu0 %v1651
    %1709 = vmatpush1.msra.mxu0 %v1650
    %1710 = vmatprep.subr.mxu0 %v1655
    %1711 = vmatpush1.msra.mxu0 %v1654
    %1712 = vmatprep.subr.mxu0 %v1659
    %1713 = vmatpush1.msra.mxu0 %v1658
    %1714 = vmatprep.subr.mxu0 %v1663
    %1715 = vmatpush1.msra.mxu0 %v1662
    %1716 = vmatprep.subr.mxu0 %v1667
    %1717 = vmatpush1.msra.mxu0 %v1666
    %1718 = vmatprep.subr.mxu0 %v1671
    %1719 = vmatpush1.msra.mxu0 %v1670
    %1720 = vmatprep.subr.mxu0 %v1675
    %1721 = vmatpush1.msra.mxu0 %v1674
    %1722 = vmatprep.subr.mxu0 %v1679
    %1723 = vmatpush1.msra.mxu0 %v1678
    %1724 = vmatprep.subr.mxu0 %v1683
    %1725 = vmatpush1.msra.mxu0 %v1682
    %1726 = vmatprep.subr.mxu0 %v1687
    %1727 = vmatpush1.msra.mxu0 %v1686
    %1728 = vmatprep.subr.mxu0 %v1691
    %1729 = vmatpush1.msra.mxu0 %v1690
    %1730 = vmatprep.subr.mxu0 %v1695
    %1731 = vmatpush1.msra.mxu0 %v1694
    %1732 = vmatprep.subr.mxu0 %v1699
    %1733 = vmatpush1.msra.mxu0 %v1698
    %1734 = vmatprep.subr.mxu0 0.0
    %1735 = vmatpush1.msra.mxu0 0.0
    %1736 = vmatprep.subr.mxu0 0.0
    %1737 = vmatpush1.msra.mxu0 0.0
    %1738 = vmatprep.subr.mxu0 0.0
    %1739 = vmatpush1.msra.mxu0 0.0
    %1740 = vmatprep.subr.mxu0 0.0
    %1741 = vmatpush1.msra.mxu0 0.0
    %1742 = vmatprep.subr.mxu0 0.0
    %1743 = vmatpush1.msra.mxu0 0.0
    %1744 = vmatprep.subr.mxu0 0.0
    %1745 = vmatpush1.msra.mxu0 0.0
    %1746 = vmatprep.subr.mxu0 0.0
    %1747 = vmatpush1.msra.mxu0 0.0
    %1748 = vmatprep.subr.mxu0 0.0
    %1749 = vmatpush1.msra.mxu0 0.0
    %1750 = vmatprep.subr.mxu0 0.0
    %1751 = vmatpush1.msra.mxu0 0.0
    %1752 = vmatprep.subr.mxu0 0.0
    %1753 = vmatpush1.msra.mxu0 0.0
    %1754 = vmatprep.subr.mxu0 0.0
    %1755 = vmatpush1.msra.mxu0 0.0
    %1756 = vmatprep.subr.mxu0 0.0
    %1757 = vmatpush1.msra.mxu0 0.0
    %1758 = vmatprep.subr.mxu0 0.0
    %1759 = vmatpush1.msra.mxu0 0.0
    %1760 = vmatprep.subr.mxu0 0.0
    %1761 = vmatpush1.msra.mxu0 0.0
    %1762 = vmatprep.subr.mxu0 0.0
    %1763 = vmatpush1.msra.mxu0 0.0
    %1764 = vmatprep.subr.mxu0 0.0
    %1765 = vmatpush1.msra.mxu0 0.0
    %1766 = vmatprep.mubr.f32.mxu0 0.0
    %1767 = vmatmul.mubr.f32.gmra.mrb[0].mxu0 %v1630
    %v1768 = vpop.f32.mrb[0].mxu0
    %v1769 = vadd.f32 0.0, %v1768
    %v1770 = vpop.f32.mrb[0].mxu0
    %v1771 = vadd.f32 0.0, %v1770
    %1772 = vdwg.mxu0
    %1773 = vmatprep.subr.mxu0 %v1641
    %1774 = vmatpush1.msra.mxu0 %v1640
    %1775 = vmatprep.subr.mxu0 %v1645
    %1776 = vmatpush1.msra.mxu0 %v1644
    %1777 = vmatprep.subr.mxu0 %v1649
    %1778 = vmatpush1.msra.mxu0 %v1648
    %1779 = vmatprep.subr.mxu0 %v1653
    %1780 = vmatpush1.msra.mxu0 %v1652
    %1781 = vmatprep.subr.mxu0 %v1657
    %1782 = vmatpush1.msra.mxu0 %v1656
    %1783 = vmatprep.subr.mxu0 %v1661
    %1784 = vmatpush1.msra.mxu0 %v1660
    %1785 = vmatprep.subr.mxu0 %v1665
    %1786 = vmatpush1.msra.mxu0 %v1664
    %1787 = vmatprep.subr.mxu0 %v1669
    %1788 = vmatpush1.msra.mxu0 %v1668
    %1789 = vmatprep.subr.mxu0 %v1673
    %1790 = vmatpush1.msra.mxu0 %v1672
    %1791 = vmatprep.subr.mxu0 %v1677
    %1792 = vmatpush1.msra.mxu0 %v1676
    %1793 = vmatprep.subr.mxu0 %v1681
    %1794 = vmatpush1.msra.mxu0 %v1680
    %1795 = vmatprep.subr.mxu0 %v1685
    %1796 = vmatpush1.msra.mxu0 %v1684
    %1797 = vmatprep.subr.mxu0 %v1689
    %1798 = vmatpush1.msra.mxu0 %v1688
    %1799 = vmatprep.subr.mxu0 %v1693
    %1800 = vmatpush1.msra.mxu0 %v1692
    %1801 = vmatprep.subr.mxu0 %v1697
    %1802 = vmatpush1.msra.mxu0 %v1696
    %1803 = vmatprep.subr.mxu0 %v1701
    %1804 = vmatpush1.msra.mxu0 %v1700
    %1805 = vmatprep.subr.mxu0 0.0
    %1806 = vmatpush1.msra.mxu0 0.0
    %1807 = vmatprep.subr.mxu0 0.0
    %1808 = vmatpush1.msra.mxu0 0.0
    %1809 = vmatprep.subr.mxu0 0.0
    %1810 = vmatpush1.msra.mxu0 0.0
    %1811 = vmatprep.subr.mxu0 0.0
    %1812 = vmatpush1.msra.mxu0 0.0
    %1813 = vmatprep.subr.mxu0 0.0
    %1814 = vmatpush1.msra.mxu0 0.0
    %1815 = vmatprep.subr.mxu0 0.0
    %1816 = vmatpush1.msra.mxu0 0.0
    %1817 = vmatprep.subr.mxu0 0.0
    %1818 = vmatpush1.msra.mxu0 0.0
    %1819 = vmatprep.subr.mxu0 0.0
    %1820 = vmatpush1.msra.mxu0 0.0
    %1821 = vmatprep.subr.mxu0 0.0
    %1822 = vmatpush1.msra.mxu0 0.0
    %1823 = vmatprep.subr.mxu0 0.0
    %1824 = vmatpush1.msra.mxu0 0.0
    %1825 = vmatprep.subr.mxu0 0.0
    %1826 = vmatpush1.msra.mxu0 0.0
    %1827 = vmatprep.subr.mxu0 0.0
    %1828 = vmatpush1.msra.mxu0 0.0
    %1829 = vmatprep.subr.mxu0 0.0
    %1830 = vmatpush1.msra.mxu0 0.0
    %1831 = vmatprep.subr.mxu0 0.0
    %1832 = vmatpush1.msra.mxu0 0.0
    %1833 = vmatprep.subr.mxu0 0.0
    %1834 = vmatpush1.msra.mxu0 0.0
    %1835 = vmatprep.subr.mxu0 0.0
    %1836 = vmatpush1.msra.mxu0 0.0
    %1837 = vmatprep.mubr.f32.mxu0 0.0
    %1838 = vmatmul.mubr.f32.gmra.mrb[0].mxu0 %v1630
    %v1839 = vpop.f32.mrb[0].mxu0
    %v1840 = vadd.f32 0.0, %v1839
    %v1841 = vpop.f32.mrb[0].mxu0
    %v1842 = vadd.f32 0.0, %v1841
    %1843 = vdwg.mxu0
    %v1844 = vadd.f32 %v1634, %v1769
    %v1845 = vadd.f32 %v1635, %v1771
    %v1846 = vadd.f32 %v1636, %v1840
    %v1847 = vadd.f32 %v1637, %v1842
    %v1848 = vmul.f32 %v1844, 0.5
    %v1849 = vtanh.pop %v1848
    %v1850 = vadd.f32 %v1849, 1.0
    %v1851 = vmul.f32 %v1850, 0.5
    %v1852 = vmul.f32 %v1845, 0.5
    %v1853 = vtanh.pop %v1852
    %v1854 = vadd.f32 %v1853, 1.0
    %v1855 = vmul.f32 %v1854, 0.5
    %v1856 = vtanh.pop %v1846
    %v1857 = vmul.f32 %v1847, 0.5
    %v1858 = vtanh.pop %v1857
    %v1859 = vadd.f32 %v1858, 1.0
    %v1860 = vmul.f32 %v1859, 0.5
    %v1861 = vmul.f32 %v1855, %v1628
    %v1862 = vmul.f32 %v1851, %v1856
    %v1863 = vadd.f32 %v1861, %v1862
    %v1864 = vtanh.pop %v1863
    %v1865 = vmul.f32 %v1860, %v1864
    %s1866 = scalar_lea.vmem [#allocation5], 40
    %1867 = vst [vmem:[%s1866] sm:$0xff] %v1865
    %s1868 = scalar_lea.vmem [#allocation4], 192
    %v1869 = vld [vmem:[%s1868] sm:$0xff]
    %v1870 = vld [vmem:[%s1868 + $0x8] sm:$0xff]
    %v1871 = vld [vmem:[%s1868 + $0x10] sm:$0xff]
    %v1872 = vld [vmem:[%s1868 + $0x18] sm:$0xff]
    %v1873 = vld [vmem:[#allocation9] sm:$0xff]
    %v1874 = vld [vmem:[#allocation9 + $0x8] sm:$0xff]
    %v1875 = vld [vmem:[#allocation9 + $0x10] sm:$0xff]
    %v1876 = vld [vmem:[#allocation9 + $0x18] sm:$0xff]
    %v1877 = vld [vmem:[#allocation9 + $0x20] sm:$0xff]
    %v1878 = vld [vmem:[#allocation9 + $0x28] sm:$0xff]
    %v1879 = vld [vmem:[#allocation9 + $0x30] sm:$0xff]
    %v1880 = vld [vmem:[#allocation9 + $0x38] sm:$0xff]
    %v1881 = vld [vmem:[#allocation9 + $0x40] sm:$0xff]
    %v1882 = vld [vmem:[#allocation9 + $0x48] sm:$0xff]
    %v1883 = vld [vmem:[#allocation9 + $0x50] sm:$0xff]
    %v1884 = vld [vmem:[#allocation9 + $0x58] sm:$0xff]
    %v1885 = vld [vmem:[#allocation9 + $0x60] sm:$0xff]
    %v1886 = vld [vmem:[#allocation9 + $0x68] sm:$0xff]
    %v1887 = vld [vmem:[#allocation9 + $0x70] sm:$0xff]
    %v1888 = vld [vmem:[#allocation9 + $0x78] sm:$0xff]
    %v1889 = vld [vmem:[#allocation9 + $0x80] sm:$0xff]
    %v1890 = vld [vmem:[#allocation9 + $0x88] sm:$0xff]
    %v1891 = vld [vmem:[#allocation9 + $0x90] sm:$0xff]
    %v1892 = vld [vmem:[#allocation9 + $0x98] sm:$0xff]
    %v1893 = vld [vmem:[#allocation9 + $0xa0] sm:$0xff]
    %v1894 = vld [vmem:[#allocation9 + $0xa8] sm:$0xff]
    %v1895 = vld [vmem:[#allocation9 + $0xb0] sm:$0xff]
    %v1896 = vld [vmem:[#allocation9 + $0xb8] sm:$0xff]
    %v1897 = vld [vmem:[#allocation9 + $0xc0] sm:$0xff]
    %v1898 = vld [vmem:[#allocation9 + $0xc8] sm:$0xff]
    %v1899 = vld [vmem:[#allocation9 + $0xd0] sm:$0xff]
    %v1900 = vld [vmem:[#allocation9 + $0xd8] sm:$0xff]
    %v1901 = vld [vmem:[#allocation9 + $0xe0] sm:$0xff]
    %v1902 = vld [vmem:[#allocation9 + $0xe8] sm:$0xff]
    %v1903 = vld [vmem:[#allocation9 + $0xf0] sm:$0xff]
    %v1904 = vld [vmem:[#allocation9 + $0xf8] sm:$0xff]
    %v1905 = vld [vmem:[#allocation9 + $0x100] sm:$0xff]
    %v1906 = vld [vmem:[#allocation9 + $0x108] sm:$0xff]
    %v1907 = vld [vmem:[#allocation9 + $0x110] sm:$0xff]
    %v1908 = vld [vmem:[#allocation9 + $0x118] sm:$0xff]
    %v1909 = vld [vmem:[#allocation9 + $0x120] sm:$0xff]
    %v1910 = vld [vmem:[#allocation9 + $0x128] sm:$0xff]
    %v1911 = vld [vmem:[#allocation9 + $0x130] sm:$0xff]
    %v1912 = vld [vmem:[#allocation9 + $0x138] sm:$0xff]
    %v1913 = vld [vmem:[#allocation9 + $0x140] sm:$0xff]
    %v1914 = vld [vmem:[#allocation9 + $0x148] sm:$0xff]
    %v1915 = vld [vmem:[#allocation9 + $0x150] sm:$0xff]
    %v1916 = vld [vmem:[#allocation9 + $0x158] sm:$0xff]
    %v1917 = vld [vmem:[#allocation9 + $0x160] sm:$0xff]
    %v1918 = vld [vmem:[#allocation9 + $0x168] sm:$0xff]
    %v1919 = vld [vmem:[#allocation9 + $0x170] sm:$0xff]
    %v1920 = vld [vmem:[#allocation9 + $0x178] sm:$0xff]
    %v1921 = vld [vmem:[#allocation9 + $0x180] sm:$0xff]
    %v1922 = vld [vmem:[#allocation9 + $0x188] sm:$0xff]
    %v1923 = vld [vmem:[#allocation9 + $0x190] sm:$0xff]
    %v1924 = vld [vmem:[#allocation9 + $0x198] sm:$0xff]
    %v1925 = vld [vmem:[#allocation9 + $0x1a0] sm:$0xff]
    %v1926 = vld [vmem:[#allocation9 + $0x1a8] sm:$0xff]
    %v1927 = vld [vmem:[#allocation9 + $0x1b0] sm:$0xff]
    %v1928 = vld [vmem:[#allocation9 + $0x1b8] sm:$0xff]
    %v1929 = vld [vmem:[#allocation9 + $0x1c0] sm:$0xff]
    %v1930 = vld [vmem:[#allocation9 + $0x1c8] sm:$0xff]
    %v1931 = vld [vmem:[#allocation9 + $0x1d0] sm:$0xff]
    %v1932 = vld [vmem:[#allocation9 + $0x1d8] sm:$0xff]
    %v1933 = vld [vmem:[#allocation9 + $0x1e0] sm:$0xff]
    %v1934 = vld [vmem:[#allocation9 + $0x1e8] sm:$0xff]
    %v1935 = vld [vmem:[#allocation9 + $0x1f0] sm:$0xff]
    %v1936 = vld [vmem:[#allocation9 + $0x1f8] sm:$0xff]
    %1937 = vmatprep.subr.mxu0 %v1874
    %1938 = vmatpush1.msra.mxu0 %v1873
    %1939 = vmatprep.subr.mxu0 %v1878
    %1940 = vmatpush1.msra.mxu0 %v1877
    %1941 = vmatprep.subr.mxu0 %v1882
    %1942 = vmatpush1.msra.mxu0 %v1881
    %1943 = vmatprep.subr.mxu0 %v1886
    %1944 = vmatpush1.msra.mxu0 %v1885
    %1945 = vmatprep.subr.mxu0 %v1890
    %1946 = vmatpush1.msra.mxu0 %v1889
    %1947 = vmatprep.subr.mxu0 %v1894
    %1948 = vmatpush1.msra.mxu0 %v1893
    %1949 = vmatprep.subr.mxu0 %v1898
    %1950 = vmatpush1.msra.mxu0 %v1897
    %1951 = vmatprep.subr.mxu0 %v1902
    %1952 = vmatpush1.msra.mxu0 %v1901
    %1953 = vmatprep.subr.mxu0 %v1906
    %1954 = vmatpush1.msra.mxu0 %v1905
    %1955 = vmatprep.subr.mxu0 %v1910
    %1956 = vmatpush1.msra.mxu0 %v1909
    %1957 = vmatprep.subr.mxu0 %v1914
    %1958 = vmatpush1.msra.mxu0 %v1913
    %1959 = vmatprep.subr.mxu0 %v1918
    %1960 = vmatpush1.msra.mxu0 %v1917
    %1961 = vmatprep.subr.mxu0 %v1922
    %1962 = vmatpush1.msra.mxu0 %v1921
    %1963 = vmatprep.subr.mxu0 %v1926
    %1964 = vmatpush1.msra.mxu0 %v1925
    %1965 = vmatprep.subr.mxu0 %v1930
    %1966 = vmatpush1.msra.mxu0 %v1929
    %1967 = vmatprep.subr.mxu0 %v1934
    %1968 = vmatpush1.msra.mxu0 %v1933
    %1969 = vmatprep.subr.mxu0 0.0
    %1970 = vmatpush1.msra.mxu0 0.0
    %1971 = vmatprep.subr.mxu0 0.0
    %1972 = vmatpush1.msra.mxu0 0.0
    %1973 = vmatprep.subr.mxu0 0.0
    %1974 = vmatpush1.msra.mxu0 0.0
    %1975 = vmatprep.subr.mxu0 0.0
    %1976 = vmatpush1.msra.mxu0 0.0
    %1977 = vmatprep.subr.mxu0 0.0
    %1978 = vmatpush1.msra.mxu0 0.0
    %1979 = vmatprep.subr.mxu0 0.0
    %1980 = vmatpush1.msra.mxu0 0.0
    %1981 = vmatprep.subr.mxu0 0.0
    %1982 = vmatpush1.msra.mxu0 0.0
    %1983 = vmatprep.subr.mxu0 0.0
    %1984 = vmatpush1.msra.mxu0 0.0
    %1985 = vmatprep.subr.mxu0 0.0
    %1986 = vmatpush1.msra.mxu0 0.0
    %1987 = vmatprep.subr.mxu0 0.0
    %1988 = vmatpush1.msra.mxu0 0.0
    %1989 = vmatprep.subr.mxu0 0.0
    %1990 = vmatpush1.msra.mxu0 0.0
    %1991 = vmatprep.subr.mxu0 0.0
    %1992 = vmatpush1.msra.mxu0 0.0
    %1993 = vmatprep.subr.mxu0 0.0
    %1994 = vmatpush1.msra.mxu0 0.0
    %1995 = vmatprep.subr.mxu0 0.0
    %1996 = vmatpush1.msra.mxu0 0.0
    %1997 = vmatprep.subr.mxu0 0.0
    %1998 = vmatpush1.msra.mxu0 0.0
    %1999 = vmatprep.subr.mxu0 0.0
    %2000 = vmatpush1.msra.mxu0 0.0
    %2001 = vmatprep.mubr.f32.mxu0 0.0
    %2002 = vmatmul.mubr.f32.gmra.mrb[0].mxu0 %v1865
    %v2003 = vpop.f32.mrb[0].mxu0
    %v2004 = vadd.f32 0.0, %v2003
    %v2005 = vpop.f32.mrb[0].mxu0
    %v2006 = vadd.f32 0.0, %v2005
    %2007 = vdwg.mxu0
    %2008 = vmatprep.subr.mxu0 %v1876
    %2009 = vmatpush1.msra.mxu0 %v1875
    %2010 = vmatprep.subr.mxu0 %v1880
    %2011 = vmatpush1.msra.mxu0 %v1879
    %2012 = vmatprep.subr.mxu0 %v1884
    %2013 = vmatpush1.msra.mxu0 %v1883
    %2014 = vmatprep.subr.mxu0 %v1888
    %2015 = vmatpush1.msra.mxu0 %v1887
    %2016 = vmatprep.subr.mxu0 %v1892
    %2017 = vmatpush1.msra.mxu0 %v1891
    %2018 = vmatprep.subr.mxu0 %v1896
    %2019 = vmatpush1.msra.mxu0 %v1895
    %2020 = vmatprep.subr.mxu0 %v1900
    %2021 = vmatpush1.msra.mxu0 %v1899
    %2022 = vmatprep.subr.mxu0 %v1904
    %2023 = vmatpush1.msra.mxu0 %v1903
    %2024 = vmatprep.subr.mxu0 %v1908
    %2025 = vmatpush1.msra.mxu0 %v1907
    %2026 = vmatprep.subr.mxu0 %v1912
    %2027 = vmatpush1.msra.mxu0 %v1911
    %2028 = vmatprep.subr.mxu0 %v1916
    %2029 = vmatpush1.msra.mxu0 %v1915
    %2030 = vmatprep.subr.mxu0 %v1920
    %2031 = vmatpush1.msra.mxu0 %v1919
    %2032 = vmatprep.subr.mxu0 %v1924
    %2033 = vmatpush1.msra.mxu0 %v1923
    %2034 = vmatprep.subr.mxu0 %v1928
    %2035 = vmatpush1.msra.mxu0 %v1927
    %2036 = vmatprep.subr.mxu0 %v1932
    %2037 = vmatpush1.msra.mxu0 %v1931
    %2038 = vmatprep.subr.mxu0 %v1936
    %2039 = vmatpush1.msra.mxu0 %v1935
    %2040 = vmatprep.subr.mxu0 0.0
    %2041 = vmatpush1.msra.mxu0 0.0
    %2042 = vmatprep.subr.mxu0 0.0
    %2043 = vmatpush1.msra.mxu0 0.0
    %2044 = vmatprep.subr.mxu0 0.0
    %2045 = vmatpush1.msra.mxu0 0.0
    %2046 = vmatprep.subr.mxu0 0.0
    %2047 = vmatpush1.msra.mxu0 0.0
    %2048 = vmatprep.subr.mxu0 0.0
    %2049 = vmatpush1.msra.mxu0 0.0
    %2050 = vmatprep.subr.mxu0 0.0
    %2051 = vmatpush1.msra.mxu0 0.0
    %2052 = vmatprep.subr.mxu0 0.0
    %2053 = vmatpush1.msra.mxu0 0.0
    %2054 = vmatprep.subr.mxu0 0.0
    %2055 = vmatpush1.msra.mxu0 0.0
    %2056 = vmatprep.subr.mxu0 0.0
    %2057 = vmatpush1.msra.mxu0 0.0
    %2058 = vmatprep.subr.mxu0 0.0
    %2059 = vmatpush1.msra.mxu0 0.0
    %2060 = vmatprep.subr.mxu0 0.0
    %2061 = vmatpush1.msra.mxu0 0.0
    %2062 = vmatprep.subr.mxu0 0.0
    %2063 = vmatpush1.msra.mxu0 0.0
    %2064 = vmatprep.subr.mxu0 0.0
    %2065 = vmatpush1.msra.mxu0 0.0
    %2066 = vmatprep.subr.mxu0 0.0
    %2067 = vmatpush1.msra.mxu0 0.0
    %2068 = vmatprep.subr.mxu0 0.0
    %2069 = vmatpush1.msra.mxu0 0.0
    %2070 = vmatprep.subr.mxu0 0.0
    %2071 = vmatpush1.msra.mxu0 0.0
    %2072 = vmatprep.mubr.f32.mxu0 0.0
    %2073 = vmatmul.mubr.f32.gmra.mrb[0].mxu0 %v1865
    %v2074 = vpop.f32.mrb[0].mxu0
    %v2075 = vadd.f32 0.0, %v2074
    %v2076 = vpop.f32.mrb[0].mxu0
    %v2077 = vadd.f32 0.0, %v2076
    %2078 = vdwg.mxu0
    %v2079 = vadd.f32 %v1869, %v2004
    %v2080 = vadd.f32 %v1870, %v2006
    %v2081 = vadd.f32 %v1871, %v2075
    %v2082 = vadd.f32 %v1872, %v2077
    %v2083 = vmul.f32 %v2079, 0.5
    %v2084 = vtanh.pop %v2083
    %v2085 = vadd.f32 %v2084, 1.0
    %v2086 = vmul.f32 %v2085, 0.5
    %v2087 = vmul.f32 %v2080, 0.5
    %v2088 = vtanh.pop %v2087
    %v2089 = vadd.f32 %v2088, 1.0
    %v2090 = vmul.f32 %v2089, 0.5
    %v2091 = vtanh.pop %v2081
    %v2092 = vmul.f32 %v2082, 0.5
    %v2093 = vtanh.pop %v2092
    %v2094 = vadd.f32 %v2093, 1.0
    %v2095 = vmul.f32 %v2094, 0.5
    %v2096 = vmul.f32 %v2090, %v1863
    %v2097 = vmul.f32 %v2086, %v2091
    %v2098 = vadd.f32 %v2096, %v2097
    %v2099 = vtanh.pop %v2098
    %v2100 = vmul.f32 %v2095, %v2099
    %s2101 = scalar_lea.vmem [#allocation5], 48
    %2102 = vst [vmem:[%s2101] sm:$0xff] %v2100
    %s2103 = scalar_lea.vmem [#allocation4], 224
    %v2104 = vld [vmem:[%s2103] sm:$0xff]
    %v2105 = vld [vmem:[%s2103 + $0x8] sm:$0xff]
    %v2106 = vld [vmem:[%s2103 + $0x10] sm:$0xff]
    %v2107 = vld [vmem:[%s2103 + $0x18] sm:$0xff]
    %v2108 = vld [vmem:[#allocation9] sm:$0xff]
    %v2109 = vld [vmem:[#allocation9 + $0x8] sm:$0xff]
    %v2110 = vld [vmem:[#allocation9 + $0x10] sm:$0xff]
    %v2111 = vld [vmem:[#allocation9 + $0x18] sm:$0xff]
    %v2112 = vld [vmem:[#allocation9 + $0x20] sm:$0xff]
    %v2113 = vld [vmem:[#allocation9 + $0x28] sm:$0xff]
    %v2114 = vld [vmem:[#allocation9 + $0x30] sm:$0xff]
    %v2115 = vld [vmem:[#allocation9 + $0x38] sm:$0xff]
    %v2116 = vld [vmem:[#allocation9 + $0x40] sm:$0xff]
    %v2117 = vld [vmem:[#allocation9 + $0x48] sm:$0xff]
    %v2118 = vld [vmem:[#allocation9 + $0x50] sm:$0xff]
    %v2119 = vld [vmem:[#allocation9 + $0x58] sm:$0xff]
    %v2120 = vld [vmem:[#allocation9 + $0x60] sm:$0xff]
    %v2121 = vld [vmem:[#allocation9 + $0x68] sm:$0xff]
    %v2122 = vld [vmem:[#allocation9 + $0x70] sm:$0xff]
    %v2123 = vld [vmem:[#allocation9 + $0x78] sm:$0xff]
    %v2124 = vld [vmem:[#allocation9 + $0x80] sm:$0xff]
    %v2125 = vld [vmem:[#allocation9 + $0x88] sm:$0xff]
    %v2126 = vld [vmem:[#allocation9 + $0x90] sm:$0xff]
    %v2127 = vld [vmem:[#allocation9 + $0x98] sm:$0xff]
    %v2128 = vld [vmem:[#allocation9 + $0xa0] sm:$0xff]
    %v2129 = vld [vmem:[#allocation9 + $0xa8] sm:$0xff]
    %v2130 = vld [vmem:[#allocation9 + $0xb0] sm:$0xff]
    %v2131 = vld [vmem:[#allocation9 + $0xb8] sm:$0xff]
    %v2132 = vld [vmem:[#allocation9 + $0xc0] sm:$0xff]
    %v2133 = vld [vmem:[#allocation9 + $0xc8] sm:$0xff]
    %v2134 = vld [vmem:[#allocation9 + $0xd0] sm:$0xff]
    %v2135 = vld [vmem:[#allocation9 + $0xd8] sm:$0xff]
    %v2136 = vld [vmem:[#allocation9 + $0xe0] sm:$0xff]
    %v2137 = vld [vmem:[#allocation9 + $0xe8] sm:$0xff]
    %v2138 = vld [vmem:[#allocation9 + $0xf0] sm:$0xff]
    %v2139 = vld [vmem:[#allocation9 + $0xf8] sm:$0xff]
    %v2140 = vld [vmem:[#allocation9 + $0x100] sm:$0xff]
    %v2141 = vld [vmem:[#allocation9 + $0x108] sm:$0xff]
    %v2142 = vld [vmem:[#allocation9 + $0x110] sm:$0xff]
    %v2143 = vld [vmem:[#allocation9 + $0x118] sm:$0xff]
    %v2144 = vld [vmem:[#allocation9 + $0x120] sm:$0xff]
    %v2145 = vld [vmem:[#allocation9 + $0x128] sm:$0xff]
    %v2146 = vld [vmem:[#allocation9 + $0x130] sm:$0xff]
    %v2147 = vld [vmem:[#allocation9 + $0x138] sm:$0xff]
    %v2148 = vld [vmem:[#allocation9 + $0x140] sm:$0xff]
    %v2149 = vld [vmem:[#allocation9 + $0x148] sm:$0xff]
    %v2150 = vld [vmem:[#allocation9 + $0x150] sm:$0xff]
    %v2151 = vld [vmem:[#allocation9 + $0x158] sm:$0xff]
    %v2152 = vld [vmem:[#allocation9 + $0x160] sm:$0xff]
    %v2153 = vld [vmem:[#allocation9 + $0x168] sm:$0xff]
    %v2154 = vld [vmem:[#allocation9 + $0x170] sm:$0xff]
    %v2155 = vld [vmem:[#allocation9 + $0x178] sm:$0xff]
    %v2156 = vld [vmem:[#allocation9 + $0x180] sm:$0xff]
    %v2157 = vld [vmem:[#allocation9 + $0x188] sm:$0xff]
    %v2158 = vld [vmem:[#allocation9 + $0x190] sm:$0xff]
    %v2159 = vld [vmem:[#allocation9 + $0x198] sm:$0xff]
    %v2160 = vld [vmem:[#allocation9 + $0x1a0] sm:$0xff]
    %v2161 = vld [vmem:[#allocation9 + $0x1a8] sm:$0xff]
    %v2162 = vld [vmem:[#allocation9 + $0x1b0] sm:$0xff]
    %v2163 = vld [vmem:[#allocation9 + $0x1b8] sm:$0xff]
    %v2164 = vld [vmem:[#allocation9 + $0x1c0] sm:$0xff]
    %v2165 = vld [vmem:[#allocation9 + $0x1c8] sm:$0xff]
    %v2166 = vld [vmem:[#allocation9 + $0x1d0] sm:$0xff]
    %v2167 = vld [vmem:[#allocation9 + $0x1d8] sm:$0xff]
    %v2168 = vld [vmem:[#allocation9 + $0x1e0] sm:$0xff]
    %v2169 = vld [vmem:[#allocation9 + $0x1e8] sm:$0xff]
    %v2170 = vld [vmem:[#allocation9 + $0x1f0] sm:$0xff]
    %v2171 = vld [vmem:[#allocation9 + $0x1f8] sm:$0xff]
    %2172 = vmatprep.subr.mxu0 %v2109
    %2173 = vmatpush1.msra.mxu0 %v2108
    %2174 = vmatprep.subr.mxu0 %v2113
    %2175 = vmatpush1.msra.mxu0 %v2112
    %2176 = vmatprep.subr.mxu0 %v2117
    %2177 = vmatpush1.msra.mxu0 %v2116
    %2178 = vmatprep.subr.mxu0 %v2121
    %2179 = vmatpush1.msra.mxu0 %v2120
    %2180 = vmatprep.subr.mxu0 %v2125
    %2181 = vmatpush1.msra.mxu0 %v2124
    %2182 = vmatprep.subr.mxu0 %v2129
    %2183 = vmatpush1.msra.mxu0 %v2128
    %2184 = vmatprep.subr.mxu0 %v2133
    %2185 = vmatpush1.msra.mxu0 %v2132
    %2186 = vmatprep.subr.mxu0 %v2137
    %2187 = vmatpush1.msra.mxu0 %v2136
    %2188 = vmatprep.subr.mxu0 %v2141
    %2189 = vmatpush1.msra.mxu0 %v2140
    %2190 = vmatprep.subr.mxu0 %v2145
    %2191 = vmatpush1.msra.mxu0 %v2144
    %2192 = vmatprep.subr.mxu0 %v2149
    %2193 = vmatpush1.msra.mxu0 %v2148
    %2194 = vmatprep.subr.mxu0 %v2153
    %2195 = vmatpush1.msra.mxu0 %v2152
    %2196 = vmatprep.subr.mxu0 %v2157
    %2197 = vmatpush1.msra.mxu0 %v2156
    %2198 = vmatprep.subr.mxu0 %v2161
    %2199 = vmatpush1.msra.mxu0 %v2160
    %2200 = vmatprep.subr.mxu0 %v2165
    %2201 = vmatpush1.msra.mxu0 %v2164
    %2202 = vmatprep.subr.mxu0 %v2169
    %2203 = vmatpush1.msra.mxu0 %v2168
    %2204 = vmatprep.subr.mxu0 0.0
    %2205 = vmatpush1.msra.mxu0 0.0
    %2206 = vmatprep.subr.mxu0 0.0
    %2207 = vmatpush1.msra.mxu0 0.0
    %2208 = vmatprep.subr.mxu0 0.0
    %2209 = vmatpush1.msra.mxu0 0.0
    %2210 = vmatprep.subr.mxu0 0.0
    %2211 = vmatpush1.msra.mxu0 0.0
    %2212 = vmatprep.subr.mxu0 0.0
    %2213 = vmatpush1.msra.mxu0 0.0
    %2214 = vmatprep.subr.mxu0 0.0
    %2215 = vmatpush1.msra.mxu0 0.0
    %2216 = vmatprep.subr.mxu0 0.0
    %2217 = vmatpush1.msra.mxu0 0.0
    %2218 = vmatprep.subr.mxu0 0.0
    %2219 = vmatpush1.msra.mxu0 0.0
    %2220 = vmatprep.subr.mxu0 0.0
    %2221 = vmatpush1.msra.mxu0 0.0
    %2222 = vmatprep.subr.mxu0 0.0
    %2223 = vmatpush1.msra.mxu0 0.0
    %2224 = vmatprep.subr.mxu0 0.0
    %2225 = vmatpush1.msra.mxu0 0.0
    %2226 = vmatprep.subr.mxu0 0.0
    %2227 = vmatpush1.msra.mxu0 0.0
    %2228 = vmatprep.subr.mxu0 0.0
    %2229 = vmatpush1.msra.mxu0 0.0
    %2230 = vmatprep.subr.mxu0 0.0
    %2231 = vmatpush1.msra.mxu0 0.0
    %2232 = vmatprep.subr.mxu0 0.0
    %2233 = vmatpush1.msra.mxu0 0.0
    %2234 = vmatprep.subr.mxu0 0.0
    %2235 = vmatpush1.msra.mxu0 0.0
    %2236 = vmatprep.mubr.f32.mxu0 0.0
    %2237 = vmatmul.mubr.f32.gmra.mrb[0].mxu0 %v2100
    %v2238 = vpop.f32.mrb[0].mxu0
    %v2239 = vadd.f32 0.0, %v2238
    %v2240 = vpop.f32.mrb[0].mxu0
    %v2241 = vadd.f32 0.0, %v2240
    %2242 = vdwg.mxu0
    %2243 = vmatprep.subr.mxu0 %v2111
    %2244 = vmatpush1.msra.mxu0 %v2110
    %2245 = vmatprep.subr.mxu0 %v2115
    %2246 = vmatpush1.msra.mxu0 %v2114
    %2247 = vmatprep.subr.mxu0 %v2119
    %2248 = vmatpush1.msra.mxu0 %v2118
    %2249 = vmatprep.subr.mxu0 %v2123
    %2250 = vmatpush1.msra.mxu0 %v2122
    %2251 = vmatprep.subr.mxu0 %v2127
    %2252 = vmatpush1.msra.mxu0 %v2126
    %2253 = vmatprep.subr.mxu0 %v2131
    %2254 = vmatpush1.msra.mxu0 %v2130
    %2255 = vmatprep.subr.mxu0 %v2135
    %2256 = vmatpush1.msra.mxu0 %v2134
    %2257 = vmatprep.subr.mxu0 %v2139
    %2258 = vmatpush1.msra.mxu0 %v2138
    %2259 = vmatprep.subr.mxu0 %v2143
    %2260 = vmatpush1.msra.mxu0 %v2142
    %2261 = vmatprep.subr.mxu0 %v2147
    %2262 = vmatpush1.msra.mxu0 %v2146
    %2263 = vmatprep.subr.mxu0 %v2151
    %2264 = vmatpush1.msra.mxu0 %v2150
    %2265 = vmatprep.subr.mxu0 %v2155
    %2266 = vmatpush1.msra.mxu0 %v2154
    %2267 = vmatprep.subr.mxu0 %v2159
    %2268 = vmatpush1.msra.mxu0 %v2158
    %2269 = vmatprep.subr.mxu0 %v2163
    %2270 = vmatpush1.msra.mxu0 %v2162
    %2271 = vmatprep.subr.mxu0 %v2167
    %2272 = vmatpush1.msra.mxu0 %v2166
    %2273 = vmatprep.subr.mxu0 %v2171
    %2274 = vmatpush1.msra.mxu0 %v2170
    %2275 = vmatprep.subr.mxu0 0.0
    %2276 = vmatpush1.msra.mxu0 0.0
    %2277 = vmatprep.subr.mxu0 0.0
    %2278 = vmatpush1.msra.mxu0 0.0
    %2279 = vmatprep.subr.mxu0 0.0
    %2280 = vmatpush1.msra.mxu0 0.0
    %2281 = vmatprep.subr.mxu0 0.0
    %2282 = vmatpush1.msra.mxu0 0.0
    %2283 = vmatprep.subr.mxu0 0.0
    %2284 = vmatpush1.msra.mxu0 0.0
    %2285 = vmatprep.subr.mxu0 0.0
    %2286 = vmatpush1.msra.mxu0 0.0
    %2287 = vmatprep.subr.mxu0 0.0
    %2288 = vmatpush1.msra.mxu0 0.0
    %2289 = vmatprep.subr.mxu0 0.0
    %2290 = vmatpush1.msra.mxu0 0.0
    %2291 = vmatprep.subr.mxu0 0.0
    %2292 = vmatpush1.msra.mxu0 0.0
    %2293 = vmatprep.subr.mxu0 0.0
    %2294 = vmatpush1.msra.mxu0 0.0
    %2295 = vmatprep.subr.mxu0 0.0
    %2296 = vmatpush1.msra.mxu0 0.0
    %2297 = vmatprep.subr.mxu0 0.0
    %2298 = vmatpush1.msra.mxu0 0.0
    %2299 = vmatprep.subr.mxu0 0.0
    %2300 = vmatpush1.msra.mxu0 0.0
    %2301 = vmatprep.subr.mxu0 0.0
    %2302 = vmatpush1.msra.mxu0 0.0
    %2303 = vmatprep.subr.mxu0 0.0
    %2304 = vmatpush1.msra.mxu0 0.0
    %2305 = vmatprep.subr.mxu0 0.0
    %2306 = vmatpush1.msra.mxu0 0.0
    %2307 = vmatprep.mubr.f32.mxu0 0.0
    %2308 = vmatmul.mubr.f32.gmra.mrb[0].mxu0 %v2100
    %v2309 = vpop.f32.mrb[0].mxu0
    %v2310 = vadd.f32 0.0, %v2309
    %v2311 = vpop.f32.mrb[0].mxu0
    %v2312 = vadd.f32 0.0, %v2311
    %2313 = vdwg.mxu0
    %v2314 = vadd.f32 %v2104, %v2239
    %v2315 = vadd.f32 %v2105, %v2241
    %v2316 = vadd.f32 %v2106, %v2310
    %v2317 = vadd.f32 %v2107, %v2312
    %v2318 = vmul.f32 %v2314, 0.5
    %v2319 = vtanh.pop %v2318
    %v2320 = vadd.f32 %v2319, 1.0
    %v2321 = vmul.f32 %v2320, 0.5
    %v2322 = vmul.f32 %v2315, 0.5
    %v2323 = vtanh.pop %v2322
    %v2324 = vadd.f32 %v2323, 1.0
    %v2325 = vmul.f32 %v2324, 0.5
    %v2326 = vtanh.pop %v2316
    %v2327 = vmul.f32 %v2317, 0.5
    %v2328 = vtanh.pop %v2327
    %v2329 = vadd.f32 %v2328, 1.0
    %v2330 = vmul.f32 %v2329, 0.5
    %v2331 = vmul.f32 %v2325, %v2098
    %v2332 = vmul.f32 %v2321, %v2326
    %v2333 = vadd.f32 %v2331, %v2332
    %v2334 = vtanh.pop %v2333
    %v2335 = vmul.f32 %v2330, %v2334
    %s2336 = scalar_lea.vmem [#allocation5], 56
    %2337 = vst [vmem:[%s2336] sm:$0xff] %v2335
    %2338 = vst [vmem:[#allocation2] sm:$0xff] %v2335
    %2339 = vst [vmem:[#allocation3] sm:$0xff] %v2333
    %v2340 = vld [vmem:[#allocation5] sm:$0xff]
    %v2341 = vld [vmem:[#allocation5 + $0x8] sm:$0xff]
    %v2342 = vld [vmem:[#allocation5 + $0x10] sm:$0xff]
    %v2343 = vld [vmem:[#allocation5 + $0x18] sm:$0xff]
    %v2344 = vld [vmem:[#allocation5 + $0x20] sm:$0xff]
    %v2345 = vld [vmem:[#allocation5 + $0x28] sm:$0xff]
    %v2346 = vld [vmem:[#allocation5 + $0x30] sm:$0xff]
    %v2347 = vld [vmem:[#allocation5 + $0x38] sm:$0xff]
    %v2348 = vld [vmem:[%s1] sm:$0xff]
    %v2349 = vld [vmem:[%s1 + $0x8] sm:$0xff]
    %v2350 = vld [vmem:[%s1 + $0x10] sm:$0xff]
    %v2351 = vld [vmem:[%s1 + $0x18] sm:$0xff]
    %v2352 = vld [vmem:[%s1 + $0x20] sm:$0xff]
    %v2353 = vld [vmem:[%s1 + $0x28] sm:$0xff]
    %v2354 = vld [vmem:[%s1 + $0x30] sm:$0xff]
    %v2355 = vld [vmem:[%s1 + $0x38] sm:$0xff]
    %2357 = vset.pattern.permute.xlu0 0
    %2358 = vperm.xlu0 %2357, %v2348
    %v2359 = vpop.permute.xlu0 %2358
    %2362 = vset.pattern.permute.xlu0 0
    %2363 = vperm.xlu0 %2362, %v2349
    %v2364 = vpop.permute.xlu0 %2363
    %2367 = vset.pattern.permute.xlu0 0
    %2368 = vperm.xlu0 %2367, %v2350
    %v2369 = vpop.permute.xlu0 %2368
    %2372 = vset.pattern.permute.xlu0 0
    %2373 = vperm.xlu0 %2372, %v2351
    %v2374 = vpop.permute.xlu0 %2373
    %2377 = vset.pattern.permute.xlu0 0
    %2378 = vperm.xlu0 %2377, %v2352
    %v2379 = vpop.permute.xlu0 %2378
    %2382 = vset.pattern.permute.xlu0 0
    %2383 = vperm.xlu0 %2382, %v2353
    %v2384 = vpop.permute.xlu0 %2383
    %2387 = vset.pattern.permute.xlu0 0
    %2388 = vperm.xlu0 %2387, %v2354
    %v2389 = vpop.permute.xlu0 %2388
    %2392 = vset.pattern.permute.xlu0 0
    %2393 = vperm.xlu0 %2392, %v2355
    %v2394 = vpop.permute.xlu0 %2393
    %v2396 = vmul.f32 %v2340, %v2359
    %v2397 = vmul.f32 %v2341, %v2364
    %v2398 = vmul.f32 %v2342, %v2369
    %v2399 = vmul.f32 %v2343, %v2374
    %v2400 = vmul.f32 %v2344, %v2379
    %v2401 = vmul.f32 %v2345, %v2384
    %v2402 = vmul.f32 %v2346, %v2389
    %v2403 = vmul.f32 %v2347, %v2394
    %v2404 = vld [vmem:[#allocation11] sm:$0xff]
    %v2405 = vld [vmem:[#allocation11 + $0x8] sm:$0xff]
    %v2406 = vld [vmem:[#allocation11 + $0x10] sm:$0xff]
    %v2407 = vld [vmem:[#allocation11 + $0x18] sm:$0xff]
    %v2408 = vld [vmem:[#allocation11 + $0x20] sm:$0xff]
    %v2409 = vld [vmem:[#allocation11 + $0x28] sm:$0xff]
    %v2410 = vld [vmem:[#allocation11 + $0x30] sm:$0xff]
    %v2411 = vld [vmem:[#allocation11 + $0x38] sm:$0xff]
    %v2412 = vld [vmem:[#allocation11 + $0x40] sm:$0xff]
    %v2413 = vld [vmem:[#allocation11 + $0x48] sm:$0xff]
    %v2414 = vld [vmem:[#allocation11 + $0x50] sm:$0xff]
    %v2415 = vld [vmem:[#allocation11 + $0x58] sm:$0xff]
    %v2416 = vld [vmem:[#allocation11 + $0x60] sm:$0xff]
    %v2417 = vld [vmem:[#allocation11 + $0x68] sm:$0xff]
    %v2418 = vld [vmem:[#allocation11 + $0x70] sm:$0xff]
    %v2419 = vld [vmem:[#allocation11 + $0x78] sm:$0xff]
    %v2420 = vld [vmem:[%s6] sm:$0x1]
    %v2422 = vlaneseq
    %v2423 = vshrl.u32 %v2422, 7
    %v2424 = vsub.s32 0, %v2423
    %v2425 = vrot.slane %v2420, %v2424
    %2427 = vmatprep.subr.mxu0 0.0
    %2428 = vmatpush1.msra.mxu0 %v2404
    %2429 = vmatprep.subr.mxu0 0.0
    %2430 = vmatpush1.msra.mxu0 %v2405
    %2431 = vmatprep.subr.mxu0 0.0
    %2432 = vmatpush1.msra.mxu0 %v2406
    %2433 = vmatprep.subr.mxu0 0.0
    %2434 = vmatpush1.msra.mxu0 %v2407
    %2435 = vmatprep.subr.mxu0 0.0
    %2436 = vmatpush1.msra.mxu0 %v2408
    %2437 = vmatprep.subr.mxu0 0.0
    %2438 = vmatpush1.msra.mxu0 %v2409
    %2439 = vmatprep.subr.mxu0 0.0
    %2440 = vmatpush1.msra.mxu0 %v2410
    %2441 = vmatprep.subr.mxu0 0.0
    %2442 = vmatpush1.msra.mxu0 %v2411
    %2443 = vmatprep.subr.mxu0 0.0
    %2444 = vmatpush1.msra.mxu0 %v2412
    %2445 = vmatprep.subr.mxu0 0.0
    %2446 = vmatpush1.msra.mxu0 %v2413
    %2447 = vmatprep.subr.mxu0 0.0
    %2448 = vmatpush1.msra.mxu0 %v2414
    %2449 = vmatprep.subr.mxu0 0.0
    %2450 = vmatpush1.msra.mxu0 %v2415
    %2451 = vmatprep.subr.mxu0 0.0
    %2452 = vmatpush1.msra.mxu0 %v2416
    %2453 = vmatprep.subr.mxu0 0.0
    %2454 = vmatpush1.msra.mxu0 %v2417
    %2455 = vmatprep.subr.mxu0 0.0
    %2456 = vmatpush1.msra.mxu0 %v2418
    %2457 = vmatprep.subr.mxu0 0.0
    %2458 = vmatpush1.msra.mxu0 %v2419
    %2459 = vmatprep.subr.mxu0 0.0
    %2460 = vmatpush1.msra.mxu0 0.0
    %2461 = vmatprep.subr.mxu0 0.0
    %2462 = vmatpush1.msra.mxu0 0.0
    %2463 = vmatprep.subr.mxu0 0.0
    %2464 = vmatpush1.msra.mxu0 0.0
    %2465 = vmatprep.subr.mxu0 0.0
    %2466 = vmatpush1.msra.mxu0 0.0
    %2467 = vmatprep.subr.mxu0 0.0
    %2468 = vmatpush1.msra.mxu0 0.0
    %2469 = vmatprep.subr.mxu0 0.0
    %2470 = vmatpush1.msra.mxu0 0.0
    %2471 = vmatprep.subr.mxu0 0.0
    %2472 = vmatpush1.msra.mxu0 0.0
    %2473 = vmatprep.subr.mxu0 0.0
    %2474 = vmatpush1.msra.mxu0 0.0
    %2475 = vmatprep.subr.mxu0 0.0
    %2476 = vmatpush1.msra.mxu0 0.0
    %2477 = vmatprep.subr.mxu0 0.0
    %2478 = vmatpush1.msra.mxu0 0.0
    %2479 = vmatprep.subr.mxu0 0.0
    %2480 = vmatpush1.msra.mxu0 0.0
    %2481 = vmatprep.subr.mxu0 0.0
    %2482 = vmatpush1.msra.mxu0 0.0
    %2483 = vmatprep.subr.mxu0 0.0
    %2484 = vmatpush1.msra.mxu0 0.0
    %2485 = vmatprep.subr.mxu0 0.0
    %2486 = vmatpush1.msra.mxu0 0.0
    %2487 = vmatprep.subr.mxu0 0.0
    %2488 = vmatpush1.msra.mxu0 0.0
    %2489 = vmatprep.subr.mxu0 0.0
    %2490 = vmatpush1.msra.mxu0 0.0
    %2491 = vmatprep.mubr.f32.mxu0 0.0
    %2492 = vmatmul.mubr.f32.gmra.mrb[0].mxu0 %v2396
    %v2493 = vpop.f32.mrb[0].mxu0
    %v2494 = vadd.f32 %v2425, %v2493
    %v2495 = vpop.f32.mrb[0].mxu0
    %2496 = vmatprep.mubr.f32.mxu0 0.0
    %2497 = vmatmul.mubr.f32.gmra.mrb[0].mxu0 %v2397
    %v2498 = vpop.f32.mrb[0].mxu0
    %v2499 = vadd.f32 %v2425, %v2498
    %v2500 = vpop.f32.mrb[0].mxu0
    %2501 = vmatprep.mubr.f32.mxu0 0.0
    %2502 = vmatmul.mubr.f32.gmra.mrb[0].mxu0 %v2398
    %v2503 = vpop.f32.mrb[0].mxu0
    %v2504 = vadd.f32 %v2425, %v2503
    %v2505 = vpop.f32.mrb[0].mxu0
    %2506 = vmatprep.mubr.f32.mxu0 0.0
    %2507 = vmatmul.mubr.f32.gmra.mrb[0].mxu0 %v2399
    %v2508 = vpop.f32.mrb[0].mxu0
    %v2509 = vadd.f32 %v2425, %v2508
    %v2510 = vpop.f32.mrb[0].mxu0
    %2511 = vmatprep.mubr.f32.mxu0 0.0
    %2512 = vmatmul.mubr.f32.gmra.mrb[0].mxu0 %v2400
    %v2513 = vpop.f32.mrb[0].mxu0
    %v2514 = vadd.f32 %v2425, %v2513
    %v2515 = vpop.f32.mrb[0].mxu0
    %2516 = vmatprep.mubr.f32.mxu0 0.0
    %2517 = vmatmul.mubr.f32.gmra.mrb[0].mxu0 %v2401
    %v2518 = vpop.f32.mrb[0].mxu0
    %v2519 = vadd.f32 %v2425, %v2518
    %v2520 = vpop.f32.mrb[0].mxu0
    %2521 = vmatprep.mubr.f32.mxu0 0.0
    %2522 = vmatmul.mubr.f32.gmra.mrb[0].mxu0 %v2402
    %v2523 = vpop.f32.mrb[0].mxu0
    %v2524 = vadd.f32 %v2425, %v2523
    %v2525 = vpop.f32.mrb[0].mxu0
    %2526 = vmatprep.mubr.f32.mxu0 0.0
    %2527 = vmatmul.mubr.f32.gmra.mrb[0].mxu0 %v2403
    %v2528 = vpop.f32.mrb[0].mxu0
    %v2529 = vadd.f32 %v2425, %v2528
    %v2530 = vpop.f32.mrb[0].mxu0
    %2531 = vdwg.mxu0
    %2532 = vst [vmem:[#allocation12] sm:$0xff] %v2494
    %2533 = vst [vmem:[#allocation12 + $0x8] sm:$0xff] %v2499
    %2534 = vst [vmem:[#allocation12 + $0x10] sm:$0xff] %v2504
    %2535 = vst [vmem:[#allocation12 + $0x18] sm:$0xff] %v2509
    %2536 = vst [vmem:[#allocation12 + $0x20] sm:$0xff] %v2514
    %2537 = vst [vmem:[#allocation12 + $0x28] sm:$0xff] %v2519
    %2538 = vst [vmem:[#allocation12 + $0x30] sm:$0xff] %v2524
    %2539 = vst [vmem:[#allocation12 + $0x38] sm:$0xff] %v2529
    // Predicated region
    $region46: #{tpu_custom_call.1} parent=1 // pred_check
      _
    $region47: #{tpu_custom_call.1} parent=1 // pred_check_branch
      %2541 = sbr.rel (0) target = $region49
    $region48: #{tpu_custom_call.1} parent=1 // pred_region
      %s2543 = ssub.s32 1024, 1024
      %2544 = vsyncadd [#allocation8], %s2543
      %s2545 = sshll.u32 [#allocation12], 4
      %s2546 = int_to_ptr.vmem [resolvable:$true] %s2545
      %2551 = dma.vmem_to_hbm [thread:$0]  %s2546, 1024, %s7, [#allocation8], 128, 128, 8
    $region49: #{tpu_custom_call.1} parent=1 // pred_fallthru
      _
    // Predicated region
    $region50: #{tpu_custom_call.1} parent=1 // pred_check
      _
    $region51: #{tpu_custom_call.1} parent=1 // pred_check_branch
      %2553 = sbr.rel (0) target = $region53
    $region52: #{tpu_custom_call.1} parent=1 // pred_region
      %2554 = dma.done [#allocation8], 1024
    $region53: #{tpu_custom_call.1} parent=1 // pred_fallthru
      _
    %2555 = vsyncpa [#allocation7], 1
    %2556 = vsyncpa [#allocation10], 1
    %2557 = vsyncpa [#allocation8], 1

</llo_original>
